<compile_context>
chip_gen: v7x
topology: tpu7x:2x2x1
jax: 0.10.0
libtpu: 0.0.40
codegen_flags: <defaults>
</compile_context>

<pallas_src>
import functools
import numpy as np
import jax
import jax.numpy as jnp
from jax.experimental import pallas as pl
from jax.experimental.pallas import tpu as pltpu

TM = 256                      # node-row tile
TK = 256                      # contraction (source node) tile
TE = 1024                     # edge-row tile for the similarity loss


def _default_vmem_limit():
    try:
        cap = int(pltpu.get_tpu_info().vmem_capacity_bytes)
    except Exception:
        cap = 64 * 1024 * 1024
    # Leave headroom for Mosaic internal scratch / pipeline double buffers.
    return min((cap * 3) // 4, 100 * 1024 * 1024)


VMEM_LIMIT = _default_vmem_limit()


def _round_up(x, m):
    return ((x + m - 1) // m) * m


# ---------------------------------------------------------------------------
# Fused pos+neg SignedSAGE layer (base and deep share this kernel).
# Optionally fuses the regression head (log_softmax) into the finalize of the
# last layer.
# ---------------------------------------------------------------------------
def _sgcn_layer_kernel(ap_ref, an_ref, h_ref, coef_ref, w1_ref, w2_ref, w3_ref,
                       b_ref, sel_ref, *rest, with_head):
    # agg_pos = s_pos*(A_pos_ind @ H) + d_pos*H_self
    # agg_neg = s_neg*(A_neg_ind @ H) + d_neg*H_self
    # pre     = agg_pos@W1 + agg_neg@W2 + H_self@W3 + b
    # out     = tanh(per-half-L2-normalize(pre))    halves = [pos | neg]
    # (head)  pred = log_softmax(out @ W_reg + b_reg)
    if with_head:
        wr_ref, br_ref, o_ref, pred_ref, accp_ref, accn_ref = rest
    else:
        o_ref, accp_ref, accn_ref = rest
        wr_ref = br_ref = pred_ref = None

    i = pl.program_id(0)
    k = pl.program_id(1)

    @pl.when(k == 0)
    def _init():
        accp_ref[...] = jnp.zeros_like(accp_ref)
        accn_ref[...] = jnp.zeros_like(accn_ref)

    # H is resident in VMEM: slice the contraction rows in-kernel.
    ks = pl.multiple_of(k * TK, TK)
    hk = h_ref[pl.ds(ks, TK), :]
    accp_ref[...] += jnp.dot(ap_ref[...], hk, preferred_element_type=jnp.float32)
    accn_ref[...] += jnp.dot(an_ref[...], hk, preferred_element_type=jnp.float32)

    @pl.when(k == pl.num_programs(1) - 1)
    def _finalize():
        i_start = pl.multiple_of(i * TM, TM)
        hs = h_ref[pl.ds(i_start, TM), :].astype(jnp.float32)      # self rows
        coef = coef_ref[...]                                       # (TM, 4) f32
        sp = coef[:, 0:1]
        dp = coef[:, 1:2]
        sn = coef[:, 2:3]
        dn = coef[:, 3:4]
        aggp = sp * accp_ref[...] + dp * hs
        aggn = sn * accn_ref[...] + dn * hs
        pre = (jnp.dot(aggp, w1_ref[...], preferred_element_type=jnp.float32)
               + jnp.dot(aggn, w2_ref[...], preferred_element_type=jnp.float32)
               + jnp.dot(hs, w3_ref[...], preferred_element_type=jnp.float32)
               + b_ref[...])
        # per-half L2 normalize via block-diagonal selector matmul + rsqrt (EUP)
        ss = jnp.dot(pre * pre, sel_ref[...], preferred_element_type=jnp.float32)
        inv = jax.lax.rsqrt(jnp.maximum(ss, 1e-24))                # == 1/max(||.||,1e-12)
        out = jnp.tanh(pre * inv)
        o_ref[...] = out.astype(o_ref.dtype)                       # bf16 writeback

        if with_head:
            logits = (jnp.dot(out, wr_ref[...], preferred_element_type=jnp.float32)
                      + br_ref[...])
            m = jnp.max(logits, axis=1, keepdims=True)
            lse = jnp.log(jnp.sum(jnp.exp(logits - m), axis=1, keepdims=True)) + m
            pred_ref[...] = logits - lse


def sgcn_layer(a_pos, a_neg, h_bf16, coef, w1, w2, w3, b, sel,
               w_reg=None, b_reg=None):
    n_pad = a_pos.shape[0]
    kin = h_bf16.shape[1]
    d2 = w1.shape[1]
    with_head = w_reg is not None
    grid = (n_pad // TM, n_pad // TK)

    in_specs = [
        pl.BlockSpec((TM, TK), lambda i, k: (i, k)),       # A_pos tile (bf16 counts)
        pl.BlockSpec((TM, TK), lambda i, k: (i, k)),       # A_neg tile (bf16 counts)
        pl.BlockSpec((n_pad, kin), lambda i, k: (0, 0)),   # H resident in VMEM
        pl.BlockSpec((TM, 4), lambda i, k: (i, 0)),        # [s_pos,d_pos,s_neg,d_neg]
        pl.BlockSpec((kin, d2), lambda i, k: (0, 0)),      # W1 (agg_pos path)
        pl.BlockSpec((kin, d2), lambda i, k: (0, 0)),      # W2 (agg_neg path)
        pl.BlockSpec((kin, d2), lambda i, k: (0, 0)),      # W3 (self path)
        pl.BlockSpec((1, d2), lambda i, k: (0, 0)),        # bias
        pl.BlockSpec((d2, d2), lambda i, k: (0, 0)),       # block-diag selector
    ]
    operands = [a_pos, a_neg, h_bf16, coef, w1, w2, w3, b, sel]
    out_specs = pl.BlockSpec((TM, d2), lambda i, k: (i, 0))
    out_shape = jax.ShapeDtypeStruct((n_pad, d2), jnp.bfloat16)

    if with_head:
        c_pad = w_reg.shape[1]
        in_specs += [pl.BlockSpec((d2, c_pad), lambda i, k: (0, 0)),
                     pl.BlockSpec((1, c_pad), lambda i, k: (0, 0))]
        operands += [w_reg, b_reg]
        out_specs = [out_specs, pl.BlockSpec((TM, c_pad), lambda i, k: (i, 0))]
        out_shape = (out_shape, jax.ShapeDtypeStruct((n_pad, c_pad), jnp.float32))

    kernel = functools.partial(_sgcn_layer_kernel, with_head=with_head)
    return pl.pallas_call(
        kernel,
        out_shape=out_shape,
        grid=grid,
        in_specs=in_specs,
        out_specs=out_specs,
        scratch_shapes=[pltpu.VMEM((TM, kin), jnp.float32),
                        pltpu.VMEM((TM, kin), jnp.float32)],
        compiler_params=pltpu.CompilerParams(
            dimension_semantics=("parallel", "arbitrary"),
            vmem_limit_bytes=VMEM_LIMIT),
    )(*operands)


# ---------------------------------------------------------------------------
# Combined similarity loss:  sum_e w_e * exp(cos(z_i, z_j)),
# w = -1/E_pos on positive edges, +1/E_neg on negative edges.
# Inputs are the lane-dense 128-wide bf16 h rows (zero-padded halves, so the
# dot/norms over 128 lanes equal those over the real embedding dims).
# ---------------------------------------------------------------------------
def _sim_loss_kernel(zi_ref, zj_ref, w_ref, o_ref):
    @pl.when(pl.program_id(0) == 0)
    def _init():
        o_ref[...] = jnp.zeros_like(o_ref)

    zi = zi_ref[...].astype(jnp.float32)
    zj = zj_ref[...].astype(jnp.float32)
    dot = jnp.sum(zi * zj, axis=1, keepdims=True)
    inv_i = jax.lax.rsqrt(jnp.maximum(jnp.sum(zi * zi, axis=1, keepdims=True), 1e-16))
    inv_j = jax.lax.rsqrt(jnp.maximum(jnp.sum(zj * zj, axis=1, keepdims=True), 1e-16))
    cos = dot * inv_i * inv_j
    o_ref[...] += jnp.sum(jnp.exp(cos) * w_ref[...], keepdims=True)


def sim_loss(zi, zj, w):
    e_pad, d2 = zi.shape
    out = pl.pallas_call(
        _sim_loss_kernel,
        out_shape=jax.ShapeDtypeStruct((1, 1), jnp.float32),
        grid=(e_pad // TE,),
        in_specs=[
            pl.BlockSpec((TE, d2), lambda i: (i, 0)),
            pl.BlockSpec((TE, d2), lambda i: (i, 0)),
            pl.BlockSpec((TE, 1), lambda i: (i, 0)),
        ],
        out_specs=pl.BlockSpec((1, 1), lambda i: (0, 0)),
        compiler_params=pltpu.CompilerParams(
            dimension_semantics=("arbitrary",),
            vmem_limit_bytes=VMEM_LIMIT),
    )(zi, zj, w)
    return out[0, 0]


# ---------------------------------------------------------------------------
# Glue (plain JAX): graph construction, weight packing, forward pass
# ---------------------------------------------------------------------------
def build_graph(edges, n_pad):
    # Exact (multi-)edge-count adjacency built directly in bf16 (counts <= 256
    # are exact in bf16); mean normalization folded into f32 coefficients:
    #   base layer (no self loop):  agg = (1/max(deg,1)) * (A_ind @ x)
    #   deep layer (+ self loop):   agg = (1/(deg+1)) * (A_ind @ x + x_self)
    row, col = edges[0], edges[1]
    keep = row != col                                      # remove_self_loops
    a_ind = (jnp.zeros((n_pad, n_pad), jnp.bfloat16)
             .at[row, col].add(keep.astype(jnp.bfloat16)))
    deg = jnp.zeros((n_pad,), jnp.float32).at[row].add(keep.astype(jnp.float32))
    deg = deg[:, None]
    s_base = 1.0 / jnp.maximum(deg, 1.0)
    sd_deep = 1.0 / (deg + 1.0)
    return a_ind, s_base, sd_deep


def make_selector(d2, half):
    ri = jax.lax.broadcasted_iota(jnp.int32, (d2, d2), 0)
    ci = jax.lax.broadcasted_iota(jnp.int32, (d2, d2), 1)
    return ((ri < half) == (ci < half)).astype(jnp.float32)


def pack_base(wp, bp, wn, bn, f, d, d_pad):
    d2 = 2 * d_pad
    w1 = jnp.zeros((f, d2), jnp.float32).at[:, :d].set(wp[:f])
    w2 = jnp.zeros((f, d2), jnp.float32).at[:, d_pad:d_pad + d].set(wn[:f])
    w3 = (jnp.zeros((f, d2), jnp.float32)
          .at[:, :d].set(wp[f:])
          .at[:, d_pad:d_pad + d].set(wn[f:]))
    b = (jnp.zeros((1, d2), jnp.float32)
         .at[:, :d].set(bp)
         .at[:, d_pad:d_pad + d].set(bn))
    return w1, w2, w3, b


def pack_deep(wp, bp, wn, bn, din, din_pad, dout, dout_pad):
    kin, d2 = 2 * din_pad, 2 * dout_pad
    w1 = (jnp.zeros((kin, d2), jnp.float32)
          .at[:din, :dout].set(wp[:din])
          .at[din_pad:din_pad + din, dout_pad:dout_pad + dout].set(wn[:din]))
    w2 = (jnp.zeros((kin, d2), jnp.float32)
          .at[din_pad:din_pad + din, :dout].set(wp[din:2 * din])
          .at[:din, dout_pad:dout_pad + dout].set(wn[din:2 * din]))
    w3 = (jnp.zeros((kin, d2), jnp.float32)
          .at[:din, :dout].set(wp[2 * din:])
          .at[din_pad:din_pad + din, dout_pad:dout_pad + dout].set(wn[2 * din:]))
    b = (jnp.zeros((1, d2), jnp.float32)
         .at[:, :dout].set(bp)
         .at[:, dout_pad:dout_pad + dout].set(bn))
    return w1, w2, w3, b


def pack_head(params, d_cur, d_cur_pad, c, c_pad):
    w_reg, b_reg = params["w_reg"], params["b_reg"]
    w_reg_pad = (jnp.zeros((2 * d_cur_pad, c_pad), jnp.float32)
                 .at[:d_cur, :c].set(w_reg[:d_cur])
                 .at[d_cur_pad:d_cur_pad + d_cur, :c].set(w_reg[d_cur:]))
    # pad logits forced to -1e30 (safe: >=1 real class column exists per row)
    b_reg_pad = jnp.full((1, c_pad), -1e30, jnp.float32).at[:, :c].set(b_reg)
    return w_reg_pad, b_reg_pad


def sgcn_forward(params, x, positive_edges, negative_edges):
    n, f = x.shape
    n_pad = _round_up(n, max(TM, TK))

    a_pos, sb_pos, sd_pos = build_graph(positive_edges, n_pad)
    a_neg, sb_neg, sd_neg = build_graph(negative_edges, n_pad)
    zeros = jnp.zeros((n_pad, 1), jnp.float32)
    coef_base = jnp.concatenate([sb_pos, zeros, sb_neg, zeros], axis=1)    # (n_pad, 4)
    coef_deep = jnp.concatenate([sd_pos, sd_pos, sd_neg, sd_neg], axis=1)  # (n_pad, 4)

    h = jnp.zeros((n_pad, f), jnp.bfloat16).at[:n].set(x.astype(jnp.bfloat16))

    num_deep = len(params["w_pos_deep"])
    c = params["w_reg"].shape[1]
    c_pad = 128
    pred_pad = None

    # --- base layer (no self loops: d coefficients = 0) ---
    d_cur = params["w_pos_base"].shape[1]
    d_cur_pad = _round_up(d_cur, 64)          # per-sign hidden padded to 64 -> 128 lanes
    w1, w2, w3, b = pack_base(params["w_pos_base"], params["b_pos_base"],
                              params["w_neg_base"], params["b_neg_base"],
                              f, d_cur, d_cur_pad)
    sel = make_selector(2 * d_cur_pad, d_cur_pad)
    if num_deep == 0:
        w_reg_pad, b_reg_pad = pack_head(params, d_cur, d_cur_pad, c, c_pad)
        h, pred_pad = sgcn_layer(a_pos, a_neg, h, coef_base, w1, w2, w3, b, sel,
                                 w_reg_pad, b_reg_pad)
    else:
        h = sgcn_layer(a_pos, a_neg, h, coef_base, w1, w2, w3, b, sel)

    # --- deep layers (self loops folded into the coefficients) ---
    for li, (wp, bp, wn, bn) in enumerate(zip(params["w_pos_deep"], params["b_pos_deep"],
                                              params["w_neg_deep"], params["b_neg_deep"])):
        din, din_pad = d_cur, d_cur_pad
        d_cur = wp.shape[1]
        d_cur_pad = _round_up(d_cur, 64)
        w1, w2, w3, b = pack_deep(wp, bp, wn, bn, din, din_pad, d_cur, d_cur_pad)
        sel = make_selector(2 * d_cur_pad, d_cur_pad)
        if li == num_deep - 1:                # fuse the regression head into the last layer
            w_reg_pad, b_reg_pad = pack_head(params, d_cur, d_cur_pad, c, c_pad)
            h, pred_pad = sgcn_layer(a_pos, a_neg, h, coef_deep, w1, w2, w3, b, sel,
                                     w_reg_pad, b_reg_pad)
        else:
            h = sgcn_layer(a_pos, a_neg, h, coef_deep, w1, w2, w3, b, sel)

    # real (unpadded) embedding z = [h_pos | h_neg]
    z = jnp.concatenate([h[:n, :d_cur], h[:n, d_cur_pad:d_cur_pad + d_cur]],
                        axis=1).astype(jnp.float32)

    # --- nll_comm_loss outputs (computed in the fused head) ---
    predictions_soft = pred_pad[:n, :c]
    clarify = jnp.argmax(predictions_soft, axis=1)        # first-max index (== torch.max)

    # --- similarity losses: -mean(exp(cos_pos)) + mean(exp(cos_neg)) ---
    # TODO(synk): original structured_sampling source is unavailable; use the
    # edge endpoints (i, j) directly as the sampled node pairs.
    pi, pj = positive_edges[0], positive_edges[1]
    qi, qj = negative_edges[0], negative_edges[1]
    e_pos, e_neg = pi.shape[0], qi.shape[0]
    e_tot = e_pos + e_neg
    e_pad = _round_up(e_tot, TE)
    i_all = jnp.concatenate([pi, qi])
    j_all = jnp.concatenate([pj, qj])
    w_sign = jnp.concatenate([jnp.full((e_pos,), -1.0 / e_pos, jnp.float32),
                              jnp.full((e_neg,), 1.0 / e_neg, jnp.float32)])
    d2 = 2 * d_cur_pad
    zi = jnp.zeros((e_pad, d2), jnp.bfloat16).at[:e_tot].set(jnp.take(h, i_all, axis=0))
    zj = jnp.zeros((e_pad, d2), jnp.bfloat16).at[:e_tot].set(jnp.take(h, j_all, axis=0))
    w_col = jnp.zeros((e_pad, 1), jnp.float32).at[:e_tot, 0].set(w_sign)
    loss = sim_loss(zi, zj, w_col)

    return loss, z, clarify, predictions_soft


# ---------------------------------------------------------------------------
# Main
# ---------------------------------------------------------------------------
if __name__ == "__main__":
    key = jax.random.PRNGKey(0)
    keys = jax.random.split(key, 16)

    N, F = 16, 8                  # nodes, input features
    neurons = [32, 32]            # args.layers
    E_POS, E_NEG = 24, 24

    x = jax.random.normal(keys[0], (N, F), jnp.float32)
    positive_edges = jax.random.randint(keys[1], (2, E_POS), 0, N, jnp.int32)
    negative_edges = jax.random.randint(keys[2], (2, E_NEG), 0, N, jnp.int32)

    def uni(k, shape, fan):
        bound = 1.0 / np.sqrt(fan)
        return jax.random.uniform(k, shape, jnp.float32, -bound, bound)

    params = {
        "w_pos_base": uni(keys[3], (2 * F, neurons[0]), 2 * F),
        "b_pos_base": uni(keys[4], (1, neurons[0]), 2 * F),
        "w_neg_base": uni(keys[5], (2 * F, neurons[0]), 2 * F),
        "b_neg_base": uni(keys[6], (1, neurons[0]), 2 * F),
        "w_pos_deep": [], "b_pos_deep": [],
        "w_neg_deep": [], "b_neg_deep": [],
    }
    kidx = 7
    for i in range(1, len(neurons)):
        fan = 3 * neurons[i - 1]
        params["w_pos_deep"].append(uni(keys[kidx], (fan, neurons[i]), fan)); kidx += 1
        params["b_pos_deep"].append(uni(keys[kidx], (1, neurons[i]), fan)); kidx += 1
        params["w_neg_deep"].append(uni(keys[kidx], (fan, neurons[i]), fan)); kidx += 1
        params["b_neg_deep"].append(uni(keys[kidx], (1, neurons[i]), fan)); kidx += 1

    reg_std = np.sqrt(2.0 / (2 * neurons[-1] + 3))        # xavier_normal_
    params["w_reg"] = reg_std * jax.random.normal(keys[kidx], (2 * neurons[-1], 3), jnp.float32)
    params["b_reg"] = jnp.zeros((1, 3), jnp.float32)

    loss, z, clarify, pred_soft = sgcn_forward(params, x, positive_edges, negative_edges)
    jax.block_until_ready((loss, z, clarify, pred_soft))
    predicted_classes = np.asarray(clarify).tolist()      # matches .tolist() in nll_comm_loss

    assert z.shape == (N, 2 * neurons[-1])
    assert pred_soft.shape == (N, 3)
    assert len(predicted_classes) == N
    assert np.isfinite(float(loss))
    assert np.all(np.isfinite(np.asarray(z)))
    assert np.all(np.isfinite(np.asarray(pred_soft)))
    print("KERNEL_OK")
</pallas_src>

<mosaic_0001>
module attributes {stable_mosaic.version = 11 : i64} {
  func.func @_sgcn_layer_kernel(%arg0: i32, %arg1: i32, %arg2: memref<256x256xbf16, #tpu.memory_space<vmem>>, %arg3: memref<256x256xbf16, #tpu.memory_space<vmem>>, %arg4: memref<256x8xbf16, #tpu.memory_space<vmem>>, %arg5: memref<256x4xf32, #tpu.memory_space<vmem>>, %arg6: memref<8x128xf32, #tpu.memory_space<vmem>>, %arg7: memref<8x128xf32, #tpu.memory_space<vmem>>, %arg8: memref<8x128xf32, #tpu.memory_space<vmem>>, %arg9: memref<1x128xf32, #tpu.memory_space<vmem>>, %arg10: memref<128x128xf32, #tpu.memory_space<vmem>>, %arg11: memref<256x128xbf16, #tpu.memory_space<vmem>>, %arg12: memref<256x8xf32, #tpu.memory_space<vmem>>, %arg13: memref<256x8xf32, #tpu.memory_space<vmem>>) attributes {dimension_semantics = [#tpu.dimension_semantics<parallel>, #tpu.dimension_semantics<arbitrary>], iteration_bounds = array<i64: 1, 1>, scalar_prefetch = 0 : i64, scratch_operands = 2 : i64, tpu.core_type = #tpu.core_type<tc>, window_params = [{transform_indices = @transform_0, window_bounds = array<i64: 256, 256>}, {transform_indices = @transform_1, window_bounds = array<i64: 256, 256>}, {pipeline_mode = #tpu.pipeline_mode<synchronous>, transform_indices = @transform_2, window_bounds = array<i64: 256, 8>}, {transform_indices = @transform_3, window_bounds = array<i64: 256, 4>}, {pipeline_mode = #tpu.pipeline_mode<synchronous>, transform_indices = @transform_4, window_bounds = array<i64: 8, 128>}, {pipeline_mode = #tpu.pipeline_mode<synchronous>, transform_indices = @transform_5, window_bounds = array<i64: 8, 128>}, {pipeline_mode = #tpu.pipeline_mode<synchronous>, transform_indices = @transform_6, window_bounds = array<i64: 8, 128>}, {pipeline_mode = #tpu.pipeline_mode<synchronous>, transform_indices = @transform_7, window_bounds = array<i64: 1, 128>}, {pipeline_mode = #tpu.pipeline_mode<synchronous>, transform_indices = @transform_8, window_bounds = array<i64: 128, 128>}, {transform_indices = @transform_9, window_bounds = array<i64: 256, 128>}]} {
    %c0_i32 = arith.constant 0 : i32
    %0 = arith.cmpi eq, %arg1, %c0_i32 : i32
    %1 = arith.extui %0 : i1 to i32
    %c0_i32_0 = arith.constant 0 : i32
    %2 = arith.cmpi ne, %1, %c0_i32_0 : i32
    scf.if %2 {
      %cst_16 = arith.constant 0.000000e+00 : f32
      %20 = vector.broadcast %cst_16 : f32 to vector<256x8xf32>
      %c0_17 = arith.constant 0 : index
      %c0_18 = arith.constant 0 : index
      %21 = vector.load %arg12[%c0_17, %c0_18] : memref<256x8xf32, #tpu.memory_space<vmem>>, vector<256x8xf32>
      tpu.vector_store %arg12[%c0_17, %c0_18], %20 {strides = array<i32>} : memref<256x8xf32, #tpu.memory_space<vmem>>, vector<256x8xf32>,
      %cst_19 = arith.constant 0.000000e+00 : f32
      %22 = vector.broadcast %cst_19 : f32 to vector<256x8xf32>
      %c0_20 = arith.constant 0 : index
      %c0_21 = arith.constant 0 : index
      %23 = vector.load %arg13[%c0_20, %c0_21] : memref<256x8xf32, #tpu.memory_space<vmem>>, vector<256x8xf32>
      tpu.vector_store %arg13[%c0_20, %c0_21], %22 {strides = array<i32>} : memref<256x8xf32, #tpu.memory_space<vmem>>, vector<256x8xf32>,
    } else {
    }
    %c256_i32 = arith.constant 256 : i32
    %3 = arith.muli %arg1, %c256_i32 : i32
    %4 = tpu.assume_multiple %3, 256 : i32
    %5 = arith.index_cast %4 : i32 to index
    %c0 = arith.constant 0 : index
    %6 = vector.load %arg4[%5, %c0] : memref<256x8xbf16, #tpu.memory_space<vmem>>, vector<256x8xbf16>
    %c0_1 = arith.constant 0 : index
    %c0_2 = arith.constant 0 : index
    %7 = vector.load %arg12[%c0_1, %c0_2] : memref<256x8xf32, #tpu.memory_space<vmem>>, vector<256x8xf32>
    %c0_3 = arith.constant 0 : index
    %c0_4 = arith.constant 0 : index
    %8 = vector.load %arg2[%c0_3, %c0_4] : memref<256x256xbf16, #tpu.memory_space<vmem>>, vector<256x256xbf16>
    %cst = arith.constant dense<0.000000e+00> : vector<256x8xf32>
    %9 = tpu.matmul %8, %6, %cst {dimension_numbers = #tpu.dot_dimension_numbers<[1], [0], [0], [1], [0, 0, 1, 1], [], []>} : vector<256x256xbf16>, vector<256x8xbf16>, vector<256x8xf32> -> vector<256x8xf32>
    %10 = arith.addf %7, %9 : vector<256x8xf32>
    %c0_5 = arith.constant 0 : index
    %c0_6 = arith.constant 0 : index
    %11 = vector.load %arg12[%c0_5, %c0_6] : memref<256x8xf32, #tpu.memory_space<vmem>>, vector<256x8xf32>
    tpu.vector_store %arg12[%c0_5, %c0_6], %10 {strides = array<i32>} : memref<256x8xf32, #tpu.memory_space<vmem>>, vector<256x8xf32>,
    %c0_7 = arith.constant 0 : index
    %c0_8 = arith.constant 0 : index
    %12 = vector.load %arg13[%c0_7, %c0_8] : memref<256x8xf32, #tpu.memory_space<vmem>>, vector<256x8xf32>
    %c0_9 = arith.constant 0 : index
    %c0_10 = arith.constant 0 : index
    %13 = vector.load %arg3[%c0_9, %c0_10] : memref<256x256xbf16, #tpu.memory_space<vmem>>, vector<256x256xbf16>
    %cst_11 = arith.constant dense<0.000000e+00> : vector<256x8xf32>
    %14 = tpu.matmul %13, %6, %cst_11 {dimension_numbers = #tpu.dot_dimension_numbers<[1], [0], [0], [1], [0, 0, 1, 1], [], []>} : vector<256x256xbf16>, vector<256x8xbf16>, vector<256x8xf32> -> vector<256x8xf32>
    %15 = arith.addf %12, %14 : vector<256x8xf32>
    %c0_12 = arith.constant 0 : index
    %c0_13 = arith.constant 0 : index
    %16 = vector.load %arg13[%c0_12, %c0_13] : memref<256x8xf32, #tpu.memory_space<vmem>>, vector<256x8xf32>
    tpu.vector_store %arg13[%c0_12, %c0_13], %15 {strides = array<i32>} : memref<256x8xf32, #tpu.memory_space<vmem>>, vector<256x8xf32>,
    %c0_i32_14 = arith.constant 0 : i32
    %17 = arith.cmpi eq, %arg1, %c0_i32_14 : i32
    %18 = arith.extui %17 : i1 to i32
    %c0_i32_15 = arith.constant 0 : i32
    %19 = arith.cmpi ne, %18, %c0_i32_15 : i32
    scf.if %19 {
      %c256_i32_16 = arith.constant 256 : i32
      %20 = arith.muli %arg0, %c256_i32_16 : i32
      %21 = tpu.assume_multiple %20, 256 : i32
      %22 = arith.index_cast %21 : i32 to index
      %c0_17 = arith.constant 0 : index
      %23 = vector.load %arg4[%22, %c0_17] : memref<256x8xbf16, #tpu.memory_space<vmem>>, vector<256x8xbf16>
      %24 = arith.extf %23 : vector<256x8xbf16> to vector<256x8xf32>
      %c0_18 = arith.constant 0 : index
      %c0_19 = arith.constant 0 : index
      %25 = vector.load %arg5[%c0_18, %c0_19] : memref<256x4xf32, #tpu.memory_space<vmem>>, vector<256x4xf32>
      %26 = vector.extract_strided_slice %25 {offsets = [0, 0], sizes = [256, 1], strides = [1, 1]} : vector<256x4xf32> to vector<256x1xf32>
      %27 = vector.extract_strided_slice %25 {offsets = [0, 1], sizes = [256, 1], strides = [1, 1]} : vector<256x4xf32> to vector<256x1xf32>
      %28 = vector.extract_strided_slice %25 {offsets = [0, 2], sizes = [256, 1], strides = [1, 1]} : vector<256x4xf32> to vector<256x1xf32>
      %29 = vector.extract_strided_slice %25 {offsets = [0, 3], sizes = [256, 1], strides = [1, 1]} : vector<256x4xf32> to vector<256x1xf32>
      %c0_20 = arith.constant 0 : index
      %c0_21 = arith.constant 0 : index
      %30 = vector.load %arg12[%c0_20, %c0_21] : memref<256x8xf32, #tpu.memory_space<vmem>>, vector<256x8xf32>
      %31 = vector.broadcast %26 : vector<256x1xf32> to vector<256x8xf32>
      %32 = arith.mulf %31, %30 : vector<256x8xf32>
      %33 = vector.broadcast %27 : vector<256x1xf32> to vector<256x8xf32>
      %34 = arith.mulf %33, %24 : vector<256x8xf32>
      %35 = arith.addf %32, %34 : vector<256x8xf32>
      %c0_22 = arith.constant 0 : index
      %c0_23 = arith.constant 0 : index
      %36 = vector.load %arg13[%c0_22, %c0_23] : memref<256x8xf32, #tpu.memory_space<vmem>>, vector<256x8xf32>
      %37 = vector.broadcast %28 : vector<256x1xf32> to vector<256x8xf32>
      %38 = arith.mulf %37, %36 : vector<256x8xf32>
      %39 = vector.broadcast %29 : vector<256x1xf32> to vector<256x8xf32>
      %40 = arith.mulf %39, %24 : vector<256x8xf32>
      %41 = arith.addf %38, %40 : vector<256x8xf32>
      %c0_24 = arith.constant 0 : index
      %c0_25 = arith.constant 0 : index
      %42 = vector.load %arg6[%c0_24, %c0_25] : memref<8x128xf32, #tpu.memory_space<vmem>>, vector<8x128xf32>
      %cst_26 = arith.constant dense<0.000000e+00> : vector<256x128xf32>
      %43 = tpu.matmul %35, %42, %cst_26 {dimension_numbers = #tpu.dot_dimension_numbers<[1], [0], [0], [1], [0, 0, 1, 1], [], []>} : vector<256x8xf32>, vector<8x128xf32>, vector<256x128xf32> -> vector<256x128xf32>
      %c0_27 = arith.constant 0 : index
      %c0_28 = arith.constant 0 : index
      %44 = vector.load %arg7[%c0_27, %c0_28] : memref<8x128xf32, #tpu.memory_space<vmem>>, vector<8x128xf32>
      %cst_29 = arith.constant dense<0.000000e+00> : vector<256x128xf32>
      %45 = tpu.matmul %41, %44, %cst_29 {dimension_numbers = #tpu.dot_dimension_numbers<[1], [0], [0], [1], [0, 0, 1, 1], [], []>} : vector<256x8xf32>, vector<8x128xf32>, vector<256x128xf32> -> vector<256x128xf32>
      %46 = arith.addf %43, %45 : vector<256x128xf32>
      %c0_30 = arith.constant 0 : index
      %c0_31 = arith.constant 0 : index
      %47 = vector.load %arg8[%c0_30, %c0_31] : memref<8x128xf32, #tpu.memory_space<vmem>>, vector<8x128xf32>
      %cst_32 = arith.constant dense<0.000000e+00> : vector<256x128xf32>
      %48 = tpu.matmul %24, %47, %cst_32 {dimension_numbers = #tpu.dot_dimension_numbers<[1], [0], [0], [1], [0, 0, 1, 1], [], []>} : vector<256x8xf32>, vector<8x128xf32>, vector<256x128xf32> -> vector<256x128xf32>
      %49 = arith.addf %46, %48 : vector<256x128xf32>
      %c0_33 = arith.constant 0 : index
      %c0_34 = arith.constant 0 : index
      %50 = vector.load %arg9[%c0_33, %c0_34] : memref<1x128xf32, #tpu.memory_space<vmem>>, vector<1x128xf32>
      %51 = vector.broadcast %50 : vector<1x128xf32> to vector<256x128xf32>
      %52 = arith.addf %49, %51 : vector<256x128xf32>
      %53 = arith.mulf %52, %52 : vector<256x128xf32>
      %c0_35 = arith.constant 0 : index
      %c0_36 = arith.constant 0 : index
      %54 = vector.load %arg10[%c0_35, %c0_36] : memref<128x128xf32, #tpu.memory_space<vmem>>, vector<128x128xf32>
      %cst_37 = arith.constant dense<0.000000e+00> : vector<256x128xf32>
      %55 = tpu.matmul %53, %54, %cst_37 {dimension_numbers = #tpu.dot_dimension_numbers<[1], [0], [0], [1], [0, 0, 1, 1], [], []>} : vector<256x128xf32>, vector<128x128xf32>, vector<256x128xf32> -> vector<256x128xf32>
      %cst_38 = arith.constant 1.000000e-24 : f32
      %56 = vector.broadcast %cst_38 : f32 to vector<256x128xf32>
      %57 = arith.maximumf %55, %56 : vector<256x128xf32>
      %58 = math.rsqrt %57 : vector<256x128xf32>
      %59 = arith.mulf %52, %58 : vector<256x128xf32>
      %60 = math.tanh %59 : vector<256x128xf32>
      %61 = arith.truncf %60 : vector<256x128xf32> to vector<256x128xbf16>
      %c0_39 = arith.constant 0 : index
      %c0_40 = arith.constant 0 : index
      %62 = vector.load %arg11[%c0_39, %c0_40] : memref<256x128xbf16, #tpu.memory_space<vmem>>, vector<256x128xbf16>
      tpu.vector_store %arg11[%c0_39, %c0_40], %61 {strides = array<i32>} : memref<256x128xbf16, #tpu.memory_space<vmem>>, vector<256x128xbf16>,
    } else {
    }
    return
  }
  func.func @transform_0(%arg0: i32, %arg1: i32) -> (i32, i32) {
    %c0_i32 = arith.constant 0 : i32
    return %arg0, %arg1 : i32, i32
  }
  func.func @transform_1(%arg0: i32, %arg1: i32) -> (i32, i32) {
    %c0_i32 = arith.constant 0 : i32
    return %arg0, %arg1 : i32, i32
  }
  func.func @transform_2(%arg0: i32, %arg1: i32) -> (i32, i32) {
    %c0_i32 = arith.constant 0 : i32
    %c0_i32_0 = arith.constant 0 : i32
    %c0_i32_1 = arith.constant 0 : i32
    return %c0_i32, %c0_i32_0 : i32, i32
  }
  func.func @transform_3(%arg0: i32, %arg1: i32) -> (i32, i32) {
    %c0_i32 = arith.constant 0 : i32
    %c0_i32_0 = arith.constant 0 : i32
    return %arg0, %c0_i32 : i32, i32
  }
  func.func @transform_4(%arg0: i32, %arg1: i32) -> (i32, i32) {
    %c0_i32 = arith.constant 0 : i32
    %c0_i32_0 = arith.constant 0 : i32
    %c0_i32_1 = arith.constant 0 : i32
    return %c0_i32, %c0_i32_0 : i32, i32
  }
  func.func @transform_5(%arg0: i32, %arg1: i32) -> (i32, i32) {
    %c0_i32 = arith.constant 0 : i32
    %c0_i32_0 = arith.constant 0 : i32
    %c0_i32_1 = arith.constant 0 : i32
    return %c0_i32, %c0_i32_0 : i32, i32
  }
  func.func @transform_6(%arg0: i32, %arg1: i32) -> (i32, i32) {
    %c0_i32 = arith.constant 0 : i32
    %c0_i32_0 = arith.constant 0 : i32
    %c0_i32_1 = arith.constant 0 : i32
    return %c0_i32, %c0_i32_0 : i32, i32
  }
  func.func @transform_7(%arg0: i32, %arg1: i32) -> (i32, i32) {
    %c0_i32 = arith.constant 0 : i32
    %c0_i32_0 = arith.constant 0 : i32
    %c0_i32_1 = arith.constant 0 : i32
    return %c0_i32, %c0_i32_0 : i32, i32
  }
  func.func @transform_8(%arg0: i32, %arg1: i32) -> (i32, i32) {
    %c0_i32 = arith.constant 0 : i32
    %c0_i32_0 = arith.constant 0 : i32
    %c0_i32_1 = arith.constant 0 : i32
    return %c0_i32, %c0_i32_0 : i32, i32
  }
  func.func @transform_9(%arg0: i32, %arg1: i32) -> (i32, i32) {
    %c0_i32 = arith.constant 0 : i32
    %c0_i32_0 = arith.constant 0 : i32
    return %arg0, %c0_i32 : i32, i32
  }
}

</mosaic_0001>

<llo_original>
// kernel: tpu_custom_call.1
$region0: #{tpu_custom_call.1}
  #allocation0 [shape = 'u32[]', space=smem, size = 0x4, offset = 0x4, fixed_abs, tag = 'smem constant byte address 0x4 - core index']
  #allocation1 [shape = 'u32[144,128]{1,0:T(1,128)}', space=vmem, size = 0x12000, scoped, tag = 'internal scratch']
  #allocation2 [shape = 'f32[256,8]{1,0:T(8,128)}', space=vmem, size = 0x20000, scoped, tag = 'scratch operand']
  #allocation3 [shape = 'f32[256,8]{1,0:T(8,128)}', space=vmem, size = 0x20000, scoped, tag = 'scratch operand']
  %s0 = inlined_call_operand.vmem [shape: bf16[256,256], index: 0, kind: input, shape index: {}]
  %s1 = inlined_call_operand.hbm [shape: bf16[256,256], index: 1, kind: input, shape index: {}]
  %s2 = inlined_call_operand.vmem [shape: bf16[256,8], index: 2, kind: input, shape index: {}]
  %s3 = inlined_call_operand.vmem [shape: f32[256,4], index: 3, kind: input, shape index: {}]
  %s4 = inlined_call_operand.vmem [shape: f32[8,128], index: 4, kind: input, shape index: {}]
  %s5 = inlined_call_operand.vmem [shape: f32[8,128], index: 5, kind: input, shape index: {}]
  %s6 = inlined_call_operand.vmem [shape: f32[8,128], index: 6, kind: input, shape index: {}]
  %s7 = inlined_call_operand.vmem [shape: f32[1,128], index: 7, kind: input, shape index: {}]
  %s8 = inlined_call_operand.vmem [shape: f32[128,128], index: 8, kind: input, shape index: {}]
  %s9 = inlined_call_operand.hbm [shape: bf16[256,128], index: 9, kind: output, shape index: {}]
  %s10 = sld [smem:[#allocation0]]
  $region58: #{tpu_custom_call.1} parent=0
    _
  %s12 = ssub.s32 1, %s10
  %s13 = scalar_select 0, %s12, %s10
  $region1: #{tpu_custom_call.1} parent=0
    #allocation4 [shape = 'u8[131072]{0}', space=vmem, size = 0x20000, scoped, tag = 'input window, operand 1, single buffered']
    #allocation5 [shape = 's32[1]{0}', space=sflag, size = 0x4, scoped, tag = 'scoped memory for tpu_custom_call.1']
    #allocation6 [shape = 's32[1]{0}', space=sflag, size = 0x4, scoped, tag = 'scoped memory for tpu_custom_call.1']
    #allocation7 [shape = 'u8[65536]{0}', space=vmem, size = 0x10000, scoped, tag = 'output window, operand 0, single buffered']
    %14 = vsyncpa [#allocation5], 0
    %15 = vsyncpa [#allocation6], 0
    // Predicated region
    $region2: #{tpu_custom_call.1} parent=1 // pred_check
      _
    $region3: #{tpu_custom_call.1} parent=1 // pred_check_branch
      %17 = sbr.rel (0) target = $region5
    $region4: #{tpu_custom_call.1} parent=1 // pred_region
      _
    $region5: #{tpu_custom_call.1} parent=1 // pred_fallthru
      _
    // Predicated region
    $region6: #{tpu_custom_call.1} parent=1 // pred_check
      _
    $region7: #{tpu_custom_call.1} parent=1 // pred_check_branch
      %19 = sbr.rel (0) target = $region9
    $region8: #{tpu_custom_call.1} parent=1 // pred_region
      %s21 = ssub.s32 4096, 4096
      %22 = vsyncadd [#allocation5], %s21
      %s23 = sshll.u32 [#allocation4], 4
      %s24 = int_to_ptr.vmem [resolvable:$true] %s23
      %29 = dma.hbm_to_vmem [thread:$0]  %s1, 4096, %s24, [#allocation5], 128, 128, 8
    $region9: #{tpu_custom_call.1} parent=1 // pred_fallthru
      _
    // Predicated region
    $region10: #{tpu_custom_call.1} parent=1 // pred_check
      _
    $region11: #{tpu_custom_call.1} parent=1 // pred_check_branch
      %31 = sbr.rel (0) target = $region13
    $region12: #{tpu_custom_call.1} parent=1 // pred_region
      _
    $region13: #{tpu_custom_call.1} parent=1 // pred_fallthru
      _
    // Predicated region
    $region14: #{tpu_custom_call.1} parent=1 // pred_check
      _
    $region15: #{tpu_custom_call.1} parent=1 // pred_check_branch
      %33 = sbr.rel (0) target = $region17
    $region16: #{tpu_custom_call.1} parent=1 // pred_region
      _
    $region17: #{tpu_custom_call.1} parent=1 // pred_fallthru
      _
    // Predicated region
    $region18: #{tpu_custom_call.1} parent=1 // pred_check
      _
    $region19: #{tpu_custom_call.1} parent=1 // pred_check_branch
      %35 = sbr.rel (0) target = $region21
    $region20: #{tpu_custom_call.1} parent=1 // pred_region
      _
    $region21: #{tpu_custom_call.1} parent=1 // pred_fallthru
      _
    // Predicated region
    $region22: #{tpu_custom_call.1} parent=1 // pred_check
      _
    $region23: #{tpu_custom_call.1} parent=1 // pred_check_branch
      %37 = sbr.rel (0) target = $region25
    $region24: #{tpu_custom_call.1} parent=1 // pred_region
      _
    $region25: #{tpu_custom_call.1} parent=1 // pred_fallthru
      _
    // Predicated region
    $region26: #{tpu_custom_call.1} parent=1 // pred_check
      _
    $region27: #{tpu_custom_call.1} parent=1 // pred_check_branch
      %39 = sbr.rel (0) target = $region29
    $region28: #{tpu_custom_call.1} parent=1 // pred_region
      _
    $region29: #{tpu_custom_call.1} parent=1 // pred_fallthru
      _
    // Predicated region
    $region30: #{tpu_custom_call.1} parent=1 // pred_check
      _
    $region31: #{tpu_custom_call.1} parent=1 // pred_check_branch
      %41 = sbr.rel (0) target = $region33
    $region32: #{tpu_custom_call.1} parent=1 // pred_region
      _
    $region33: #{tpu_custom_call.1} parent=1 // pred_fallthru
      _
    // Predicated region
    $region34: #{tpu_custom_call.1} parent=1 // pred_check
      _
    $region35: #{tpu_custom_call.1} parent=1 // pred_check_branch
      %43 = sbr.rel (0) target = $region37
    $region36: #{tpu_custom_call.1} parent=1 // pred_region
      _
    $region37: #{tpu_custom_call.1} parent=1 // pred_fallthru
      _
    // Predicated region
    $region38: #{tpu_custom_call.1} parent=1 // pred_check
      _
    $region39: #{tpu_custom_call.1} parent=1 // pred_check_branch
      %45 = sbr.rel (0) target = $region41
    $region40: #{tpu_custom_call.1} parent=1 // pred_region
      %46 = dma.done [#allocation5], 4096
    $region41: #{tpu_custom_call.1} parent=1 // pred_fallthru
      _
    %p48 = scmp.eq.s32.totalorder 0, 0
    // Predicated region
    $region42: #{tpu_custom_call.1} parent=1 // pred_check
      %p49 = pneg %p48
    $region43: #{tpu_custom_call.1} parent=1 // pred_check_branch
      %51 = sbr.rel (%p49) target = $region45
    $region44: #{tpu_custom_call.1} parent=1 // pred_region
      %vm52 = vcmask 64512
      %53 = vst.msk [vmem:[#allocation2] sm:$0xff] %vm52, 0.0
      %54 = vst.msk [vmem:[#allocation2 + $0x8] sm:$0xff] %vm52, 0.0
      %55 = vst.msk [vmem:[#allocation2 + $0x10] sm:$0xff] %vm52, 0.0
      %56 = vst.msk [vmem:[#allocation2 + $0x18] sm:$0xff] %vm52, 0.0
      %57 = vst.msk [vmem:[#allocation2 + $0x20] sm:$0xff] %vm52, 0.0
      %58 = vst.msk [vmem:[#allocation2 + $0x28] sm:$0xff] %vm52, 0.0
      %59 = vst.msk [vmem:[#allocation2 + $0x30] sm:$0xff] %vm52, 0.0
      %60 = vst.msk [vmem:[#allocation2 + $0x38] sm:$0xff] %vm52, 0.0
      %61 = vst.msk [vmem:[#allocation2 + $0x40] sm:$0xff] %vm52, 0.0
      %62 = vst.msk [vmem:[#allocation2 + $0x48] sm:$0xff] %vm52, 0.0
      %63 = vst.msk [vmem:[#allocation2 + $0x50] sm:$0xff] %vm52, 0.0
      %64 = vst.msk [vmem:[#allocation2 + $0x58] sm:$0xff] %vm52, 0.0
      %65 = vst.msk [vmem:[#allocation2 + $0x60] sm:$0xff] %vm52, 0.0
      %66 = vst.msk [vmem:[#allocation2 + $0x68] sm:$0xff] %vm52, 0.0
      %67 = vst.msk [vmem:[#allocation2 + $0x70] sm:$0xff] %vm52, 0.0
      %68 = vst.msk [vmem:[#allocation2 + $0x78] sm:$0xff] %vm52, 0.0
      %69 = vst.msk [vmem:[#allocation2 + $0x80] sm:$0xff] %vm52, 0.0
      %70 = vst.msk [vmem:[#allocation2 + $0x88] sm:$0xff] %vm52, 0.0
      %71 = vst.msk [vmem:[#allocation2 + $0x90] sm:$0xff] %vm52, 0.0
      %72 = vst.msk [vmem:[#allocation2 + $0x98] sm:$0xff] %vm52, 0.0
      %73 = vst.msk [vmem:[#allocation2 + $0xa0] sm:$0xff] %vm52, 0.0
      %74 = vst.msk [vmem:[#allocation2 + $0xa8] sm:$0xff] %vm52, 0.0
      %75 = vst.msk [vmem:[#allocation2 + $0xb0] sm:$0xff] %vm52, 0.0
      %76 = vst.msk [vmem:[#allocation2 + $0xb8] sm:$0xff] %vm52, 0.0
      %77 = vst.msk [vmem:[#allocation2 + $0xc0] sm:$0xff] %vm52, 0.0
      %78 = vst.msk [vmem:[#allocation2 + $0xc8] sm:$0xff] %vm52, 0.0
      %79 = vst.msk [vmem:[#allocation2 + $0xd0] sm:$0xff] %vm52, 0.0
      %80 = vst.msk [vmem:[#allocation2 + $0xd8] sm:$0xff] %vm52, 0.0
      %81 = vst.msk [vmem:[#allocation2 + $0xe0] sm:$0xff] %vm52, 0.0
      %82 = vst.msk [vmem:[#allocation2 + $0xe8] sm:$0xff] %vm52, 0.0
      %83 = vst.msk [vmem:[#allocation2 + $0xf0] sm:$0xff] %vm52, 0.0
      %84 = vst.msk [vmem:[#allocation2 + $0xf8] sm:$0xff] %vm52, 0.0
      %85 = vst.msk [vmem:[#allocation3] sm:$0xff] %vm52, 0.0
      %86 = vst.msk [vmem:[#allocation3 + $0x8] sm:$0xff] %vm52, 0.0
      %87 = vst.msk [vmem:[#allocation3 + $0x10] sm:$0xff] %vm52, 0.0
      %88 = vst.msk [vmem:[#allocation3 + $0x18] sm:$0xff] %vm52, 0.0
      %89 = vst.msk [vmem:[#allocation3 + $0x20] sm:$0xff] %vm52, 0.0
      %90 = vst.msk [vmem:[#allocation3 + $0x28] sm:$0xff] %vm52, 0.0
      %91 = vst.msk [vmem:[#allocation3 + $0x30] sm:$0xff] %vm52, 0.0
      %92 = vst.msk [vmem:[#allocation3 + $0x38] sm:$0xff] %vm52, 0.0
      %93 = vst.msk [vmem:[#allocation3 + $0x40] sm:$0xff] %vm52, 0.0
      %94 = vst.msk [vmem:[#allocation3 + $0x48] sm:$0xff] %vm52, 0.0
      %95 = vst.msk [vmem:[#allocation3 + $0x50] sm:$0xff] %vm52, 0.0
      %96 = vst.msk [vmem:[#allocation3 + $0x58] sm:$0xff] %vm52, 0.0
      %97 = vst.msk [vmem:[#allocation3 + $0x60] sm:$0xff] %vm52, 0.0
      %98 = vst.msk [vmem:[#allocation3 + $0x68] sm:$0xff] %vm52, 0.0
      %99 = vst.msk [vmem:[#allocation3 + $0x70] sm:$0xff] %vm52, 0.0
      %100 = vst.msk [vmem:[#allocation3 + $0x78] sm:$0xff] %vm52, 0.0
      %101 = vst.msk [vmem:[#allocation3 + $0x80] sm:$0xff] %vm52, 0.0
      %102 = vst.msk [vmem:[#allocation3 + $0x88] sm:$0xff] %vm52, 0.0
      %103 = vst.msk [vmem:[#allocation3 + $0x90] sm:$0xff] %vm52, 0.0
      %104 = vst.msk [vmem:[#allocation3 + $0x98] sm:$0xff] %vm52, 0.0
      %105 = vst.msk [vmem:[#allocation3 + $0xa0] sm:$0xff] %vm52, 0.0
      %106 = vst.msk [vmem:[#allocation3 + $0xa8] sm:$0xff] %vm52, 0.0
      %107 = vst.msk [vmem:[#allocation3 + $0xb0] sm:$0xff] %vm52, 0.0
      %108 = vst.msk [vmem:[#allocation3 + $0xb8] sm:$0xff] %vm52, 0.0
      %109 = vst.msk [vmem:[#allocation3 + $0xc0] sm:$0xff] %vm52, 0.0
      %110 = vst.msk [vmem:[#allocation3 + $0xc8] sm:$0xff] %vm52, 0.0
      %111 = vst.msk [vmem:[#allocation3 + $0xd0] sm:$0xff] %vm52, 0.0
      %112 = vst.msk [vmem:[#allocation3 + $0xd8] sm:$0xff] %vm52, 0.0
      %113 = vst.msk [vmem:[#allocation3 + $0xe0] sm:$0xff] %vm52, 0.0
      %114 = vst.msk [vmem:[#allocation3 + $0xe8] sm:$0xff] %vm52, 0.0
      %115 = vst.msk [vmem:[#allocation3 + $0xf0] sm:$0xff] %vm52, 0.0
      %116 = vst.msk [vmem:[#allocation3 + $0xf8] sm:$0xff] %vm52, 0.0
    $region45: #{tpu_custom_call.1} parent=1 // pred_fallthru
      _
    %s117 = smul.u32 0, 256
    %s118 = sshra.s32 %s117, 3
    %s119 = sand.u32 %s117, 7
    %s120 = smul.addr %s118, 4
    %s121 = scalar_lea.vmem %s2, %s120
    %v122 = vld [vmem:[%s121] sm:$0xf]
    %v123 = vld [vmem:[%s121 + $0x4] sm:$0xf]
    %v124 = vld [vmem:[%s121 + $0x8] sm:$0xf]
    %v125 = vld [vmem:[%s121 + $0xc] sm:$0xf]
    %v126 = vld [vmem:[%s121 + $0x10] sm:$0xf]
    %v127 = vld [vmem:[%s121 + $0x14] sm:$0xf]
    %v128 = vld [vmem:[%s121 + $0x18] sm:$0xf]
    %v129 = vld [vmem:[%s121 + $0x1c] sm:$0xf]
    %v130 = vld [vmem:[%s121 + $0x20] sm:$0xf]
    %v131 = vld [vmem:[%s121 + $0x24] sm:$0xf]
    %v132 = vld [vmem:[%s121 + $0x28] sm:$0xf]
    %v133 = vld [vmem:[%s121 + $0x2c] sm:$0xf]
    %v134 = vld [vmem:[%s121 + $0x30] sm:$0xf]
    %v135 = vld [vmem:[%s121 + $0x34] sm:$0xf]
    %v136 = vld [vmem:[%s121 + $0x38] sm:$0xf]
    %v137 = vld [vmem:[%s121 + $0x3c] sm:$0xf]
    %v138 = vld [vmem:[%s121 + $0x40] sm:$0xf]
    %v139 = vld [vmem:[%s121 + $0x44] sm:$0xf]
    %v140 = vld [vmem:[%s121 + $0x48] sm:$0xf]
    %v141 = vld [vmem:[%s121 + $0x4c] sm:$0xf]
    %v142 = vld [vmem:[%s121 + $0x50] sm:$0xf]
    %v143 = vld [vmem:[%s121 + $0x54] sm:$0xf]
    %v144 = vld [vmem:[%s121 + $0x58] sm:$0xf]
    %v145 = vld [vmem:[%s121 + $0x5c] sm:$0xf]
    %v146 = vld [vmem:[%s121 + $0x60] sm:$0xf]
    %v147 = vld [vmem:[%s121 + $0x64] sm:$0xf]
    %v148 = vld [vmem:[%s121 + $0x68] sm:$0xf]
    %v149 = vld [vmem:[%s121 + $0x6c] sm:$0xf]
    %v150 = vld [vmem:[%s121 + $0x70] sm:$0xf]
    %v151 = vld [vmem:[%s121 + $0x74] sm:$0xf]
    %v152 = vld [vmem:[%s121 + $0x78] sm:$0xf]
    %v153 = vld [vmem:[%s121 + $0x7c] sm:$0xf]
    %v154 = vld [vmem:[#allocation2] sm:$0xff]
    %v155 = vld [vmem:[#allocation2 + $0x8] sm:$0xff]
    %v156 = vld [vmem:[#allocation2 + $0x10] sm:$0xff]
    %v157 = vld [vmem:[#allocation2 + $0x18] sm:$0xff]
    %v158 = vld [vmem:[#allocation2 + $0x20] sm:$0xff]
    %v159 = vld [vmem:[#allocation2 + $0x28] sm:$0xff]
    %v160 = vld [vmem:[#allocation2 + $0x30] sm:$0xff]
    %v161 = vld [vmem:[#allocation2 + $0x38] sm:$0xff]
    %v162 = vld [vmem:[#allocation2 + $0x40] sm:$0xff]
    %v163 = vld [vmem:[#allocation2 + $0x48] sm:$0xff]
    %v164 = vld [vmem:[#allocation2 + $0x50] sm:$0xff]
    %v165 = vld [vmem:[#allocation2 + $0x58] sm:$0xff]
    %v166 = vld [vmem:[#allocation2 + $0x60] sm:$0xff]
    %v167 = vld [vmem:[#allocation2 + $0x68] sm:$0xff]
    %v168 = vld [vmem:[#allocation2 + $0x70] sm:$0xff]
    %v169 = vld [vmem:[#allocation2 + $0x78] sm:$0xff]
    %v170 = vld [vmem:[#allocation2 + $0x80] sm:$0xff]
    %v171 = vld [vmem:[#allocation2 + $0x88] sm:$0xff]
    %v172 = vld [vmem:[#allocation2 + $0x90] sm:$0xff]
    %v173 = vld [vmem:[#allocation2 + $0x98] sm:$0xff]
    %v174 = vld [vmem:[#allocation2 + $0xa0] sm:$0xff]
    %v175 = vld [vmem:[#allocation2 + $0xa8] sm:$0xff]
    %v176 = vld [vmem:[#allocation2 + $0xb0] sm:$0xff]
    %v177 = vld [vmem:[#allocation2 + $0xb8] sm:$0xff]
    %v178 = vld [vmem:[#allocation2 + $0xc0] sm:$0xff]
    %v179 = vld [vmem:[#allocation2 + $0xc8] sm:$0xff]
    %v180 = vld [vmem:[#allocation2 + $0xd0] sm:$0xff]
    %v181 = vld [vmem:[#allocation2 + $0xd8] sm:$0xff]
    %v182 = vld [vmem:[#allocation2 + $0xe0] sm:$0xff]
    %v183 = vld [vmem:[#allocation2 + $0xe8] sm:$0xff]
    %v184 = vld [vmem:[#allocation2 + $0xf0] sm:$0xff]
    %v185 = vld [vmem:[#allocation2 + $0xf8] sm:$0xff]
    %v186 = vld [vmem:[%s0] sm:$0xff]
    %v187 = vld [vmem:[%s0 + $0x8] sm:$0xff]
    %v188 = vld [vmem:[%s0 + $0x10] sm:$0xff]
    %v189 = vld [vmem:[%s0 + $0x18] sm:$0xff]
    %v190 = vld [vmem:[%s0 + $0x20] sm:$0xff]
    %v191 = vld [vmem:[%s0 + $0x28] sm:$0xff]
    %v192 = vld [vmem:[%s0 + $0x30] sm:$0xff]
    %v193 = vld [vmem:[%s0 + $0x38] sm:$0xff]
    %v194 = vld [vmem:[%s0 + $0x40] sm:$0xff]
    %v195 = vld [vmem:[%s0 + $0x48] sm:$0xff]
    %v196 = vld [vmem:[%s0 + $0x50] sm:$0xff]
    %v197 = vld [vmem:[%s0 + $0x58] sm:$0xff]
    %v198 = vld [vmem:[%s0 + $0x60] sm:$0xff]
    %v199 = vld [vmem:[%s0 + $0x68] sm:$0xff]
    %v200 = vld [vmem:[%s0 + $0x70] sm:$0xff]
    %v201 = vld [vmem:[%s0 + $0x78] sm:$0xff]
    %v202 = vld [vmem:[%s0 + $0x80] sm:$0xff]
    %v203 = vld [vmem:[%s0 + $0x88] sm:$0xff]
    %v204 = vld [vmem:[%s0 + $0x90] sm:$0xff]
    %v205 = vld [vmem:[%s0 + $0x98] sm:$0xff]
    %v206 = vld [vmem:[%s0 + $0xa0] sm:$0xff]
    %v207 = vld [vmem:[%s0 + $0xa8] sm:$0xff]
    %v208 = vld [vmem:[%s0 + $0xb0] sm:$0xff]
    %v209 = vld [vmem:[%s0 + $0xb8] sm:$0xff]
    %v210 = vld [vmem:[%s0 + $0xc0] sm:$0xff]
    %v211 = vld [vmem:[%s0 + $0xc8] sm:$0xff]
    %v212 = vld [vmem:[%s0 + $0xd0] sm:$0xff]
    %v213 = vld [vmem:[%s0 + $0xd8] sm:$0xff]
    %v214 = vld [vmem:[%s0 + $0xe0] sm:$0xff]
    %v215 = vld [vmem:[%s0 + $0xe8] sm:$0xff]
    %v216 = vld [vmem:[%s0 + $0xf0] sm:$0xff]
    %v217 = vld [vmem:[%s0 + $0xf8] sm:$0xff]
    %v250 = vunpack.c.l.b16 %v186
    %v251 = vunpack.c.h.b16 %v186
    %v252 = vunpack.c.l.b16 %v187
    %v253 = vunpack.c.h.b16 %v187
    %v254 = vunpack.c.l.b16 %v188
    %v255 = vunpack.c.h.b16 %v188
    %v256 = vunpack.c.l.b16 %v189
    %v257 = vunpack.c.h.b16 %v189
    %v258 = vunpack.c.l.b16 %v190
    %v259 = vunpack.c.h.b16 %v190
    %v260 = vunpack.c.l.b16 %v191
    %v261 = vunpack.c.h.b16 %v191
    %v262 = vunpack.c.l.b16 %v192
    %v263 = vunpack.c.h.b16 %v192
    %v264 = vunpack.c.l.b16 %v193
    %v265 = vunpack.c.h.b16 %v193
    %v266 = vunpack.c.l.b16 %v194
    %v267 = vunpack.c.h.b16 %v194
    %v268 = vunpack.c.l.b16 %v195
    %v269 = vunpack.c.h.b16 %v195
    %v270 = vunpack.c.l.b16 %v196
    %v271 = vunpack.c.h.b16 %v196
    %v272 = vunpack.c.l.b16 %v197
    %v273 = vunpack.c.h.b16 %v197
    %v274 = vunpack.c.l.b16 %v198
    %v275 = vunpack.c.h.b16 %v198
    %v276 = vunpack.c.l.b16 %v199
    %v277 = vunpack.c.h.b16 %v199
    %v278 = vunpack.c.l.b16 %v200
    %v279 = vunpack.c.h.b16 %v200
    %v280 = vunpack.c.l.b16 %v201
    %v281 = vunpack.c.h.b16 %v201
    %v282 = vunpack.c.l.b16 %v202
    %v283 = vunpack.c.h.b16 %v202
    %v284 = vunpack.c.l.b16 %v203
    %v285 = vunpack.c.h.b16 %v203
    %v286 = vunpack.c.l.b16 %v204
    %v287 = vunpack.c.h.b16 %v204
    %v288 = vunpack.c.l.b16 %v205
    %v289 = vunpack.c.h.b16 %v205
    %v290 = vunpack.c.l.b16 %v206
    %v291 = vunpack.c.h.b16 %v206
    %v292 = vunpack.c.l.b16 %v207
    %v293 = vunpack.c.h.b16 %v207
    %v294 = vunpack.c.l.b16 %v208
    %v295 = vunpack.c.h.b16 %v208
    %v296 = vunpack.c.l.b16 %v209
    %v297 = vunpack.c.h.b16 %v209
    %v298 = vunpack.c.l.b16 %v210
    %v299 = vunpack.c.h.b16 %v210
    %v300 = vunpack.c.l.b16 %v211
    %v301 = vunpack.c.h.b16 %v211
    %v302 = vunpack.c.l.b16 %v212
    %v303 = vunpack.c.h.b16 %v212
    %v304 = vunpack.c.l.b16 %v213
    %v305 = vunpack.c.h.b16 %v213
    %v306 = vunpack.c.l.b16 %v214
    %v307 = vunpack.c.h.b16 %v214
    %v308 = vunpack.c.l.b16 %v215
    %v309 = vunpack.c.h.b16 %v215
    %v310 = vunpack.c.l.b16 %v216
    %v311 = vunpack.c.h.b16 %v216
    %v312 = vunpack.c.l.b16 %v217
    %v313 = vunpack.c.h.b16 %v217
    %v314 = vpack.c.b16 %v252, %v250
    %v315 = vpack.c.b16 %v253, %v251
    %v316 = vpack.c.b16 %v256, %v254
    %v317 = vpack.c.b16 %v257, %v255
    %v318 = vpack.c.b16 %v260, %v258
    %v319 = vpack.c.b16 %v261, %v259
    %v320 = vpack.c.b16 %v264, %v262
    %v321 = vpack.c.b16 %v265, %v263
    %v322 = vpack.c.b16 %v268, %v266
    %v323 = vpack.c.b16 %v269, %v267
    %v324 = vpack.c.b16 %v272, %v270
    %v325 = vpack.c.b16 %v273, %v271
    %v326 = vpack.c.b16 %v276, %v274
    %v327 = vpack.c.b16 %v277, %v275
    %v328 = vpack.c.b16 %v280, %v278
    %v329 = vpack.c.b16 %v281, %v279
    %v330 = vpack.c.b16 %v284, %v282
    %v331 = vpack.c.b16 %v285, %v283
    %v332 = vpack.c.b16 %v288, %v286
    %v333 = vpack.c.b16 %v289, %v287
    %v334 = vpack.c.b16 %v292, %v290
    %v335 = vpack.c.b16 %v293, %v291
    %v336 = vpack.c.b16 %v296, %v294
    %v337 = vpack.c.b16 %v297, %v295
    %v338 = vpack.c.b16 %v300, %v298
    %v339 = vpack.c.b16 %v301, %v299
    %v340 = vpack.c.b16 %v304, %v302
    %v341 = vpack.c.b16 %v305, %v303
    %v342 = vpack.c.b16 %v308, %v306
    %v343 = vpack.c.b16 %v309, %v307
    %v344 = vpack.c.b16 %v312, %v310
    %v345 = vpack.c.b16 %v313, %v311
    %v410 = vunpack.c.l.b16 %v122
    %v411 = vunpack.c.l.b16 %v123
    %v412 = vunpack.c.l.b16 %v124
    %v413 = vunpack.c.l.b16 %v125
    %v414 = vunpack.c.l.b16 %v126
    %v415 = vunpack.c.l.b16 %v127
    %v416 = vunpack.c.l.b16 %v128
    %v417 = vunpack.c.l.b16 %v129
    %v418 = vunpack.c.l.b16 %v130
    %v419 = vunpack.c.l.b16 %v131
    %v420 = vunpack.c.l.b16 %v132
    %v421 = vunpack.c.l.b16 %v133
    %v422 = vunpack.c.l.b16 %v134
    %v423 = vunpack.c.l.b16 %v135
    %v424 = vunpack.c.l.b16 %v136
    %v425 = vunpack.c.l.b16 %v137
    %v426 = vunpack.c.l.b16 %v138
    %v427 = vunpack.c.l.b16 %v139
    %v428 = vunpack.c.l.b16 %v140
    %v429 = vunpack.c.l.b16 %v141
    %v430 = vunpack.c.l.b16 %v142
    %v431 = vunpack.c.l.b16 %v143
    %v432 = vunpack.c.l.b16 %v144
    %v433 = vunpack.c.l.b16 %v145
    %v434 = vunpack.c.l.b16 %v146
    %v435 = vunpack.c.l.b16 %v147
    %v436 = vunpack.c.l.b16 %v148
    %v437 = vunpack.c.l.b16 %v149
    %v438 = vunpack.c.l.b16 %v150
    %v439 = vunpack.c.l.b16 %v151
    %v440 = vunpack.c.l.b16 %v152
    %v441 = vunpack.c.l.b16 %v153
    %v442 = vpack.c.b16 %v411, %v410
    %v443 = vpack.c.b16 %v413, %v412
    %v444 = vpack.c.b16 %v415, %v414
    %v445 = vpack.c.b16 %v417, %v416
    %v446 = vpack.c.b16 %v419, %v418
    %v447 = vpack.c.b16 %v421, %v420
    %v448 = vpack.c.b16 %v423, %v422
    %v449 = vpack.c.b16 %v425, %v424
    %v450 = vpack.c.b16 %v427, %v426
    %v451 = vpack.c.b16 %v429, %v428
    %v452 = vpack.c.b16 %v431, %v430
    %v453 = vpack.c.b16 %v433, %v432
    %v454 = vpack.c.b16 %v435, %v434
    %v455 = vpack.c.b16 %v437, %v436
    %v456 = vpack.c.b16 %v439, %v438
    %v457 = vpack.c.b16 %v441, %v440
    %474 = vmatprep.subr.bf16.mxu0 0
    %475 = vmatpush1.bf16.msra.mxu0 %v442
    %476 = vmatprep.subr.bf16.mxu0 0
    %477 = vmatpush1.bf16.msra.mxu0 %v443
    %478 = vmatprep.subr.bf16.mxu0 0
    %479 = vmatpush1.bf16.msra.mxu0 %v444
    %480 = vmatprep.subr.bf16.mxu0 0
    %481 = vmatpush1.bf16.msra.mxu0 %v445
    %482 = vmatprep.subr.bf16.mxu0 0
    %483 = vmatpush1.bf16.msra.mxu0 %v446
    %484 = vmatprep.subr.bf16.mxu0 0
    %485 = vmatpush1.bf16.msra.mxu0 %v447
    %486 = vmatprep.subr.bf16.mxu0 0
    %487 = vmatpush1.bf16.msra.mxu0 %v448
    %488 = vmatprep.subr.bf16.mxu0 0
    %489 = vmatpush1.bf16.msra.mxu0 %v449
    %490 = vmatprep.subr.bf16.mxu0 0
    %491 = vmatpush1.bf16.msra.mxu0 %v450
    %492 = vmatprep.subr.bf16.mxu0 0
    %493 = vmatpush1.bf16.msra.mxu0 %v451
    %494 = vmatprep.subr.bf16.mxu0 0
    %495 = vmatpush1.bf16.msra.mxu0 %v452
    %496 = vmatprep.subr.bf16.mxu0 0
    %497 = vmatpush1.bf16.msra.mxu0 %v453
    %498 = vmatprep.subr.bf16.mxu0 0
    %499 = vmatpush1.bf16.msra.mxu0 %v454
    %500 = vmatprep.subr.bf16.mxu0 0
    %501 = vmatpush1.bf16.msra.mxu0 %v455
    %502 = vmatprep.subr.bf16.mxu0 0
    %503 = vmatpush1.bf16.msra.mxu0 %v456
    %504 = vmatprep.subr.bf16.mxu0 0
    %505 = vmatpush1.bf16.msra.mxu0 %v457
    %506 = vmatprep.mubr.bf16.mxu0 %v315
    %507 = vmatmul.mubr.bf16.gmra.mrb[0].mxu0 %v314
    %v508 = vpop.f32.mrb[0].mxu0
    %v509 = vadd.f32 0.0, %v508
    %v510 = vpop.f32.mrb[0].mxu0
    %v511 = vpop.f32.mrb[0].mxu0
    %v512 = vadd.f32 0.0, %v511
    %v513 = vpop.f32.mrb[0].mxu0
    %514 = vmatprep.mubr.bf16.mxu0 %v317
    %515 = vmatmul.mubr.bf16.gmra.mrb[0].mxu0 %v316
    %v516 = vpop.f32.mrb[0].mxu0
    %v517 = vadd.f32 0.0, %v516
    %v518 = vpop.f32.mrb[0].mxu0
    %v519 = vpop.f32.mrb[0].mxu0
    %v520 = vadd.f32 0.0, %v519
    %v521 = vpop.f32.mrb[0].mxu0
    %522 = vmatprep.mubr.bf16.mxu0 %v319
    %523 = vmatmul.mubr.bf16.gmra.mrb[0].mxu0 %v318
    %v524 = vpop.f32.mrb[0].mxu0
    %v525 = vadd.f32 0.0, %v524
    %v526 = vpop.f32.mrb[0].mxu0
    %v527 = vpop.f32.mrb[0].mxu0
    %v528 = vadd.f32 0.0, %v527
    %v529 = vpop.f32.mrb[0].mxu0
    %530 = vmatprep.mubr.bf16.mxu0 %v321
    %531 = vmatmul.mubr.bf16.gmra.mrb[0].mxu0 %v320
    %v532 = vpop.f32.mrb[0].mxu0
    %v533 = vadd.f32 0.0, %v532
    %v534 = vpop.f32.mrb[0].mxu0
    %v535 = vpop.f32.mrb[0].mxu0
    %v536 = vadd.f32 0.0, %v535
    %v537 = vpop.f32.mrb[0].mxu0
    %538 = vmatprep.mubr.bf16.mxu0 %v323
    %539 = vmatmul.mubr.bf16.gmra.mrb[0].mxu0 %v322
    %v540 = vpop.f32.mrb[0].mxu0
    %v541 = vadd.f32 0.0, %v540
    %v542 = vpop.f32.mrb[0].mxu0
    %v543 = vpop.f32.mrb[0].mxu0
    %v544 = vadd.f32 0.0, %v543
    %v545 = vpop.f32.mrb[0].mxu0
    %546 = vmatprep.mubr.bf16.mxu0 %v325
    %547 = vmatmul.mubr.bf16.gmra.mrb[0].mxu0 %v324
    %v548 = vpop.f32.mrb[0].mxu0
    %v549 = vadd.f32 0.0, %v548
    %v550 = vpop.f32.mrb[0].mxu0
    %v551 = vpop.f32.mrb[0].mxu0
    %v552 = vadd.f32 0.0, %v551
    %v553 = vpop.f32.mrb[0].mxu0
    %554 = vmatprep.mubr.bf16.mxu0 %v327
    %555 = vmatmul.mubr.bf16.gmra.mrb[0].mxu0 %v326
    %v556 = vpop.f32.mrb[0].mxu0
    %v557 = vadd.f32 0.0, %v556
    %v558 = vpop.f32.mrb[0].mxu0
    %v559 = vpop.f32.mrb[0].mxu0
    %v560 = vadd.f32 0.0, %v559
    %v561 = vpop.f32.mrb[0].mxu0
    %562 = vmatprep.mubr.bf16.mxu0 %v329
    %563 = vmatmul.mubr.bf16.gmra.mrb[0].mxu0 %v328
    %v564 = vpop.f32.mrb[0].mxu0
    %v565 = vadd.f32 0.0, %v564
    %v566 = vpop.f32.mrb[0].mxu0
    %v567 = vpop.f32.mrb[0].mxu0
    %v568 = vadd.f32 0.0, %v567
    %v569 = vpop.f32.mrb[0].mxu0
    %570 = vmatprep.mubr.bf16.mxu0 %v331
    %571 = vmatmul.mubr.bf16.gmra.mrb[0].mxu0 %v330
    %v572 = vpop.f32.mrb[0].mxu0
    %v573 = vadd.f32 0.0, %v572
    %v574 = vpop.f32.mrb[0].mxu0
    %v575 = vpop.f32.mrb[0].mxu0
    %v576 = vadd.f32 0.0, %v575
    %v577 = vpop.f32.mrb[0].mxu0
    %578 = vmatprep.mubr.bf16.mxu0 %v333
    %579 = vmatmul.mubr.bf16.gmra.mrb[0].mxu0 %v332
    %v580 = vpop.f32.mrb[0].mxu0
    %v581 = vadd.f32 0.0, %v580
    %v582 = vpop.f32.mrb[0].mxu0
    %v583 = vpop.f32.mrb[0].mxu0
    %v584 = vadd.f32 0.0, %v583
    %v585 = vpop.f32.mrb[0].mxu0
    %586 = vmatprep.mubr.bf16.mxu0 %v335
    %587 = vmatmul.mubr.bf16.gmra.mrb[0].mxu0 %v334
    %v588 = vpop.f32.mrb[0].mxu0
    %v589 = vadd.f32 0.0, %v588
    %v590 = vpop.f32.mrb[0].mxu0
    %v591 = vpop.f32.mrb[0].mxu0
    %v592 = vadd.f32 0.0, %v591
    %v593 = vpop.f32.mrb[0].mxu0
    %594 = vmatprep.mubr.bf16.mxu0 %v337
    %595 = vmatmul.mubr.bf16.gmra.mrb[0].mxu0 %v336
    %v596 = vpop.f32.mrb[0].mxu0
    %v597 = vadd.f32 0.0, %v596
    %v598 = vpop.f32.mrb[0].mxu0
    %v599 = vpop.f32.mrb[0].mxu0
    %v600 = vadd.f32 0.0, %v599
    %v601 = vpop.f32.mrb[0].mxu0
    %602 = vmatprep.mubr.bf16.mxu0 %v339
    %603 = vmatmul.mubr.bf16.gmra.mrb[0].mxu0 %v338
    %v604 = vpop.f32.mrb[0].mxu0
    %v605 = vadd.f32 0.0, %v604
    %v606 = vpop.f32.mrb[0].mxu0
    %v607 = vpop.f32.mrb[0].mxu0
    %v608 = vadd.f32 0.0, %v607
    %v609 = vpop.f32.mrb[0].mxu0
    %610 = vmatprep.mubr.bf16.mxu0 %v341
    %611 = vmatmul.mubr.bf16.gmra.mrb[0].mxu0 %v340
    %v612 = vpop.f32.mrb[0].mxu0
    %v613 = vadd.f32 0.0, %v612
    %v614 = vpop.f32.mrb[0].mxu0
    %v615 = vpop.f32.mrb[0].mxu0
    %v616 = vadd.f32 0.0, %v615
    %v617 = vpop.f32.mrb[0].mxu0
    %618 = vmatprep.mubr.bf16.mxu0 %v343
    %619 = vmatmul.mubr.bf16.gmra.mrb[0].mxu0 %v342
    %v620 = vpop.f32.mrb[0].mxu0
    %v621 = vadd.f32 0.0, %v620
    %v622 = vpop.f32.mrb[0].mxu0
    %v623 = vpop.f32.mrb[0].mxu0
    %v624 = vadd.f32 0.0, %v623
    %v625 = vpop.f32.mrb[0].mxu0
    %626 = vmatprep.mubr.bf16.mxu0 %v345
    %627 = vmatmul.mubr.bf16.gmra.mrb[0].mxu0 %v344
    %v628 = vpop.f32.mrb[0].mxu0
    %v629 = vadd.f32 0.0, %v628
    %v630 = vpop.f32.mrb[0].mxu0
    %v631 = vpop.f32.mrb[0].mxu0
    %v632 = vadd.f32 0.0, %v631
    %v633 = vpop.f32.mrb[0].mxu0
    %634 = vdwg.mxu0
    %v635 = vadd.f32 %v154, %v509
    %v636 = vadd.f32 %v155, %v512
    %v637 = vadd.f32 %v156, %v517
    %v638 = vadd.f32 %v157, %v520
    %v639 = vadd.f32 %v158, %v525
    %v640 = vadd.f32 %v159, %v528
    %v641 = vadd.f32 %v160, %v533
    %v642 = vadd.f32 %v161, %v536
    %v643 = vadd.f32 %v162, %v541
    %v644 = vadd.f32 %v163, %v544
    %v645 = vadd.f32 %v164, %v549
    %v646 = vadd.f32 %v165, %v552
    %v647 = vadd.f32 %v166, %v557
    %v648 = vadd.f32 %v167, %v560
    %v649 = vadd.f32 %v168, %v565
    %v650 = vadd.f32 %v169, %v568
    %v651 = vadd.f32 %v170, %v573
    %v652 = vadd.f32 %v171, %v576
    %v653 = vadd.f32 %v172, %v581
    %v654 = vadd.f32 %v173, %v584
    %v655 = vadd.f32 %v174, %v589
    %v656 = vadd.f32 %v175, %v592
    %v657 = vadd.f32 %v176, %v597
    %v658 = vadd.f32 %v177, %v600
    %v659 = vadd.f32 %v178, %v605
    %v660 = vadd.f32 %v179, %v608
    %v661 = vadd.f32 %v180, %v613
    %v662 = vadd.f32 %v181, %v616
    %v663 = vadd.f32 %v182, %v621
    %v664 = vadd.f32 %v183, %v624
    %v665 = vadd.f32 %v184, %v629
    %v666 = vadd.f32 %v185, %v632
    %vm667 = vcmask 64512
    %668 = vst.msk [vmem:[#allocation2] sm:$0xff] %vm667, %v635
    %669 = vst.msk [vmem:[#allocation2 + $0x8] sm:$0xff] %vm667, %v636
    %670 = vst.msk [vmem:[#allocation2 + $0x10] sm:$0xff] %vm667, %v637
    %671 = vst.msk [vmem:[#allocation2 + $0x18] sm:$0xff] %vm667, %v638
    %672 = vst.msk [vmem:[#allocation2 + $0x20] sm:$0xff] %vm667, %v639
    %673 = vst.msk [vmem:[#allocation2 + $0x28] sm:$0xff] %vm667, %v640
    %674 = vst.msk [vmem:[#allocation2 + $0x30] sm:$0xff] %vm667, %v641
    %675 = vst.msk [vmem:[#allocation2 + $0x38] sm:$0xff] %vm667, %v642
    %676 = vst.msk [vmem:[#allocation2 + $0x40] sm:$0xff] %vm667, %v643
    %677 = vst.msk [vmem:[#allocation2 + $0x48] sm:$0xff] %vm667, %v644
    %678 = vst.msk [vmem:[#allocation2 + $0x50] sm:$0xff] %vm667, %v645
    %679 = vst.msk [vmem:[#allocation2 + $0x58] sm:$0xff] %vm667, %v646
    %680 = vst.msk [vmem:[#allocation2 + $0x60] sm:$0xff] %vm667, %v647
    %681 = vst.msk [vmem:[#allocation2 + $0x68] sm:$0xff] %vm667, %v648
    %682 = vst.msk [vmem:[#allocation2 + $0x70] sm:$0xff] %vm667, %v649
    %683 = vst.msk [vmem:[#allocation2 + $0x78] sm:$0xff] %vm667, %v650
    %684 = vst.msk [vmem:[#allocation2 + $0x80] sm:$0xff] %vm667, %v651
    %685 = vst.msk [vmem:[#allocation2 + $0x88] sm:$0xff] %vm667, %v652
    %686 = vst.msk [vmem:[#allocation2 + $0x90] sm:$0xff] %vm667, %v653
    %687 = vst.msk [vmem:[#allocation2 + $0x98] sm:$0xff] %vm667, %v654
    %688 = vst.msk [vmem:[#allocation2 + $0xa0] sm:$0xff] %vm667, %v655
    %689 = vst.msk [vmem:[#allocation2 + $0xa8] sm:$0xff] %vm667, %v656
    %690 = vst.msk [vmem:[#allocation2 + $0xb0] sm:$0xff] %vm667, %v657
    %691 = vst.msk [vmem:[#allocation2 + $0xb8] sm:$0xff] %vm667, %v658
    %692 = vst.msk [vmem:[#allocation2 + $0xc0] sm:$0xff] %vm667, %v659
    %693 = vst.msk [vmem:[#allocation2 + $0xc8] sm:$0xff] %vm667, %v660
    %694 = vst.msk [vmem:[#allocation2 + $0xd0] sm:$0xff] %vm667, %v661
    %695 = vst.msk [vmem:[#allocation2 + $0xd8] sm:$0xff] %vm667, %v662
    %696 = vst.msk [vmem:[#allocation2 + $0xe0] sm:$0xff] %vm667, %v663
    %697 = vst.msk [vmem:[#allocation2 + $0xe8] sm:$0xff] %vm667, %v664
    %698 = vst.msk [vmem:[#allocation2 + $0xf0] sm:$0xff] %vm667, %v665
    %699 = vst.msk [vmem:[#allocation2 + $0xf8] sm:$0xff] %vm667, %v666
    %v700 = vld [vmem:[#allocation3] sm:$0xff]
    %v701 = vld [vmem:[#allocation3 + $0x8] sm:$0xff]
    %v702 = vld [vmem:[#allocation3 + $0x10] sm:$0xff]
    %v703 = vld [vmem:[#allocation3 + $0x18] sm:$0xff]
    %v704 = vld [vmem:[#allocation3 + $0x20] sm:$0xff]
    %v705 = vld [vmem:[#allocation3 + $0x28] sm:$0xff]
    %v706 = vld [vmem:[#allocation3 + $0x30] sm:$0xff]
    %v707 = vld [vmem:[#allocation3 + $0x38] sm:$0xff]
    %v708 = vld [vmem:[#allocation3 + $0x40] sm:$0xff]
    %v709 = vld [vmem:[#allocation3 + $0x48] sm:$0xff]
    %v710 = vld [vmem:[#allocation3 + $0x50] sm:$0xff]
    %v711 = vld [vmem:[#allocation3 + $0x58] sm:$0xff]
    %v712 = vld [vmem:[#allocation3 + $0x60] sm:$0xff]
    %v713 = vld [vmem:[#allocation3 + $0x68] sm:$0xff]
    %v714 = vld [vmem:[#allocation3 + $0x70] sm:$0xff]
    %v715 = vld [vmem:[#allocation3 + $0x78] sm:$0xff]
    %v716 = vld [vmem:[#allocation3 + $0x80] sm:$0xff]
    %v717 = vld [vmem:[#allocation3 + $0x88] sm:$0xff]
    %v718 = vld [vmem:[#allocation3 + $0x90] sm:$0xff]
    %v719 = vld [vmem:[#allocation3 + $0x98] sm:$0xff]
    %v720 = vld [vmem:[#allocation3 + $0xa0] sm:$0xff]
    %v721 = vld [vmem:[#allocation3 + $0xa8] sm:$0xff]
    %v722 = vld [vmem:[#allocation3 + $0xb0] sm:$0xff]
    %v723 = vld [vmem:[#allocation3 + $0xb8] sm:$0xff]
    %v724 = vld [vmem:[#allocation3 + $0xc0] sm:$0xff]
    %v725 = vld [vmem:[#allocation3 + $0xc8] sm:$0xff]
    %v726 = vld [vmem:[#allocation3 + $0xd0] sm:$0xff]
    %v727 = vld [vmem:[#allocation3 + $0xd8] sm:$0xff]
    %v728 = vld [vmem:[#allocation3 + $0xe0] sm:$0xff]
    %v729 = vld [vmem:[#allocation3 + $0xe8] sm:$0xff]
    %v730 = vld [vmem:[#allocation3 + $0xf0] sm:$0xff]
    %v731 = vld [vmem:[#allocation3 + $0xf8] sm:$0xff]
    %v732 = vld [vmem:[#allocation4] sm:$0xff]
    %v733 = vld [vmem:[#allocation4 + $0x8] sm:$0xff]
    %v734 = vld [vmem:[#allocation4 + $0x10] sm:$0xff]
    %v735 = vld [vmem:[#allocation4 + $0x18] sm:$0xff]
    %v736 = vld [vmem:[#allocation4 + $0x20] sm:$0xff]
    %v737 = vld [vmem:[#allocation4 + $0x28] sm:$0xff]
    %v738 = vld [vmem:[#allocation4 + $0x30] sm:$0xff]
    %v739 = vld [vmem:[#allocation4 + $0x38] sm:$0xff]
    %v740 = vld [vmem:[#allocation4 + $0x40] sm:$0xff]
    %v741 = vld [vmem:[#allocation4 + $0x48] sm:$0xff]
    %v742 = vld [vmem:[#allocation4 + $0x50] sm:$0xff]
    %v743 = vld [vmem:[#allocation4 + $0x58] sm:$0xff]
    %v744 = vld [vmem:[#allocation4 + $0x60] sm:$0xff]
    %v745 = vld [vmem:[#allocation4 + $0x68] sm:$0xff]
    %v746 = vld [vmem:[#allocation4 + $0x70] sm:$0xff]
    %v747 = vld [vmem:[#allocation4 + $0x78] sm:$0xff]
    %v748 = vld [vmem:[#allocation4 + $0x80] sm:$0xff]
    %v749 = vld [vmem:[#allocation4 + $0x88] sm:$0xff]
    %v750 = vld [vmem:[#allocation4 + $0x90] sm:$0xff]
    %v751 = vld [vmem:[#allocation4 + $0x98] sm:$0xff]
    %v752 = vld [vmem:[#allocation4 + $0xa0] sm:$0xff]
    %v753 = vld [vmem:[#allocation4 + $0xa8] sm:$0xff]
    %v754 = vld [vmem:[#allocation4 + $0xb0] sm:$0xff]
    %v755 = vld [vmem:[#allocation4 + $0xb8] sm:$0xff]
    %v756 = vld [vmem:[#allocation4 + $0xc0] sm:$0xff]
    %v757 = vld [vmem:[#allocation4 + $0xc8] sm:$0xff]
    %v758 = vld [vmem:[#allocation4 + $0xd0] sm:$0xff]
    %v759 = vld [vmem:[#allocation4 + $0xd8] sm:$0xff]
    %v760 = vld [vmem:[#allocation4 + $0xe0] sm:$0xff]
    %v761 = vld [vmem:[#allocation4 + $0xe8] sm:$0xff]
    %v762 = vld [vmem:[#allocation4 + $0xf0] sm:$0xff]
    %v763 = vld [vmem:[#allocation4 + $0xf8] sm:$0xff]
    %v796 = vunpack.c.l.b16 %v732
    %v797 = vunpack.c.h.b16 %v732
    %v798 = vunpack.c.l.b16 %v733
    %v799 = vunpack.c.h.b16 %v733
    %v800 = vunpack.c.l.b16 %v734
    %v801 = vunpack.c.h.b16 %v734
    %v802 = vunpack.c.l.b16 %v735
    %v803 = vunpack.c.h.b16 %v735
    %v804 = vunpack.c.l.b16 %v736
    %v805 = vunpack.c.h.b16 %v736
    %v806 = vunpack.c.l.b16 %v737
    %v807 = vunpack.c.h.b16 %v737
    %v808 = vunpack.c.l.b16 %v738
    %v809 = vunpack.c.h.b16 %v738
    %v810 = vunpack.c.l.b16 %v739
    %v811 = vunpack.c.h.b16 %v739
    %v812 = vunpack.c.l.b16 %v740
    %v813 = vunpack.c.h.b16 %v740
    %v814 = vunpack.c.l.b16 %v741
    %v815 = vunpack.c.h.b16 %v741
    %v816 = vunpack.c.l.b16 %v742
    %v817 = vunpack.c.h.b16 %v742
    %v818 = vunpack.c.l.b16 %v743
    %v819 = vunpack.c.h.b16 %v743
    %v820 = vunpack.c.l.b16 %v744
    %v821 = vunpack.c.h.b16 %v744
    %v822 = vunpack.c.l.b16 %v745
    %v823 = vunpack.c.h.b16 %v745
    %v824 = vunpack.c.l.b16 %v746
    %v825 = vunpack.c.h.b16 %v746
    %v826 = vunpack.c.l.b16 %v747
    %v827 = vunpack.c.h.b16 %v747
    %v828 = vunpack.c.l.b16 %v748
    %v829 = vunpack.c.h.b16 %v748
    %v830 = vunpack.c.l.b16 %v749
    %v831 = vunpack.c.h.b16 %v749
    %v832 = vunpack.c.l.b16 %v750
    %v833 = vunpack.c.h.b16 %v750
    %v834 = vunpack.c.l.b16 %v751
    %v835 = vunpack.c.h.b16 %v751
    %v836 = vunpack.c.l.b16 %v752
    %v837 = vunpack.c.h.b16 %v752
    %v838 = vunpack.c.l.b16 %v753
    %v839 = vunpack.c.h.b16 %v753
    %v840 = vunpack.c.l.b16 %v754
    %v841 = vunpack.c.h.b16 %v754
    %v842 = vunpack.c.l.b16 %v755
    %v843 = vunpack.c.h.b16 %v755
    %v844 = vunpack.c.l.b16 %v756
    %v845 = vunpack.c.h.b16 %v756
    %v846 = vunpack.c.l.b16 %v757
    %v847 = vunpack.c.h.b16 %v757
    %v848 = vunpack.c.l.b16 %v758
    %v849 = vunpack.c.h.b16 %v758
    %v850 = vunpack.c.l.b16 %v759
    %v851 = vunpack.c.h.b16 %v759
    %v852 = vunpack.c.l.b16 %v760
    %v853 = vunpack.c.h.b16 %v760
    %v854 = vunpack.c.l.b16 %v761
    %v855 = vunpack.c.h.b16 %v761
    %v856 = vunpack.c.l.b16 %v762
    %v857 = vunpack.c.h.b16 %v762
    %v858 = vunpack.c.l.b16 %v763
    %v859 = vunpack.c.h.b16 %v763
    %v860 = vpack.c.b16 %v798, %v796
    %v861 = vpack.c.b16 %v799, %v797
    %v862 = vpack.c.b16 %v802, %v800
    %v863 = vpack.c.b16 %v803, %v801
    %v864 = vpack.c.b16 %v806, %v804
    %v865 = vpack.c.b16 %v807, %v805
    %v866 = vpack.c.b16 %v810, %v808
    %v867 = vpack.c.b16 %v811, %v809
    %v868 = vpack.c.b16 %v814, %v812
    %v869 = vpack.c.b16 %v815, %v813
    %v870 = vpack.c.b16 %v818, %v816
    %v871 = vpack.c.b16 %v819, %v817
    %v872 = vpack.c.b16 %v822, %v820
    %v873 = vpack.c.b16 %v823, %v821
    %v874 = vpack.c.b16 %v826, %v824
    %v875 = vpack.c.b16 %v827, %v825
    %v876 = vpack.c.b16 %v830, %v828
    %v877 = vpack.c.b16 %v831, %v829
    %v878 = vpack.c.b16 %v834, %v832
    %v879 = vpack.c.b16 %v835, %v833
    %v880 = vpack.c.b16 %v838, %v836
    %v881 = vpack.c.b16 %v839, %v837
    %v882 = vpack.c.b16 %v842, %v840
    %v883 = vpack.c.b16 %v843, %v841
    %v884 = vpack.c.b16 %v846, %v844
    %v885 = vpack.c.b16 %v847, %v845
    %v886 = vpack.c.b16 %v850, %v848
    %v887 = vpack.c.b16 %v851, %v849
    %v888 = vpack.c.b16 %v854, %v852
    %v889 = vpack.c.b16 %v855, %v853
    %v890 = vpack.c.b16 %v858, %v856
    %v891 = vpack.c.b16 %v859, %v857
    %924 = vmatprep.subr.bf16.mxu0 0
    %925 = vmatpush1.bf16.msra.mxu0 %v442
    %926 = vmatprep.subr.bf16.mxu0 0
    %927 = vmatpush1.bf16.msra.mxu0 %v443
    %928 = vmatprep.subr.bf16.mxu0 0
    %929 = vmatpush1.bf16.msra.mxu0 %v444
    %930 = vmatprep.subr.bf16.mxu0 0
    %931 = vmatpush1.bf16.msra.mxu0 %v445
    %932 = vmatprep.subr.bf16.mxu0 0
    %933 = vmatpush1.bf16.msra.mxu0 %v446
    %934 = vmatprep.subr.bf16.mxu0 0
    %935 = vmatpush1.bf16.msra.mxu0 %v447
    %936 = vmatprep.subr.bf16.mxu0 0
    %937 = vmatpush1.bf16.msra.mxu0 %v448
    %938 = vmatprep.subr.bf16.mxu0 0
    %939 = vmatpush1.bf16.msra.mxu0 %v449
    %940 = vmatprep.subr.bf16.mxu0 0
    %941 = vmatpush1.bf16.msra.mxu0 %v450
    %942 = vmatprep.subr.bf16.mxu0 0
    %943 = vmatpush1.bf16.msra.mxu0 %v451
    %944 = vmatprep.subr.bf16.mxu0 0
    %945 = vmatpush1.bf16.msra.mxu0 %v452
    %946 = vmatprep.subr.bf16.mxu0 0
    %947 = vmatpush1.bf16.msra.mxu0 %v453
    %948 = vmatprep.subr.bf16.mxu0 0
    %949 = vmatpush1.bf16.msra.mxu0 %v454
    %950 = vmatprep.subr.bf16.mxu0 0
    %951 = vmatpush1.bf16.msra.mxu0 %v455
    %952 = vmatprep.subr.bf16.mxu0 0
    %953 = vmatpush1.bf16.msra.mxu0 %v456
    %954 = vmatprep.subr.bf16.mxu0 0
    %955 = vmatpush1.bf16.msra.mxu0 %v457
    %956 = vmatprep.mubr.bf16.mxu0 %v861
    %957 = vmatmul.mubr.bf16.gmra.mrb[0].mxu0 %v860
    %v958 = vpop.f32.mrb[0].mxu0
    %v959 = vadd.f32 0.0, %v958
    %v960 = vpop.f32.mrb[0].mxu0
    %v961 = vpop.f32.mrb[0].mxu0
    %v962 = vadd.f32 0.0, %v961
    %v963 = vpop.f32.mrb[0].mxu0
    %964 = vmatprep.mubr.bf16.mxu0 %v863
    %965 = vmatmul.mubr.bf16.gmra.mrb[0].mxu0 %v862
    %v966 = vpop.f32.mrb[0].mxu0
    %v967 = vadd.f32 0.0, %v966
    %v968 = vpop.f32.mrb[0].mxu0
    %v969 = vpop.f32.mrb[0].mxu0
    %v970 = vadd.f32 0.0, %v969
    %v971 = vpop.f32.mrb[0].mxu0
    %972 = vmatprep.mubr.bf16.mxu0 %v865
    %973 = vmatmul.mubr.bf16.gmra.mrb[0].mxu0 %v864
    %v974 = vpop.f32.mrb[0].mxu0
    %v975 = vadd.f32 0.0, %v974
    %v976 = vpop.f32.mrb[0].mxu0
    %v977 = vpop.f32.mrb[0].mxu0
    %v978 = vadd.f32 0.0, %v977
    %v979 = vpop.f32.mrb[0].mxu0
    %980 = vmatprep.mubr.bf16.mxu0 %v867
    %981 = vmatmul.mubr.bf16.gmra.mrb[0].mxu0 %v866
    %v982 = vpop.f32.mrb[0].mxu0
    %v983 = vadd.f32 0.0, %v982
    %v984 = vpop.f32.mrb[0].mxu0
    %v985 = vpop.f32.mrb[0].mxu0
    %v986 = vadd.f32 0.0, %v985
    %v987 = vpop.f32.mrb[0].mxu0
    %988 = vmatprep.mubr.bf16.mxu0 %v869
    %989 = vmatmul.mubr.bf16.gmra.mrb[0].mxu0 %v868
    %v990 = vpop.f32.mrb[0].mxu0
    %v991 = vadd.f32 0.0, %v990
    %v992 = vpop.f32.mrb[0].mxu0
    %v993 = vpop.f32.mrb[0].mxu0
    %v994 = vadd.f32 0.0, %v993
    %v995 = vpop.f32.mrb[0].mxu0
    %996 = vmatprep.mubr.bf16.mxu0 %v871
    %997 = vmatmul.mubr.bf16.gmra.mrb[0].mxu0 %v870
    %v998 = vpop.f32.mrb[0].mxu0
    %v999 = vadd.f32 0.0, %v998
    %v1000 = vpop.f32.mrb[0].mxu0
    %v1001 = vpop.f32.mrb[0].mxu0
    %v1002 = vadd.f32 0.0, %v1001
    %v1003 = vpop.f32.mrb[0].mxu0
    %1004 = vmatprep.mubr.bf16.mxu0 %v873
    %1005 = vmatmul.mubr.bf16.gmra.mrb[0].mxu0 %v872
    %v1006 = vpop.f32.mrb[0].mxu0
    %v1007 = vadd.f32 0.0, %v1006
    %v1008 = vpop.f32.mrb[0].mxu0
    %v1009 = vpop.f32.mrb[0].mxu0
    %v1010 = vadd.f32 0.0, %v1009
    %v1011 = vpop.f32.mrb[0].mxu0
    %1012 = vmatprep.mubr.bf16.mxu0 %v875
    %1013 = vmatmul.mubr.bf16.gmra.mrb[0].mxu0 %v874
    %v1014 = vpop.f32.mrb[0].mxu0
    %v1015 = vadd.f32 0.0, %v1014
    %v1016 = vpop.f32.mrb[0].mxu0
    %v1017 = vpop.f32.mrb[0].mxu0
    %v1018 = vadd.f32 0.0, %v1017
    %v1019 = vpop.f32.mrb[0].mxu0
    %1020 = vmatprep.mubr.bf16.mxu0 %v877
    %1021 = vmatmul.mubr.bf16.gmra.mrb[0].mxu0 %v876
    %v1022 = vpop.f32.mrb[0].mxu0
    %v1023 = vadd.f32 0.0, %v1022
    %v1024 = vpop.f32.mrb[0].mxu0
    %v1025 = vpop.f32.mrb[0].mxu0
    %v1026 = vadd.f32 0.0, %v1025
    %v1027 = vpop.f32.mrb[0].mxu0
    %1028 = vmatprep.mubr.bf16.mxu0 %v879
    %1029 = vmatmul.mubr.bf16.gmra.mrb[0].mxu0 %v878
    %v1030 = vpop.f32.mrb[0].mxu0
    %v1031 = vadd.f32 0.0, %v1030
    %v1032 = vpop.f32.mrb[0].mxu0
    %v1033 = vpop.f32.mrb[0].mxu0
    %v1034 = vadd.f32 0.0, %v1033
    %v1035 = vpop.f32.mrb[0].mxu0
    %1036 = vmatprep.mubr.bf16.mxu0 %v881
    %1037 = vmatmul.mubr.bf16.gmra.mrb[0].mxu0 %v880
    %v1038 = vpop.f32.mrb[0].mxu0
    %v1039 = vadd.f32 0.0, %v1038
    %v1040 = vpop.f32.mrb[0].mxu0
    %v1041 = vpop.f32.mrb[0].mxu0
    %v1042 = vadd.f32 0.0, %v1041
    %v1043 = vpop.f32.mrb[0].mxu0
    %1044 = vmatprep.mubr.bf16.mxu0 %v883
    %1045 = vmatmul.mubr.bf16.gmra.mrb[0].mxu0 %v882
    %v1046 = vpop.f32.mrb[0].mxu0
    %v1047 = vadd.f32 0.0, %v1046
    %v1048 = vpop.f32.mrb[0].mxu0
    %v1049 = vpop.f32.mrb[0].mxu0
    %v1050 = vadd.f32 0.0, %v1049
    %v1051 = vpop.f32.mrb[0].mxu0
    %1052 = vmatprep.mubr.bf16.mxu0 %v885
    %1053 = vmatmul.mubr.bf16.gmra.mrb[0].mxu0 %v884
    %v1054 = vpop.f32.mrb[0].mxu0
    %v1055 = vadd.f32 0.0, %v1054
    %v1056 = vpop.f32.mrb[0].mxu0
    %v1057 = vpop.f32.mrb[0].mxu0
    %v1058 = vadd.f32 0.0, %v1057
    %v1059 = vpop.f32.mrb[0].mxu0
    %1060 = vmatprep.mubr.bf16.mxu0 %v887
    %1061 = vmatmul.mubr.bf16.gmra.mrb[0].mxu0 %v886
    %v1062 = vpop.f32.mrb[0].mxu0
    %v1063 = vadd.f32 0.0, %v1062
    %v1064 = vpop.f32.mrb[0].mxu0
    %v1065 = vpop.f32.mrb[0].mxu0
    %v1066 = vadd.f32 0.0, %v1065
    %v1067 = vpop.f32.mrb[0].mxu0
    %1068 = vmatprep.mubr.bf16.mxu0 %v889
    %1069 = vmatmul.mubr.bf16.gmra.mrb[0].mxu0 %v888
    %v1070 = vpop.f32.mrb[0].mxu0
    %v1071 = vadd.f32 0.0, %v1070
    %v1072 = vpop.f32.mrb[0].mxu0
    %v1073 = vpop.f32.mrb[0].mxu0
    %v1074 = vadd.f32 0.0, %v1073
    %v1075 = vpop.f32.mrb[0].mxu0
    %1076 = vmatprep.mubr.bf16.mxu0 %v891
    %1077 = vmatmul.mubr.bf16.gmra.mrb[0].mxu0 %v890
    %v1078 = vpop.f32.mrb[0].mxu0
    %v1079 = vadd.f32 0.0, %v1078
    %v1080 = vpop.f32.mrb[0].mxu0
    %v1081 = vpop.f32.mrb[0].mxu0
    %v1082 = vadd.f32 0.0, %v1081
    %v1083 = vpop.f32.mrb[0].mxu0
    %1084 = vdwg.mxu0
    %v1085 = vadd.f32 %v700, %v959
    %v1086 = vadd.f32 %v701, %v962
    %v1087 = vadd.f32 %v702, %v967
    %v1088 = vadd.f32 %v703, %v970
    %v1089 = vadd.f32 %v704, %v975
    %v1090 = vadd.f32 %v705, %v978
    %v1091 = vadd.f32 %v706, %v983
    %v1092 = vadd.f32 %v707, %v986
    %v1093 = vadd.f32 %v708, %v991
    %v1094 = vadd.f32 %v709, %v994
    %v1095 = vadd.f32 %v710, %v999
    %v1096 = vadd.f32 %v711, %v1002
    %v1097 = vadd.f32 %v712, %v1007
    %v1098 = vadd.f32 %v713, %v1010
    %v1099 = vadd.f32 %v714, %v1015
    %v1100 = vadd.f32 %v715, %v1018
    %v1101 = vadd.f32 %v716, %v1023
    %v1102 = vadd.f32 %v717, %v1026
    %v1103 = vadd.f32 %v718, %v1031
    %v1104 = vadd.f32 %v719, %v1034
    %v1105 = vadd.f32 %v720, %v1039
    %v1106 = vadd.f32 %v721, %v1042
    %v1107 = vadd.f32 %v722, %v1047
    %v1108 = vadd.f32 %v723, %v1050
    %v1109 = vadd.f32 %v724, %v1055
    %v1110 = vadd.f32 %v725, %v1058
    %v1111 = vadd.f32 %v726, %v1063
    %v1112 = vadd.f32 %v727, %v1066
    %v1113 = vadd.f32 %v728, %v1071
    %v1114 = vadd.f32 %v729, %v1074
    %v1115 = vadd.f32 %v730, %v1079
    %v1116 = vadd.f32 %v731, %v1082
    %1117 = vst.msk [vmem:[#allocation3] sm:$0xff] %vm667, %v1085
    %1118 = vst.msk [vmem:[#allocation3 + $0x8] sm:$0xff] %vm667, %v1086
    %1119 = vst.msk [vmem:[#allocation3 + $0x10] sm:$0xff] %vm667, %v1087
    %1120 = vst.msk [vmem:[#allocation3 + $0x18] sm:$0xff] %vm667, %v1088
    %1121 = vst.msk [vmem:[#allocation3 + $0x20] sm:$0xff] %vm667, %v1089
    %1122 = vst.msk [vmem:[#allocation3 + $0x28] sm:$0xff] %vm667, %v1090
    %1123 = vst.msk [vmem:[#allocation3 + $0x30] sm:$0xff] %vm667, %v1091
    %1124 = vst.msk [vmem:[#allocation3 + $0x38] sm:$0xff] %vm667, %v1092
    %1125 = vst.msk [vmem:[#allocation3 + $0x40] sm:$0xff] %vm667, %v1093
    %1126 = vst.msk [vmem:[#allocation3 + $0x48] sm:$0xff] %vm667, %v1094
    %1127 = vst.msk [vmem:[#allocation3 + $0x50] sm:$0xff] %vm667, %v1095
    %1128 = vst.msk [vmem:[#allocation3 + $0x58] sm:$0xff] %vm667, %v1096
    %1129 = vst.msk [vmem:[#allocation3 + $0x60] sm:$0xff] %vm667, %v1097
    %1130 = vst.msk [vmem:[#allocation3 + $0x68] sm:$0xff] %vm667, %v1098
    %1131 = vst.msk [vmem:[#allocation3 + $0x70] sm:$0xff] %vm667, %v1099
    %1132 = vst.msk [vmem:[#allocation3 + $0x78] sm:$0xff] %vm667, %v1100
    %1133 = vst.msk [vmem:[#allocation3 + $0x80] sm:$0xff] %vm667, %v1101
    %1134 = vst.msk [vmem:[#allocation3 + $0x88] sm:$0xff] %vm667, %v1102
    %1135 = vst.msk [vmem:[#allocation3 + $0x90] sm:$0xff] %vm667, %v1103
    %1136 = vst.msk [vmem:[#allocation3 + $0x98] sm:$0xff] %vm667, %v1104
    %1137 = vst.msk [vmem:[#allocation3 + $0xa0] sm:$0xff] %vm667, %v1105
    %1138 = vst.msk [vmem:[#allocation3 + $0xa8] sm:$0xff] %vm667, %v1106
    %1139 = vst.msk [vmem:[#allocation3 + $0xb0] sm:$0xff] %vm667, %v1107
    %1140 = vst.msk [vmem:[#allocation3 + $0xb8] sm:$0xff] %vm667, %v1108
    %1141 = vst.msk [vmem:[#allocation3 + $0xc0] sm:$0xff] %vm667, %v1109
    %1142 = vst.msk [vmem:[#allocation3 + $0xc8] sm:$0xff] %vm667, %v1110
    %1143 = vst.msk [vmem:[#allocation3 + $0xd0] sm:$0xff] %vm667, %v1111
    %1144 = vst.msk [vmem:[#allocation3 + $0xd8] sm:$0xff] %vm667, %v1112
    %1145 = vst.msk [vmem:[#allocation3 + $0xe0] sm:$0xff] %vm667, %v1113
    %1146 = vst.msk [vmem:[#allocation3 + $0xe8] sm:$0xff] %vm667, %v1114
    %1147 = vst.msk [vmem:[#allocation3 + $0xf0] sm:$0xff] %vm667, %v1115
    %1148 = vst.msk [vmem:[#allocation3 + $0xf8] sm:$0xff] %vm667, %v1116
    // Predicated region
    $region46: #{tpu_custom_call.1} parent=1 // pred_check
      %p1149 = pneg %p48
    $region47: #{tpu_custom_call.1} parent=1 // pred_check_branch
      %1151 = sbr.rel (%p1149) target = $region49
    $region48: #{tpu_custom_call.1} parent=1 // pred_region
      %s1152 = smul.u32 0, 256
      %s1153 = sshra.s32 %s1152, 3
      %s1154 = sand.u32 %s1152, 7
      %s1155 = smul.addr %s1153, 4
      %s1156 = scalar_lea.vmem %s2, %s1155
      %v1157 = vld [vmem:[%s1156] sm:$0xf]
      %v1158 = vld [vmem:[%s1156 + $0x4] sm:$0xf]
      %v1159 = vld [vmem:[%s1156 + $0x8] sm:$0xf]
      %v1160 = vld [vmem:[%s1156 + $0xc] sm:$0xf]
      %v1161 = vld [vmem:[%s1156 + $0x10] sm:$0xf]
      %v1162 = vld [vmem:[%s1156 + $0x14] sm:$0xf]
      %v1163 = vld [vmem:[%s1156 + $0x18] sm:$0xf]
      %v1164 = vld [vmem:[%s1156 + $0x1c] sm:$0xf]
      %v1165 = vld [vmem:[%s1156 + $0x20] sm:$0xf]
      %v1166 = vld [vmem:[%s1156 + $0x24] sm:$0xf]
      %v1167 = vld [vmem:[%s1156 + $0x28] sm:$0xf]
      %v1168 = vld [vmem:[%s1156 + $0x2c] sm:$0xf]
      %v1169 = vld [vmem:[%s1156 + $0x30] sm:$0xf]
      %v1170 = vld [vmem:[%s1156 + $0x34] sm:$0xf]
      %v1171 = vld [vmem:[%s1156 + $0x38] sm:$0xf]
      %v1172 = vld [vmem:[%s1156 + $0x3c] sm:$0xf]
      %v1173 = vld [vmem:[%s1156 + $0x40] sm:$0xf]
      %v1174 = vld [vmem:[%s1156 + $0x44] sm:$0xf]
      %v1175 = vld [vmem:[%s1156 + $0x48] sm:$0xf]
      %v1176 = vld [vmem:[%s1156 + $0x4c] sm:$0xf]
      %v1177 = vld [vmem:[%s1156 + $0x50] sm:$0xf]
      %v1178 = vld [vmem:[%s1156 + $0x54] sm:$0xf]
      %v1179 = vld [vmem:[%s1156 + $0x58] sm:$0xf]
      %v1180 = vld [vmem:[%s1156 + $0x5c] sm:$0xf]
      %v1181 = vld [vmem:[%s1156 + $0x60] sm:$0xf]
      %v1182 = vld [vmem:[%s1156 + $0x64] sm:$0xf]
      %v1183 = vld [vmem:[%s1156 + $0x68] sm:$0xf]
      %v1184 = vld [vmem:[%s1156 + $0x6c] sm:$0xf]
      %v1185 = vld [vmem:[%s1156 + $0x70] sm:$0xf]
      %v1186 = vld [vmem:[%s1156 + $0x74] sm:$0xf]
      %v1187 = vld [vmem:[%s1156 + $0x78] sm:$0xf]
      %v1188 = vld [vmem:[%s1156 + $0x7c] sm:$0xf]
      %v1189 = vunpack.c.l.bf16 %v1157
      %v1190 = vunpack.c.l.bf16 %v1158
      %v1191 = vunpack.c.l.bf16 %v1159
      %v1192 = vunpack.c.l.bf16 %v1160
      %v1193 = vunpack.c.l.bf16 %v1161
      %v1194 = vunpack.c.l.bf16 %v1162
      %v1195 = vunpack.c.l.bf16 %v1163
      %v1196 = vunpack.c.l.bf16 %v1164
      %v1197 = vunpack.c.l.bf16 %v1165
      %v1198 = vunpack.c.l.bf16 %v1166
      %v1199 = vunpack.c.l.bf16 %v1167
      %v1200 = vunpack.c.l.bf16 %v1168
      %v1201 = vunpack.c.l.bf16 %v1169
      %v1202 = vunpack.c.l.bf16 %v1170
      %v1203 = vunpack.c.l.bf16 %v1171
      %v1204 = vunpack.c.l.bf16 %v1172
      %v1205 = vunpack.c.l.bf16 %v1173
      %v1206 = vunpack.c.l.bf16 %v1174
      %v1207 = vunpack.c.l.bf16 %v1175
      %v1208 = vunpack.c.l.bf16 %v1176
      %v1209 = vunpack.c.l.bf16 %v1177
      %v1210 = vunpack.c.l.bf16 %v1178
      %v1211 = vunpack.c.l.bf16 %v1179
      %v1212 = vunpack.c.l.bf16 %v1180
      %v1213 = vunpack.c.l.bf16 %v1181
      %v1214 = vunpack.c.l.bf16 %v1182
      %v1215 = vunpack.c.l.bf16 %v1183
      %v1216 = vunpack.c.l.bf16 %v1184
      %v1217 = vunpack.c.l.bf16 %v1185
      %v1218 = vunpack.c.l.bf16 %v1186
      %v1219 = vunpack.c.l.bf16 %v1187
      %v1220 = vunpack.c.l.bf16 %v1188
      %v1221 = vld [vmem:[%s3] sm:$0xff]
      %v1222 = vld [vmem:[%s3 + $0x8] sm:$0xff]
      %v1223 = vld [vmem:[%s3 + $0x10] sm:$0xff]
      %v1224 = vld [vmem:[%s3 + $0x18] sm:$0xff]
      %v1225 = vld [vmem:[%s3 + $0x20] sm:$0xff]
      %v1226 = vld [vmem:[%s3 + $0x28] sm:$0xff]
      %v1227 = vld [vmem:[%s3 + $0x30] sm:$0xff]
      %v1228 = vld [vmem:[%s3 + $0x38] sm:$0xff]
      %v1229 = vld [vmem:[%s3 + $0x40] sm:$0xff]
      %v1230 = vld [vmem:[%s3 + $0x48] sm:$0xff]
      %v1231 = vld [vmem:[%s3 + $0x50] sm:$0xff]
      %v1232 = vld [vmem:[%s3 + $0x58] sm:$0xff]
      %v1233 = vld [vmem:[%s3 + $0x60] sm:$0xff]
      %v1234 = vld [vmem:[%s3 + $0x68] sm:$0xff]
      %v1235 = vld [vmem:[%s3 + $0x70] sm:$0xff]
      %v1236 = vld [vmem:[%s3 + $0x78] sm:$0xff]
      %v1237 = vld [vmem:[%s3 + $0x80] sm:$0xff]
      %v1238 = vld [vmem:[%s3 + $0x88] sm:$0xff]
      %v1239 = vld [vmem:[%s3 + $0x90] sm:$0xff]
      %v1240 = vld [vmem:[%s3 + $0x98] sm:$0xff]
      %v1241 = vld [vmem:[%s3 + $0xa0] sm:$0xff]
      %v1242 = vld [vmem:[%s3 + $0xa8] sm:$0xff]
      %v1243 = vld [vmem:[%s3 + $0xb0] sm:$0xff]
      %v1244 = vld [vmem:[%s3 + $0xb8] sm:$0xff]
      %v1245 = vld [vmem:[%s3 + $0xc0] sm:$0xff]
      %v1246 = vld [vmem:[%s3 + $0xc8] sm:$0xff]
      %v1247 = vld [vmem:[%s3 + $0xd0] sm:$0xff]
      %v1248 = vld [vmem:[%s3 + $0xd8] sm:$0xff]
      %v1249 = vld [vmem:[%s3 + $0xe0] sm:$0xff]
      %v1250 = vld [vmem:[%s3 + $0xe8] sm:$0xff]
      %v1251 = vld [vmem:[%s3 + $0xf0] sm:$0xff]
      %v1252 = vld [vmem:[%s3 + $0xf8] sm:$0xff]
      %v1253 = vld [vmem:[#allocation2] sm:$0xff]
      %v1254 = vld [vmem:[#allocation2 + $0x8] sm:$0xff]
      %v1255 = vld [vmem:[#allocation2 + $0x10] sm:$0xff]
      %v1256 = vld [vmem:[#allocation2 + $0x18] sm:$0xff]
      %v1257 = vld [vmem:[#allocation2 + $0x20] sm:$0xff]
      %v1258 = vld [vmem:[#allocation2 + $0x28] sm:$0xff]
      %v1259 = vld [vmem:[#allocation2 + $0x30] sm:$0xff]
      %v1260 = vld [vmem:[#allocation2 + $0x38] sm:$0xff]
      %v1261 = vld [vmem:[#allocation2 + $0x40] sm:$0xff]
      %v1262 = vld [vmem:[#allocation2 + $0x48] sm:$0xff]
      %v1263 = vld [vmem:[#allocation2 + $0x50] sm:$0xff]
      %v1264 = vld [vmem:[#allocation2 + $0x58] sm:$0xff]
      %v1265 = vld [vmem:[#allocation2 + $0x60] sm:$0xff]
      %v1266 = vld [vmem:[#allocation2 + $0x68] sm:$0xff]
      %v1267 = vld [vmem:[#allocation2 + $0x70] sm:$0xff]
      %v1268 = vld [vmem:[#allocation2 + $0x78] sm:$0xff]
      %v1269 = vld [vmem:[#allocation2 + $0x80] sm:$0xff]
      %v1270 = vld [vmem:[#allocation2 + $0x88] sm:$0xff]
      %v1271 = vld [vmem:[#allocation2 + $0x90] sm:$0xff]
      %v1272 = vld [vmem:[#allocation2 + $0x98] sm:$0xff]
      %v1273 = vld [vmem:[#allocation2 + $0xa0] sm:$0xff]
      %v1274 = vld [vmem:[#allocation2 + $0xa8] sm:$0xff]
      %v1275 = vld [vmem:[#allocation2 + $0xb0] sm:$0xff]
      %v1276 = vld [vmem:[#allocation2 + $0xb8] sm:$0xff]
      %v1277 = vld [vmem:[#allocation2 + $0xc0] sm:$0xff]
      %v1278 = vld [vmem:[#allocation2 + $0xc8] sm:$0xff]
      %v1279 = vld [vmem:[#allocation2 + $0xd0] sm:$0xff]
      %v1280 = vld [vmem:[#allocation2 + $0xd8] sm:$0xff]
      %v1281 = vld [vmem:[#allocation2 + $0xe0] sm:$0xff]
      %v1282 = vld [vmem:[#allocation2 + $0xe8] sm:$0xff]
      %v1283 = vld [vmem:[#allocation2 + $0xf0] sm:$0xff]
      %v1284 = vld [vmem:[#allocation2 + $0xf8] sm:$0xff]
      %1286 = vset.pattern.permute.xlu0 0
      %1287 = vperm.xlu0 %1286, %v1221
      %v1288 = vpop.permute.xlu0 %1287
      %1291 = vset.pattern.permute.xlu0 0
      %1292 = vperm.xlu0 %1291, %v1222
      %v1293 = vpop.permute.xlu0 %1292
      %1296 = vset.pattern.permute.xlu0 0
      %1297 = vperm.xlu0 %1296, %v1223
      %v1298 = vpop.permute.xlu0 %1297
      %1301 = vset.pattern.permute.xlu0 0
      %1302 = vperm.xlu0 %1301, %v1224
      %v1303 = vpop.permute.xlu0 %1302
      %1306 = vset.pattern.permute.xlu0 0
      %1307 = vperm.xlu0 %1306, %v1225
      %v1308 = vpop.permute.xlu0 %1307
      %1311 = vset.pattern.permute.xlu0 0
      %1312 = vperm.xlu0 %1311, %v1226
      %v1313 = vpop.permute.xlu0 %1312
      %1316 = vset.pattern.permute.xlu0 0
      %1317 = vperm.xlu0 %1316, %v1227
      %v1318 = vpop.permute.xlu0 %1317
      %1321 = vset.pattern.permute.xlu0 0
      %1322 = vperm.xlu0 %1321, %v1228
      %v1323 = vpop.permute.xlu0 %1322
      %1326 = vset.pattern.permute.xlu0 0
      %1327 = vperm.xlu0 %1326, %v1229
      %v1328 = vpop.permute.xlu0 %1327
      %1331 = vset.pattern.permute.xlu0 0
      %1332 = vperm.xlu0 %1331, %v1230
      %v1333 = vpop.permute.xlu0 %1332
      %1336 = vset.pattern.permute.xlu0 0
      %1337 = vperm.xlu0 %1336, %v1231
      %v1338 = vpop.permute.xlu0 %1337
      %1341 = vset.pattern.permute.xlu0 0
      %1342 = vperm.xlu0 %1341, %v1232
      %v1343 = vpop.permute.xlu0 %1342
      %1346 = vset.pattern.permute.xlu0 0
      %1347 = vperm.xlu0 %1346, %v1233
      %v1348 = vpop.permute.xlu0 %1347
      %1351 = vset.pattern.permute.xlu0 0
      %1352 = vperm.xlu0 %1351, %v1234
      %v1353 = vpop.permute.xlu0 %1352
      %1356 = vset.pattern.permute.xlu0 0
      %1357 = vperm.xlu0 %1356, %v1235
      %v1358 = vpop.permute.xlu0 %1357
      %1361 = vset.pattern.permute.xlu0 0
      %1362 = vperm.xlu0 %1361, %v1236
      %v1363 = vpop.permute.xlu0 %1362
      %1366 = vset.pattern.permute.xlu0 0
      %1367 = vperm.xlu0 %1366, %v1237
      %v1368 = vpop.permute.xlu0 %1367
      %1371 = vset.pattern.permute.xlu0 0
      %1372 = vperm.xlu0 %1371, %v1238
      %v1373 = vpop.permute.xlu0 %1372
      %1376 = vset.pattern.permute.xlu0 0
      %1377 = vperm.xlu0 %1376, %v1239
      %v1378 = vpop.permute.xlu0 %1377
      %1381 = vset.pattern.permute.xlu0 0
      %1382 = vperm.xlu0 %1381, %v1240
      %v1383 = vpop.permute.xlu0 %1382
      %1386 = vset.pattern.permute.xlu0 0
      %1387 = vperm.xlu0 %1386, %v1241
      %v1388 = vpop.permute.xlu0 %1387
      %1391 = vset.pattern.permute.xlu0 0
      %1392 = vperm.xlu0 %1391, %v1242
      %v1393 = vpop.permute.xlu0 %1392
      %1396 = vset.pattern.permute.xlu0 0
      %1397 = vperm.xlu0 %1396, %v1243
      %v1398 = vpop.permute.xlu0 %1397
      %1401 = vset.pattern.permute.xlu0 0
      %1402 = vperm.xlu0 %1401, %v1244
      %v1403 = vpop.permute.xlu0 %1402
      %1406 = vset.pattern.permute.xlu0 0
      %1407 = vperm.xlu0 %1406, %v1245
      %v1408 = vpop.permute.xlu0 %1407
      %1411 = vset.pattern.permute.xlu0 0
      %1412 = vperm.xlu0 %1411, %v1246
      %v1413 = vpop.permute.xlu0 %1412
      %1416 = vset.pattern.permute.xlu0 0
      %1417 = vperm.xlu0 %1416, %v1247
      %v1418 = vpop.permute.xlu0 %1417
      %1421 = vset.pattern.permute.xlu0 0
      %1422 = vperm.xlu0 %1421, %v1248
      %v1423 = vpop.permute.xlu0 %1422
      %1426 = vset.pattern.permute.xlu0 0
      %1427 = vperm.xlu0 %1426, %v1249
      %v1428 = vpop.permute.xlu0 %1427
      %1431 = vset.pattern.permute.xlu0 0
      %1432 = vperm.xlu0 %1431, %v1250
      %v1433 = vpop.permute.xlu0 %1432
      %1436 = vset.pattern.permute.xlu0 0
      %1437 = vperm.xlu0 %1436, %v1251
      %v1438 = vpop.permute.xlu0 %1437
      %1441 = vset.pattern.permute.xlu0 0
      %1442 = vperm.xlu0 %1441, %v1252
      %v1443 = vpop.permute.xlu0 %1442
      %v1445 = vmul.f32 %v1288, %v1253
      %v1446 = vmul.f32 %v1293, %v1254
      %v1447 = vmul.f32 %v1298, %v1255
      %v1448 = vmul.f32 %v1303, %v1256
      %v1449 = vmul.f32 %v1308, %v1257
      %v1450 = vmul.f32 %v1313, %v1258
      %v1451 = vmul.f32 %v1318, %v1259
      %v1452 = vmul.f32 %v1323, %v1260
      %v1453 = vmul.f32 %v1328, %v1261
      %v1454 = vmul.f32 %v1333, %v1262
      %v1455 = vmul.f32 %v1338, %v1263
      %v1456 = vmul.f32 %v1343, %v1264
      %v1457 = vmul.f32 %v1348, %v1265
      %v1458 = vmul.f32 %v1353, %v1266
      %v1459 = vmul.f32 %v1358, %v1267
      %v1460 = vmul.f32 %v1363, %v1268
      %v1461 = vmul.f32 %v1368, %v1269
      %v1462 = vmul.f32 %v1373, %v1270
      %v1463 = vmul.f32 %v1378, %v1271
      %v1464 = vmul.f32 %v1383, %v1272
      %v1465 = vmul.f32 %v1388, %v1273
      %v1466 = vmul.f32 %v1393, %v1274
      %v1467 = vmul.f32 %v1398, %v1275
      %v1468 = vmul.f32 %v1403, %v1276
      %v1469 = vmul.f32 %v1408, %v1277
      %v1470 = vmul.f32 %v1413, %v1278
      %v1471 = vmul.f32 %v1418, %v1279
      %v1472 = vmul.f32 %v1423, %v1280
      %v1473 = vmul.f32 %v1428, %v1281
      %v1474 = vmul.f32 %v1433, %v1282
      %v1475 = vmul.f32 %v1438, %v1283
      %v1476 = vmul.f32 %v1443, %v1284
      %1477 = vset.pattern.permute.xlu0 1
      %1478 = vperm.xlu0 %1477, %v1221
      %v1479 = vpop.permute.xlu0 %1478
      %1481 = vset.pattern.permute.xlu0 1
      %1482 = vperm.xlu0 %1481, %v1222
      %v1483 = vpop.permute.xlu0 %1482
      %1485 = vset.pattern.permute.xlu0 1
      %1486 = vperm.xlu0 %1485, %v1223
      %v1487 = vpop.permute.xlu0 %1486
      %1489 = vset.pattern.permute.xlu0 1
      %1490 = vperm.xlu0 %1489, %v1224
      %v1491 = vpop.permute.xlu0 %1490
      %1493 = vset.pattern.permute.xlu0 1
      %1494 = vperm.xlu0 %1493, %v1225
      %v1495 = vpop.permute.xlu0 %1494
      %1497 = vset.pattern.permute.xlu0 1
      %1498 = vperm.xlu0 %1497, %v1226
      %v1499 = vpop.permute.xlu0 %1498
      %1501 = vset.pattern.permute.xlu0 1
      %1502 = vperm.xlu0 %1501, %v1227
      %v1503 = vpop.permute.xlu0 %1502
      %1505 = vset.pattern.permute.xlu0 1
      %1506 = vperm.xlu0 %1505, %v1228
      %v1507 = vpop.permute.xlu0 %1506
      %1509 = vset.pattern.permute.xlu0 1
      %1510 = vperm.xlu0 %1509, %v1229
      %v1511 = vpop.permute.xlu0 %1510
      %1513 = vset.pattern.permute.xlu0 1
      %1514 = vperm.xlu0 %1513, %v1230
      %v1515 = vpop.permute.xlu0 %1514
      %1517 = vset.pattern.permute.xlu0 1
      %1518 = vperm.xlu0 %1517, %v1231
      %v1519 = vpop.permute.xlu0 %1518
      %1521 = vset.pattern.permute.xlu0 1
      %1522 = vperm.xlu0 %1521, %v1232
      %v1523 = vpop.permute.xlu0 %1522
      %1525 = vset.pattern.permute.xlu0 1
      %1526 = vperm.xlu0 %1525, %v1233
      %v1527 = vpop.permute.xlu0 %1526
      %1529 = vset.pattern.permute.xlu0 1
      %1530 = vperm.xlu0 %1529, %v1234
      %v1531 = vpop.permute.xlu0 %1530
      %1533 = vset.pattern.permute.xlu0 1
      %1534 = vperm.xlu0 %1533, %v1235
      %v1535 = vpop.permute.xlu0 %1534
      %1537 = vset.pattern.permute.xlu0 1
      %1538 = vperm.xlu0 %1537, %v1236
      %v1539 = vpop.permute.xlu0 %1538
      %1541 = vset.pattern.permute.xlu0 1
      %1542 = vperm.xlu0 %1541, %v1237
      %v1543 = vpop.permute.xlu0 %1542
      %1545 = vset.pattern.permute.xlu0 1
      %1546 = vperm.xlu0 %1545, %v1238
      %v1547 = vpop.permute.xlu0 %1546
      %1549 = vset.pattern.permute.xlu0 1
      %1550 = vperm.xlu0 %1549, %v1239
      %v1551 = vpop.permute.xlu0 %1550
      %1553 = vset.pattern.permute.xlu0 1
      %1554 = vperm.xlu0 %1553, %v1240
      %v1555 = vpop.permute.xlu0 %1554
      %1557 = vset.pattern.permute.xlu0 1
      %1558 = vperm.xlu0 %1557, %v1241
      %v1559 = vpop.permute.xlu0 %1558
      %1561 = vset.pattern.permute.xlu0 1
      %1562 = vperm.xlu0 %1561, %v1242
      %v1563 = vpop.permute.xlu0 %1562
      %1565 = vset.pattern.permute.xlu0 1
      %1566 = vperm.xlu0 %1565, %v1243
      %v1567 = vpop.permute.xlu0 %1566
      %1569 = vset.pattern.permute.xlu0 1
      %1570 = vperm.xlu0 %1569, %v1244
      %v1571 = vpop.permute.xlu0 %1570
      %1573 = vset.pattern.permute.xlu0 1
      %1574 = vperm.xlu0 %1573, %v1245
      %v1575 = vpop.permute.xlu0 %1574
      %1577 = vset.pattern.permute.xlu0 1
      %1578 = vperm.xlu0 %1577, %v1246
      %v1579 = vpop.permute.xlu0 %1578
      %1581 = vset.pattern.permute.xlu0 1
      %1582 = vperm.xlu0 %1581, %v1247
      %v1583 = vpop.permute.xlu0 %1582
      %1585 = vset.pattern.permute.xlu0 1
      %1586 = vperm.xlu0 %1585, %v1248
      %v1587 = vpop.permute.xlu0 %1586
      %1589 = vset.pattern.permute.xlu0 1
      %1590 = vperm.xlu0 %1589, %v1249
      %v1591 = vpop.permute.xlu0 %1590
      %1593 = vset.pattern.permute.xlu0 1
      %1594 = vperm.xlu0 %1593, %v1250
      %v1595 = vpop.permute.xlu0 %1594
      %1597 = vset.pattern.permute.xlu0 1
      %1598 = vperm.xlu0 %1597, %v1251
      %v1599 = vpop.permute.xlu0 %1598
      %1601 = vset.pattern.permute.xlu0 1
      %1602 = vperm.xlu0 %1601, %v1252
      %v1603 = vpop.permute.xlu0 %1602
      %v1605 = vmul.f32 %v1479, %v1189
      %v1606 = vmul.f32 %v1483, %v1190
      %v1607 = vmul.f32 %v1487, %v1191
      %v1608 = vmul.f32 %v1491, %v1192
      %v1609 = vmul.f32 %v1495, %v1193
      %v1610 = vmul.f32 %v1499, %v1194
      %v1611 = vmul.f32 %v1503, %v1195
      %v1612 = vmul.f32 %v1507, %v1196
      %v1613 = vmul.f32 %v1511, %v1197
      %v1614 = vmul.f32 %v1515, %v1198
      %v1615 = vmul.f32 %v1519, %v1199
      %v1616 = vmul.f32 %v1523, %v1200
      %v1617 = vmul.f32 %v1527, %v1201
      %v1618 = vmul.f32 %v1531, %v1202
      %v1619 = vmul.f32 %v1535, %v1203
      %v1620 = vmul.f32 %v1539, %v1204
      %v1621 = vmul.f32 %v1543, %v1205
      %v1622 = vmul.f32 %v1547, %v1206
      %v1623 = vmul.f32 %v1551, %v1207
      %v1624 = vmul.f32 %v1555, %v1208
      %v1625 = vmul.f32 %v1559, %v1209
      %v1626 = vmul.f32 %v1563, %v1210
      %v1627 = vmul.f32 %v1567, %v1211
      %v1628 = vmul.f32 %v1571, %v1212
      %v1629 = vmul.f32 %v1575, %v1213
      %v1630 = vmul.f32 %v1579, %v1214
      %v1631 = vmul.f32 %v1583, %v1215
      %v1632 = vmul.f32 %v1587, %v1216
      %v1633 = vmul.f32 %v1591, %v1217
      %v1634 = vmul.f32 %v1595, %v1218
      %v1635 = vmul.f32 %v1599, %v1219
      %v1636 = vmul.f32 %v1603, %v1220
      %v1637 = vadd.f32 %v1445, %v1605
      %v1638 = vadd.f32 %v1446, %v1606
      %v1639 = vadd.f32 %v1447, %v1607
      %v1640 = vadd.f32 %v1448, %v1608
      %v1641 = vadd.f32 %v1449, %v1609
      %v1642 = vadd.f32 %v1450, %v1610
      %v1643 = vadd.f32 %v1451, %v1611
      %v1644 = vadd.f32 %v1452, %v1612
      %v1645 = vadd.f32 %v1453, %v1613
      %v1646 = vadd.f32 %v1454, %v1614
      %v1647 = vadd.f32 %v1455, %v1615
      %v1648 = vadd.f32 %v1456, %v1616
      %v1649 = vadd.f32 %v1457, %v1617
      %v1650 = vadd.f32 %v1458, %v1618
      %v1651 = vadd.f32 %v1459, %v1619
      %v1652 = vadd.f32 %v1460, %v1620
      %v1653 = vadd.f32 %v1461, %v1621
      %v1654 = vadd.f32 %v1462, %v1622
      %v1655 = vadd.f32 %v1463, %v1623
      %v1656 = vadd.f32 %v1464, %v1624
      %v1657 = vadd.f32 %v1465, %v1625
      %v1658 = vadd.f32 %v1466, %v1626
      %v1659 = vadd.f32 %v1467, %v1627
      %v1660 = vadd.f32 %v1468, %v1628
      %v1661 = vadd.f32 %v1469, %v1629
      %v1662 = vadd.f32 %v1470, %v1630
      %v1663 = vadd.f32 %v1471, %v1631
      %v1664 = vadd.f32 %v1472, %v1632
      %v1665 = vadd.f32 %v1473, %v1633
      %v1666 = vadd.f32 %v1474, %v1634
      %v1667 = vadd.f32 %v1475, %v1635
      %v1668 = vadd.f32 %v1476, %v1636
      %v1669 = vld [vmem:[#allocation3] sm:$0xff]
      %v1670 = vld [vmem:[#allocation3 + $0x8] sm:$0xff]
      %v1671 = vld [vmem:[#allocation3 + $0x10] sm:$0xff]
      %v1672 = vld [vmem:[#allocation3 + $0x18] sm:$0xff]
      %v1673 = vld [vmem:[#allocation3 + $0x20] sm:$0xff]
      %v1674 = vld [vmem:[#allocation3 + $0x28] sm:$0xff]
      %v1675 = vld [vmem:[#allocation3 + $0x30] sm:$0xff]
      %v1676 = vld [vmem:[#allocation3 + $0x38] sm:$0xff]
      %v1677 = vld [vmem:[#allocation3 + $0x40] sm:$0xff]
      %v1678 = vld [vmem:[#allocation3 + $0x48] sm:$0xff]
      %v1679 = vld [vmem:[#allocation3 + $0x50] sm:$0xff]
      %v1680 = vld [vmem:[#allocation3 + $0x58] sm:$0xff]
      %v1681 = vld [vmem:[#allocation3 + $0x60] sm:$0xff]
      %v1682 = vld [vmem:[#allocation3 + $0x68] sm:$0xff]
      %v1683 = vld [vmem:[#allocation3 + $0x70] sm:$0xff]
      %v1684 = vld [vmem:[#allocation3 + $0x78] sm:$0xff]
      %v1685 = vld [vmem:[#allocation3 + $0x80] sm:$0xff]
      %v1686 = vld [vmem:[#allocation3 + $0x88] sm:$0xff]
      %v1687 = vld [vmem:[#allocation3 + $0x90] sm:$0xff]
      %v1688 = vld [vmem:[#allocation3 + $0x98] sm:$0xff]
      %v1689 = vld [vmem:[#allocation3 + $0xa0] sm:$0xff]
      %v1690 = vld [vmem:[#allocation3 + $0xa8] sm:$0xff]
      %v1691 = vld [vmem:[#allocation3 + $0xb0] sm:$0xff]
      %v1692 = vld [vmem:[#allocation3 + $0xb8] sm:$0xff]
      %v1693 = vld [vmem:[#allocation3 + $0xc0] sm:$0xff]
      %v1694 = vld [vmem:[#allocation3 + $0xc8] sm:$0xff]
      %v1695 = vld [vmem:[#allocation3 + $0xd0] sm:$0xff]
      %v1696 = vld [vmem:[#allocation3 + $0xd8] sm:$0xff]
      %v1697 = vld [vmem:[#allocation3 + $0xe0] sm:$0xff]
      %v1698 = vld [vmem:[#allocation3 + $0xe8] sm:$0xff]
      %v1699 = vld [vmem:[#allocation3 + $0xf0] sm:$0xff]
      %v1700 = vld [vmem:[#allocation3 + $0xf8] sm:$0xff]
      %1701 = vset.pattern.permute.xlu0 2
      %1702 = vperm.xlu0 %1701, %v1221
      %v1703 = vpop.permute.xlu0 %1702
      %1705 = vset.pattern.permute.xlu0 2
      %1706 = vperm.xlu0 %1705, %v1222
      %v1707 = vpop.permute.xlu0 %1706
      %1709 = vset.pattern.permute.xlu0 2
      %1710 = vperm.xlu0 %1709, %v1223
      %v1711 = vpop.permute.xlu0 %1710
      %1713 = vset.pattern.permute.xlu0 2
      %1714 = vperm.xlu0 %1713, %v1224
      %v1715 = vpop.permute.xlu0 %1714
      %1717 = vset.pattern.permute.xlu0 2
      %1718 = vperm.xlu0 %1717, %v1225
      %v1719 = vpop.permute.xlu0 %1718
      %1721 = vset.pattern.permute.xlu0 2
      %1722 = vperm.xlu0 %1721, %v1226
      %v1723 = vpop.permute.xlu0 %1722
      %1725 = vset.pattern.permute.xlu0 2
      %1726 = vperm.xlu0 %1725, %v1227
      %v1727 = vpop.permute.xlu0 %1726
      %1729 = vset.pattern.permute.xlu0 2
      %1730 = vperm.xlu0 %1729, %v1228
      %v1731 = vpop.permute.xlu0 %1730
      %1733 = vset.pattern.permute.xlu0 2
      %1734 = vperm.xlu0 %1733, %v1229
      %v1735 = vpop.permute.xlu0 %1734
      %1737 = vset.pattern.permute.xlu0 2
      %1738 = vperm.xlu0 %1737, %v1230
      %v1739 = vpop.permute.xlu0 %1738
      %1741 = vset.pattern.permute.xlu0 2
      %1742 = vperm.xlu0 %1741, %v1231
      %v1743 = vpop.permute.xlu0 %1742
      %1745 = vset.pattern.permute.xlu0 2
      %1746 = vperm.xlu0 %1745, %v1232
      %v1747 = vpop.permute.xlu0 %1746
      %1749 = vset.pattern.permute.xlu0 2
      %1750 = vperm.xlu0 %1749, %v1233
      %v1751 = vpop.permute.xlu0 %1750
      %1753 = vset.pattern.permute.xlu0 2
      %1754 = vperm.xlu0 %1753, %v1234
      %v1755 = vpop.permute.xlu0 %1754
      %1757 = vset.pattern.permute.xlu0 2
      %1758 = vperm.xlu0 %1757, %v1235
      %v1759 = vpop.permute.xlu0 %1758
      %1761 = vset.pattern.permute.xlu0 2
      %1762 = vperm.xlu0 %1761, %v1236
      %v1763 = vpop.permute.xlu0 %1762
      %1765 = vset.pattern.permute.xlu0 2
      %1766 = vperm.xlu0 %1765, %v1237
      %v1767 = vpop.permute.xlu0 %1766
      %1769 = vset.pattern.permute.xlu0 2
      %1770 = vperm.xlu0 %1769, %v1238
      %v1771 = vpop.permute.xlu0 %1770
      %1773 = vset.pattern.permute.xlu0 2
      %1774 = vperm.xlu0 %1773, %v1239
      %v1775 = vpop.permute.xlu0 %1774
      %1777 = vset.pattern.permute.xlu0 2
      %1778 = vperm.xlu0 %1777, %v1240
      %v1779 = vpop.permute.xlu0 %1778
      %1781 = vset.pattern.permute.xlu0 2
      %1782 = vperm.xlu0 %1781, %v1241
      %v1783 = vpop.permute.xlu0 %1782
      %1785 = vset.pattern.permute.xlu0 2
      %1786 = vperm.xlu0 %1785, %v1242
      %v1787 = vpop.permute.xlu0 %1786
      %1789 = vset.pattern.permute.xlu0 2
      %1790 = vperm.xlu0 %1789, %v1243
      %v1791 = vpop.permute.xlu0 %1790
      %1793 = vset.pattern.permute.xlu0 2
      %1794 = vperm.xlu0 %1793, %v1244
      %v1795 = vpop.permute.xlu0 %1794
      %1797 = vset.pattern.permute.xlu0 2
      %1798 = vperm.xlu0 %1797, %v1245
      %v1799 = vpop.permute.xlu0 %1798
      %1801 = vset.pattern.permute.xlu0 2
      %1802 = vperm.xlu0 %1801, %v1246
      %v1803 = vpop.permute.xlu0 %1802
      %1805 = vset.pattern.permute.xlu0 2
      %1806 = vperm.xlu0 %1805, %v1247
      %v1807 = vpop.permute.xlu0 %1806
      %1809 = vset.pattern.permute.xlu0 2
      %1810 = vperm.xlu0 %1809, %v1248
      %v1811 = vpop.permute.xlu0 %1810
      %1813 = vset.pattern.permute.xlu0 2
      %1814 = vperm.xlu0 %1813, %v1249
      %v1815 = vpop.permute.xlu0 %1814
      %1817 = vset.pattern.permute.xlu0 2
      %1818 = vperm.xlu0 %1817, %v1250
      %v1819 = vpop.permute.xlu0 %1818
      %1821 = vset.pattern.permute.xlu0 2
      %1822 = vperm.xlu0 %1821, %v1251
      %v1823 = vpop.permute.xlu0 %1822
      %1825 = vset.pattern.permute.xlu0 2
      %1826 = vperm.xlu0 %1825, %v1252
      %v1827 = vpop.permute.xlu0 %1826
      %v1829 = vmul.f32 %v1703, %v1669
      %v1830 = vmul.f32 %v1707, %v1670
      %v1831 = vmul.f32 %v1711, %v1671
      %v1832 = vmul.f32 %v1715, %v1672
      %v1833 = vmul.f32 %v1719, %v1673
      %v1834 = vmul.f32 %v1723, %v1674
      %v1835 = vmul.f32 %v1727, %v1675
      %v1836 = vmul.f32 %v1731, %v1676
      %v1837 = vmul.f32 %v1735, %v1677
      %v1838 = vmul.f32 %v1739, %v1678
      %v1839 = vmul.f32 %v1743, %v1679
      %v1840 = vmul.f32 %v1747, %v1680
      %v1841 = vmul.f32 %v1751, %v1681
      %v1842 = vmul.f32 %v1755, %v1682
      %v1843 = vmul.f32 %v1759, %v1683
      %v1844 = vmul.f32 %v1763, %v1684
      %v1845 = vmul.f32 %v1767, %v1685
      %v1846 = vmul.f32 %v1771, %v1686
      %v1847 = vmul.f32 %v1775, %v1687
      %v1848 = vmul.f32 %v1779, %v1688
      %v1849 = vmul.f32 %v1783, %v1689
      %v1850 = vmul.f32 %v1787, %v1690
      %v1851 = vmul.f32 %v1791, %v1691
      %v1852 = vmul.f32 %v1795, %v1692
      %v1853 = vmul.f32 %v1799, %v1693
      %v1854 = vmul.f32 %v1803, %v1694
      %v1855 = vmul.f32 %v1807, %v1695
      %v1856 = vmul.f32 %v1811, %v1696
      %v1857 = vmul.f32 %v1815, %v1697
      %v1858 = vmul.f32 %v1819, %v1698
      %v1859 = vmul.f32 %v1823, %v1699
      %v1860 = vmul.f32 %v1827, %v1700
      %1861 = vset.pattern.permute.xlu0 3
      %1862 = vperm.xlu0 %1861, %v1221
      %v1863 = vpop.permute.xlu0 %1862
      %1865 = vset.pattern.permute.xlu0 3
      %1866 = vperm.xlu0 %1865, %v1222
      %v1867 = vpop.permute.xlu0 %1866
      %1869 = vset.pattern.permute.xlu0 3
      %1870 = vperm.xlu0 %1869, %v1223
      %v1871 = vpop.permute.xlu0 %1870
      %1873 = vset.pattern.permute.xlu0 3
      %1874 = vperm.xlu0 %1873, %v1224
      %v1875 = vpop.permute.xlu0 %1874
      %1877 = vset.pattern.permute.xlu0 3
      %1878 = vperm.xlu0 %1877, %v1225
      %v1879 = vpop.permute.xlu0 %1878
      %1881 = vset.pattern.permute.xlu0 3
      %1882 = vperm.xlu0 %1881, %v1226
      %v1883 = vpop.permute.xlu0 %1882
      %1885 = vset.pattern.permute.xlu0 3
      %1886 = vperm.xlu0 %1885, %v1227
      %v1887 = vpop.permute.xlu0 %1886
      %1889 = vset.pattern.permute.xlu0 3
      %1890 = vperm.xlu0 %1889, %v1228
      %v1891 = vpop.permute.xlu0 %1890
      %1893 = vset.pattern.permute.xlu0 3
      %1894 = vperm.xlu0 %1893, %v1229
      %v1895 = vpop.permute.xlu0 %1894
      %1897 = vset.pattern.permute.xlu0 3
      %1898 = vperm.xlu0 %1897, %v1230
      %v1899 = vpop.permute.xlu0 %1898
      %1901 = vset.pattern.permute.xlu0 3
      %1902 = vperm.xlu0 %1901, %v1231
      %v1903 = vpop.permute.xlu0 %1902
      %1905 = vset.pattern.permute.xlu0 3
      %1906 = vperm.xlu0 %1905, %v1232
      %v1907 = vpop.permute.xlu0 %1906
      %1909 = vset.pattern.permute.xlu0 3
      %1910 = vperm.xlu0 %1909, %v1233
      %v1911 = vpop.permute.xlu0 %1910
      %1913 = vset.pattern.permute.xlu0 3
      %1914 = vperm.xlu0 %1913, %v1234
      %v1915 = vpop.permute.xlu0 %1914
      %1917 = vset.pattern.permute.xlu0 3
      %1918 = vperm.xlu0 %1917, %v1235
      %v1919 = vpop.permute.xlu0 %1918
      %1921 = vset.pattern.permute.xlu0 3
      %1922 = vperm.xlu0 %1921, %v1236
      %v1923 = vpop.permute.xlu0 %1922
      %1925 = vset.pattern.permute.xlu0 3
      %1926 = vperm.xlu0 %1925, %v1237
      %v1927 = vpop.permute.xlu0 %1926
      %1929 = vset.pattern.permute.xlu0 3
      %1930 = vperm.xlu0 %1929, %v1238
      %v1931 = vpop.permute.xlu0 %1930
      %1933 = vset.pattern.permute.xlu0 3
      %1934 = vperm.xlu0 %1933, %v1239
      %v1935 = vpop.permute.xlu0 %1934
      %1937 = vset.pattern.permute.xlu0 3
      %1938 = vperm.xlu0 %1937, %v1240
      %v1939 = vpop.permute.xlu0 %1938
      %1941 = vset.pattern.permute.xlu0 3
      %1942 = vperm.xlu0 %1941, %v1241
      %v1943 = vpop.permute.xlu0 %1942
      %1945 = vset.pattern.permute.xlu0 3
      %1946 = vperm.xlu0 %1945, %v1242
      %v1947 = vpop.permute.xlu0 %1946
      %1949 = vset.pattern.permute.xlu0 3
      %1950 = vperm.xlu0 %1949, %v1243
      %v1951 = vpop.permute.xlu0 %1950
      %1953 = vset.pattern.permute.xlu0 3
      %1954 = vperm.xlu0 %1953, %v1244
      %v1955 = vpop.permute.xlu0 %1954
      %1957 = vset.pattern.permute.xlu0 3
      %1958 = vperm.xlu0 %1957, %v1245
      %v1959 = vpop.permute.xlu0 %1958
      %1961 = vset.pattern.permute.xlu0 3
      %1962 = vperm.xlu0 %1961, %v1246
      %v1963 = vpop.permute.xlu0 %1962
      %1965 = vset.pattern.permute.xlu0 3
      %1966 = vperm.xlu0 %1965, %v1247
      %v1967 = vpop.permute.xlu0 %1966
      %1969 = vset.pattern.permute.xlu0 3
      %1970 = vperm.xlu0 %1969, %v1248
      %v1971 = vpop.permute.xlu0 %1970
      %1973 = vset.pattern.permute.xlu0 3
      %1974 = vperm.xlu0 %1973, %v1249
      %v1975 = vpop.permute.xlu0 %1974
      %1977 = vset.pattern.permute.xlu0 3
      %1978 = vperm.xlu0 %1977, %v1250
      %v1979 = vpop.permute.xlu0 %1978
      %1981 = vset.pattern.permute.xlu0 3
      %1982 = vperm.xlu0 %1981, %v1251
      %v1983 = vpop.permute.xlu0 %1982
      %1985 = vset.pattern.permute.xlu0 3
      %1986 = vperm.xlu0 %1985, %v1252
      %v1987 = vpop.permute.xlu0 %1986
      %v1989 = vmul.f32 %v1863, %v1189
      %v1990 = vmul.f32 %v1867, %v1190
      %v1991 = vmul.f32 %v1871, %v1191
      %v1992 = vmul.f32 %v1875, %v1192
      %v1993 = vmul.f32 %v1879, %v1193
      %v1994 = vmul.f32 %v1883, %v1194
      %v1995 = vmul.f32 %v1887, %v1195
      %v1996 = vmul.f32 %v1891, %v1196
      %v1997 = vmul.f32 %v1895, %v1197
      %v1998 = vmul.f32 %v1899, %v1198
      %v1999 = vmul.f32 %v1903, %v1199
      %v2000 = vmul.f32 %v1907, %v1200
      %v2001 = vmul.f32 %v1911, %v1201
      %v2002 = vmul.f32 %v1915, %v1202
      %v2003 = vmul.f32 %v1919, %v1203
      %v2004 = vmul.f32 %v1923, %v1204
      %v2005 = vmul.f32 %v1927, %v1205
      %v2006 = vmul.f32 %v1931, %v1206
      %v2007 = vmul.f32 %v1935, %v1207
      %v2008 = vmul.f32 %v1939, %v1208
      %v2009 = vmul.f32 %v1943, %v1209
      %v2010 = vmul.f32 %v1947, %v1210
      %v2011 = vmul.f32 %v1951, %v1211
      %v2012 = vmul.f32 %v1955, %v1212
      %v2013 = vmul.f32 %v1959, %v1213
      %v2014 = vmul.f32 %v1963, %v1214
      %v2015 = vmul.f32 %v1967, %v1215
      %v2016 = vmul.f32 %v1971, %v1216
      %v2017 = vmul.f32 %v1975, %v1217
      %v2018 = vmul.f32 %v1979, %v1218
      %v2019 = vmul.f32 %v1983, %v1219
      %v2020 = vmul.f32 %v1987, %v1220
      %v2021 = vadd.f32 %v1829, %v1989
      %v2022 = vadd.f32 %v1830, %v1990
      %v2023 = vadd.f32 %v1831, %v1991
      %v2024 = vadd.f32 %v1832, %v1992
      %v2025 = vadd.f32 %v1833, %v1993
      %v2026 = vadd.f32 %v1834, %v1994
      %v2027 = vadd.f32 %v1835, %v1995
      %v2028 = vadd.f32 %v1836, %v1996
      %v2029 = vadd.f32 %v1837, %v1997
      %v2030 = vadd.f32 %v1838, %v1998
      %v2031 = vadd.f32 %v1839, %v1999
      %v2032 = vadd.f32 %v1840, %v2000
      %v2033 = vadd.f32 %v1841, %v2001
      %v2034 = vadd.f32 %v1842, %v2002
      %v2035 = vadd.f32 %v1843, %v2003
      %v2036 = vadd.f32 %v1844, %v2004
      %v2037 = vadd.f32 %v1845, %v2005
      %v2038 = vadd.f32 %v1846, %v2006
      %v2039 = vadd.f32 %v1847, %v2007
      %v2040 = vadd.f32 %v1848, %v2008
      %v2041 = vadd.f32 %v1849, %v2009
      %v2042 = vadd.f32 %v1850, %v2010
      %v2043 = vadd.f32 %v1851, %v2011
      %v2044 = vadd.f32 %v1852, %v2012
      %v2045 = vadd.f32 %v1853, %v2013
      %v2046 = vadd.f32 %v1854, %v2014
      %v2047 = vadd.f32 %v1855, %v2015
      %v2048 = vadd.f32 %v1856, %v2016
      %v2049 = vadd.f32 %v1857, %v2017
      %v2050 = vadd.f32 %v1858, %v2018
      %v2051 = vadd.f32 %v1859, %v2019
      %v2052 = vadd.f32 %v1860, %v2020
      %v2053 = vld [vmem:[%s4] sm:$0xff]
      %v2054 = vld [vmem:[%s5] sm:$0xff]
      %v2056 = vsel %vm667, %v2021, 0
      %v2059 = vsel %vm667, %v2022, 0
      %v2062 = vsel %vm667, %v2023, 0
      %v2065 = vsel %vm667, %v2024, 0
      %v2068 = vsel %vm667, %v2025, 0
      %v2071 = vsel %vm667, %v2026, 0
      %v2074 = vsel %vm667, %v2027, 0
      %v2077 = vsel %vm667, %v2028, 0
      %v2080 = vsel %vm667, %v2029, 0
      %v2083 = vsel %vm667, %v2030, 0
      %v2086 = vsel %vm667, %v2031, 0
      %v2089 = vsel %vm667, %v2032, 0
      %v2092 = vsel %vm667, %v2033, 0
      %v2095 = vsel %vm667, %v2034, 0
      %v2098 = vsel %vm667, %v2035, 0
      %v2101 = vsel %vm667, %v2036, 0
      %v2104 = vsel %vm667, %v2037, 0
      %v2107 = vsel %vm667, %v2038, 0
      %v2110 = vsel %vm667, %v2039, 0
      %v2113 = vsel %vm667, %v2040, 0
      %v2116 = vsel %vm667, %v2041, 0
      %v2119 = vsel %vm667, %v2042, 0
      %v2122 = vsel %vm667, %v2043, 0
      %v2125 = vsel %vm667, %v2044, 0
      %v2128 = vsel %vm667, %v2045, 0
      %v2131 = vsel %vm667, %v2046, 0
      %v2134 = vsel %vm667, %v2047, 0
      %v2137 = vsel %vm667, %v2048, 0
      %v2140 = vsel %vm667, %v2049, 0
      %v2143 = vsel %vm667, %v2050, 0
      %v2146 = vsel %vm667, %v2051, 0
      %v2149 = vsel %vm667, %v2052, 0
      %2151 = vmatprep.subr.mxu0 0.0
      %2152 = vmatpush1.msra.mxu0 %v2054
      %2153 = vmatprep.subr.mxu0 0.0
      %2154 = vmatpush1.msra.mxu0 0.0
      %2155 = vmatprep.subr.mxu0 0.0
      %2156 = vmatpush1.msra.mxu0 0.0
      %2157 = vmatprep.subr.mxu0 0.0
      %2158 = vmatpush1.msra.mxu0 0.0
      %2159 = vmatprep.subr.mxu0 0.0
      %2160 = vmatpush1.msra.mxu0 0.0
      %2161 = vmatprep.subr.mxu0 0.0
      %2162 = vmatpush1.msra.mxu0 0.0
      %2163 = vmatprep.subr.mxu0 0.0
      %2164 = vmatpush1.msra.mxu0 0.0
      %2165 = vmatprep.subr.mxu0 0.0
      %2166 = vmatpush1.msra.mxu0 0.0
      %2167 = vmatprep.subr.mxu0 0.0
      %2168 = vmatpush1.msra.mxu0 0.0
      %2169 = vmatprep.subr.mxu0 0.0
      %2170 = vmatpush1.msra.mxu0 0.0
      %2171 = vmatprep.subr.mxu0 0.0
      %2172 = vmatpush1.msra.mxu0 0.0
      %2173 = vmatprep.subr.mxu0 0.0
      %2174 = vmatpush1.msra.mxu0 0.0
      %2175 = vmatprep.subr.mxu0 0.0
      %2176 = vmatpush1.msra.mxu0 0.0
      %2177 = vmatprep.subr.mxu0 0.0
      %2178 = vmatpush1.msra.mxu0 0.0
      %2179 = vmatprep.subr.mxu0 0.0
      %2180 = vmatpush1.msra.mxu0 0.0
      %2181 = vmatprep.subr.mxu0 0.0
      %2182 = vmatpush1.msra.mxu0 0.0
      %2183 = vmatprep.subr.mxu0 0.0
      %2184 = vmatpush1.msra.mxu0 0.0
      %2185 = vmatprep.subr.mxu0 0.0
      %2186 = vmatpush1.msra.mxu0 0.0
      %2187 = vmatprep.subr.mxu0 0.0
      %2188 = vmatpush1.msra.mxu0 0.0
      %2189 = vmatprep.subr.mxu0 0.0
      %2190 = vmatpush1.msra.mxu0 0.0
      %2191 = vmatprep.subr.mxu0 0.0
      %2192 = vmatpush1.msra.mxu0 0.0
      %2193 = vmatprep.subr.mxu0 0.0
      %2194 = vmatpush1.msra.mxu0 0.0
      %2195 = vmatprep.subr.mxu0 0.0
      %2196 = vmatpush1.msra.mxu0 0.0
      %2197 = vmatprep.subr.mxu0 0.0
      %2198 = vmatpush1.msra.mxu0 0.0
      %2199 = vmatprep.subr.mxu0 0.0
      %2200 = vmatpush1.msra.mxu0 0.0
      %2201 = vmatprep.subr.mxu0 0.0
      %2202 = vmatpush1.msra.mxu0 0.0
      %2203 = vmatprep.subr.mxu0 0.0
      %2204 = vmatpush1.msra.mxu0 0.0
      %2205 = vmatprep.subr.mxu0 0.0
      %2206 = vmatpush1.msra.mxu0 0.0
      %2207 = vmatprep.subr.mxu0 0.0
      %2208 = vmatpush1.msra.mxu0 0.0
      %2209 = vmatprep.subr.mxu0 0.0
      %2210 = vmatpush1.msra.mxu0 0.0
      %2211 = vmatprep.subr.mxu0 0.0
      %2212 = vmatpush1.msra.mxu0 0.0
      %2213 = vmatprep.subr.mxu0 0.0
      %2214 = vmatpush1.msra.mxu0 0.0
      %2215 = vmatprep.mubr.f32.mxu0 0.0
      %2216 = vmatmul.mubr.f32.gmra.mrb[0].mxu0 %v2056
      %v2217 = vpop.f32.mrb[0].mxu0
      %v2218 = vadd.f32 0.0, %v2217
      %v2219 = vpop.f32.mrb[0].mxu0
      %2220 = vmatprep.mubr.f32.mxu0 0.0
      %2221 = vmatmul.mubr.f32.gmra.mrb[0].mxu0 %v2059
      %v2222 = vpop.f32.mrb[0].mxu0
      %v2223 = vadd.f32 0.0, %v2222
      %v2224 = vpop.f32.mrb[0].mxu0
      %2225 = vmatprep.mubr.f32.mxu0 0.0
      %2226 = vmatmul.mubr.f32.gmra.mrb[0].mxu0 %v2062
      %v2227 = vpop.f32.mrb[0].mxu0
      %v2228 = vadd.f32 0.0, %v2227
      %v2229 = vpop.f32.mrb[0].mxu0
      %2230 = vmatprep.mubr.f32.mxu0 0.0
      %2231 = vmatmul.mubr.f32.gmra.mrb[0].mxu0 %v2065
      %v2232 = vpop.f32.mrb[0].mxu0
      %v2233 = vadd.f32 0.0, %v2232
      %v2234 = vpop.f32.mrb[0].mxu0
      %2235 = vmatprep.mubr.f32.mxu0 0.0
      %2236 = vmatmul.mubr.f32.gmra.mrb[0].mxu0 %v2068
      %v2237 = vpop.f32.mrb[0].mxu0
      %v2238 = vadd.f32 0.0, %v2237
      %v2239 = vpop.f32.mrb[0].mxu0
      %2240 = vmatprep.mubr.f32.mxu0 0.0
      %2241 = vmatmul.mubr.f32.gmra.mrb[0].mxu0 %v2071
      %v2242 = vpop.f32.mrb[0].mxu0
      %v2243 = vadd.f32 0.0, %v2242
      %v2244 = vpop.f32.mrb[0].mxu0
      %2245 = vmatprep.mubr.f32.mxu0 0.0
      %2246 = vmatmul.mubr.f32.gmra.mrb[0].mxu0 %v2074
      %v2247 = vpop.f32.mrb[0].mxu0
      %v2248 = vadd.f32 0.0, %v2247
      %v2249 = vpop.f32.mrb[0].mxu0
      %2250 = vmatprep.mubr.f32.mxu0 0.0
      %2251 = vmatmul.mubr.f32.gmra.mrb[0].mxu0 %v2077
      %v2252 = vpop.f32.mrb[0].mxu0
      %v2253 = vadd.f32 0.0, %v2252
      %v2254 = vpop.f32.mrb[0].mxu0
      %2255 = vmatprep.mubr.f32.mxu0 0.0
      %2256 = vmatmul.mubr.f32.gmra.mrb[0].mxu0 %v2080
      %v2257 = vpop.f32.mrb[0].mxu0
      %v2258 = vadd.f32 0.0, %v2257
      %v2259 = vpop.f32.mrb[0].mxu0
      %2260 = vmatprep.mubr.f32.mxu0 0.0
      %2261 = vmatmul.mubr.f32.gmra.mrb[0].mxu0 %v2083
      %v2262 = vpop.f32.mrb[0].mxu0
      %v2263 = vadd.f32 0.0, %v2262
      %v2264 = vpop.f32.mrb[0].mxu0
      %2265 = vmatprep.mubr.f32.mxu0 0.0
      %2266 = vmatmul.mubr.f32.gmra.mrb[0].mxu0 %v2086
      %v2267 = vpop.f32.mrb[0].mxu0
      %v2268 = vadd.f32 0.0, %v2267
      %v2269 = vpop.f32.mrb[0].mxu0
      %2270 = vmatprep.mubr.f32.mxu0 0.0
      %2271 = vmatmul.mubr.f32.gmra.mrb[0].mxu0 %v2089
      %v2272 = vpop.f32.mrb[0].mxu0
      %v2273 = vadd.f32 0.0, %v2272
      %v2274 = vpop.f32.mrb[0].mxu0
      %2275 = vmatprep.mubr.f32.mxu0 0.0
      %2276 = vmatmul.mubr.f32.gmra.mrb[0].mxu0 %v2092
      %v2277 = vpop.f32.mrb[0].mxu0
      %v2278 = vadd.f32 0.0, %v2277
      %v2279 = vpop.f32.mrb[0].mxu0
      %2280 = vmatprep.mubr.f32.mxu0 0.0
      %2281 = vmatmul.mubr.f32.gmra.mrb[0].mxu0 %v2095
      %v2282 = vpop.f32.mrb[0].mxu0
      %v2283 = vadd.f32 0.0, %v2282
      %v2284 = vpop.f32.mrb[0].mxu0
      %2285 = vmatprep.mubr.f32.mxu0 0.0
      %2286 = vmatmul.mubr.f32.gmra.mrb[0].mxu0 %v2098
      %v2287 = vpop.f32.mrb[0].mxu0
      %v2288 = vadd.f32 0.0, %v2287
      %v2289 = vpop.f32.mrb[0].mxu0
      %2290 = vmatprep.mubr.f32.mxu0 0.0
      %2291 = vmatmul.mubr.f32.gmra.mrb[0].mxu0 %v2101
      %v2292 = vpop.f32.mrb[0].mxu0
      %v2293 = vadd.f32 0.0, %v2292
      %v2294 = vpop.f32.mrb[0].mxu0
      %2295 = vmatprep.mubr.f32.mxu0 0.0
      %2296 = vmatmul.mubr.f32.gmra.mrb[0].mxu0 %v2104
      %v2297 = vpop.f32.mrb[0].mxu0
      %v2298 = vadd.f32 0.0, %v2297
      %v2299 = vpop.f32.mrb[0].mxu0
      %2300 = vmatprep.mubr.f32.mxu0 0.0
      %2301 = vmatmul.mubr.f32.gmra.mrb[0].mxu0 %v2107
      %v2302 = vpop.f32.mrb[0].mxu0
      %v2303 = vadd.f32 0.0, %v2302
      %v2304 = vpop.f32.mrb[0].mxu0
      %2305 = vmatprep.mubr.f32.mxu0 0.0
      %2306 = vmatmul.mubr.f32.gmra.mrb[0].mxu0 %v2110
      %v2307 = vpop.f32.mrb[0].mxu0
      %v2308 = vadd.f32 0.0, %v2307
      %v2309 = vpop.f32.mrb[0].mxu0
      %2310 = vmatprep.mubr.f32.mxu0 0.0
      %2311 = vmatmul.mubr.f32.gmra.mrb[0].mxu0 %v2113
      %v2312 = vpop.f32.mrb[0].mxu0
      %v2313 = vadd.f32 0.0, %v2312
      %v2314 = vpop.f32.mrb[0].mxu0
      %2315 = vmatprep.mubr.f32.mxu0 0.0
      %2316 = vmatmul.mubr.f32.gmra.mrb[0].mxu0 %v2116
      %v2317 = vpop.f32.mrb[0].mxu0
      %v2318 = vadd.f32 0.0, %v2317
      %v2319 = vpop.f32.mrb[0].mxu0
      %2320 = vmatprep.mubr.f32.mxu0 0.0
      %2321 = vmatmul.mubr.f32.gmra.mrb[0].mxu0 %v2119
      %v2322 = vpop.f32.mrb[0].mxu0
      %v2323 = vadd.f32 0.0, %v2322
      %v2324 = vpop.f32.mrb[0].mxu0
      %2325 = vmatprep.mubr.f32.mxu0 0.0
      %2326 = vmatmul.mubr.f32.gmra.mrb[0].mxu0 %v2122
      %v2327 = vpop.f32.mrb[0].mxu0
      %v2328 = vadd.f32 0.0, %v2327
      %v2329 = vpop.f32.mrb[0].mxu0
      %2330 = vmatprep.mubr.f32.mxu0 0.0
      %2331 = vmatmul.mubr.f32.gmra.mrb[0].mxu0 %v2125
      %v2332 = vpop.f32.mrb[0].mxu0
      %v2333 = vadd.f32 0.0, %v2332
      %v2334 = vpop.f32.mrb[0].mxu0
      %2335 = vmatprep.mubr.f32.mxu0 0.0
      %2336 = vmatmul.mubr.f32.gmra.mrb[0].mxu0 %v2128
      %v2337 = vpop.f32.mrb[0].mxu0
      %v2338 = vadd.f32 0.0, %v2337
      %v2339 = vpop.f32.mrb[0].mxu0
      %2340 = vmatprep.mubr.f32.mxu0 0.0
      %2341 = vmatmul.mubr.f32.gmra.mrb[0].mxu0 %v2131
      %v2342 = vpop.f32.mrb[0].mxu0
      %v2343 = vadd.f32 0.0, %v2342
      %v2344 = vpop.f32.mrb[0].mxu0
      %2345 = vmatprep.mubr.f32.mxu0 0.0
      %2346 = vmatmul.mubr.f32.gmra.mrb[0].mxu0 %v2134
      %v2347 = vpop.f32.mrb[0].mxu0
      %v2348 = vadd.f32 0.0, %v2347
      %v2349 = vpop.f32.mrb[0].mxu0
      %2350 = vmatprep.mubr.f32.mxu0 0.0
      %2351 = vmatmul.mubr.f32.gmra.mrb[0].mxu0 %v2137
      %v2352 = vpop.f32.mrb[0].mxu0
      %v2353 = vadd.f32 0.0, %v2352
      %v2354 = vpop.f32.mrb[0].mxu0
      %2355 = vmatprep.mubr.f32.mxu0 0.0
      %2356 = vmatmul.mubr.f32.gmra.mrb[0].mxu0 %v2140
      %v2357 = vpop.f32.mrb[0].mxu0
      %v2358 = vadd.f32 0.0, %v2357
      %v2359 = vpop.f32.mrb[0].mxu0
      %2360 = vmatprep.mubr.f32.mxu0 0.0
      %2361 = vmatmul.mubr.f32.gmra.mrb[0].mxu0 %v2143
      %v2362 = vpop.f32.mrb[0].mxu0
      %v2363 = vadd.f32 0.0, %v2362
      %v2364 = vpop.f32.mrb[0].mxu0
      %2365 = vmatprep.mubr.f32.mxu0 0.0
      %2366 = vmatmul.mubr.f32.gmra.mrb[0].mxu0 %v2146
      %v2367 = vpop.f32.mrb[0].mxu0
      %v2368 = vadd.f32 0.0, %v2367
      %v2369 = vpop.f32.mrb[0].mxu0
      %2370 = vmatprep.mubr.f32.mxu0 0.0
      %2371 = vmatmul.mubr.f32.gmra.mrb[0].mxu0 %v2149
      %v2372 = vpop.f32.mrb[0].mxu0
      %v2373 = vadd.f32 0.0, %v2372
      %v2374 = vpop.f32.mrb[0].mxu0
      %2375 = vdwg.mxu0
      %v2377 = vsel %vm667, %v1637, 0
      %v2380 = vsel %vm667, %v1638, 0
      %v2383 = vsel %vm667, %v1639, 0
      %v2386 = vsel %vm667, %v1640, 0
      %v2389 = vsel %vm667, %v1641, 0
      %v2392 = vsel %vm667, %v1642, 0
      %v2395 = vsel %vm667, %v1643, 0
      %v2398 = vsel %vm667, %v1644, 0
      %v2401 = vsel %vm667, %v1645, 0
      %v2404 = vsel %vm667, %v1646, 0
      %v2407 = vsel %vm667, %v1647, 0
      %v2410 = vsel %vm667, %v1648, 0
      %v2413 = vsel %vm667, %v1649, 0
      %v2416 = vsel %vm667, %v1650, 0
      %v2419 = vsel %vm667, %v1651, 0
      %v2422 = vsel %vm667, %v1652, 0
      %v2425 = vsel %vm667, %v1653, 0
      %v2428 = vsel %vm667, %v1654, 0
      %v2431 = vsel %vm667, %v1655, 0
      %v2434 = vsel %vm667, %v1656, 0
      %v2437 = vsel %vm667, %v1657, 0
      %v2440 = vsel %vm667, %v1658, 0
      %v2443 = vsel %vm667, %v1659, 0
      %v2446 = vsel %vm667, %v1660, 0
      %v2449 = vsel %vm667, %v1661, 0
      %v2452 = vsel %vm667, %v1662, 0
      %v2455 = vsel %vm667, %v1663, 0
      %v2458 = vsel %vm667, %v1664, 0
      %v2461 = vsel %vm667, %v1665, 0
      %v2464 = vsel %vm667, %v1666, 0
      %v2467 = vsel %vm667, %v1667, 0
      %v2470 = vsel %vm667, %v1668, 0
      %2472 = vmatprep.subr.mxu0 0.0
      %2473 = vmatpush1.msra.mxu0 %v2053
      %2474 = vmatprep.subr.mxu0 0.0
      %2475 = vmatpush1.msra.mxu0 0.0
      %2476 = vmatprep.subr.mxu0 0.0
      %2477 = vmatpush1.msra.mxu0 0.0
      %2478 = vmatprep.subr.mxu0 0.0
      %2479 = vmatpush1.msra.mxu0 0.0
      %2480 = vmatprep.subr.mxu0 0.0
      %2481 = vmatpush1.msra.mxu0 0.0
      %2482 = vmatprep.subr.mxu0 0.0
      %2483 = vmatpush1.msra.mxu0 0.0
      %2484 = vmatprep.subr.mxu0 0.0
      %2485 = vmatpush1.msra.mxu0 0.0
      %2486 = vmatprep.subr.mxu0 0.0
      %2487 = vmatpush1.msra.mxu0 0.0
      %2488 = vmatprep.subr.mxu0 0.0
      %2489 = vmatpush1.msra.mxu0 0.0
      %2490 = vmatprep.subr.mxu0 0.0
      %2491 = vmatpush1.msra.mxu0 0.0
      %2492 = vmatprep.subr.mxu0 0.0
      %2493 = vmatpush1.msra.mxu0 0.0
      %2494 = vmatprep.subr.mxu0 0.0
      %2495 = vmatpush1.msra.mxu0 0.0
      %2496 = vmatprep.subr.mxu0 0.0
      %2497 = vmatpush1.msra.mxu0 0.0
      %2498 = vmatprep.subr.mxu0 0.0
      %2499 = vmatpush1.msra.mxu0 0.0
      %2500 = vmatprep.subr.mxu0 0.0
      %2501 = vmatpush1.msra.mxu0 0.0
      %2502 = vmatprep.subr.mxu0 0.0
      %2503 = vmatpush1.msra.mxu0 0.0
      %2504 = vmatprep.subr.mxu0 0.0
      %2505 = vmatpush1.msra.mxu0 0.0
      %2506 = vmatprep.subr.mxu0 0.0
      %2507 = vmatpush1.msra.mxu0 0.0
      %2508 = vmatprep.subr.mxu0 0.0
      %2509 = vmatpush1.msra.mxu0 0.0
      %2510 = vmatprep.subr.mxu0 0.0
      %2511 = vmatpush1.msra.mxu0 0.0
      %2512 = vmatprep.subr.mxu0 0.0
      %2513 = vmatpush1.msra.mxu0 0.0
      %2514 = vmatprep.subr.mxu0 0.0
      %2515 = vmatpush1.msra.mxu0 0.0
      %2516 = vmatprep.subr.mxu0 0.0
      %2517 = vmatpush1.msra.mxu0 0.0
      %2518 = vmatprep.subr.mxu0 0.0
      %2519 = vmatpush1.msra.mxu0 0.0
      %2520 = vmatprep.subr.mxu0 0.0
      %2521 = vmatpush1.msra.mxu0 0.0
      %2522 = vmatprep.subr.mxu0 0.0
      %2523 = vmatpush1.msra.mxu0 0.0
      %2524 = vmatprep.subr.mxu0 0.0
      %2525 = vmatpush1.msra.mxu0 0.0
      %2526 = vmatprep.subr.mxu0 0.0
      %2527 = vmatpush1.msra.mxu0 0.0
      %2528 = vmatprep.subr.mxu0 0.0
      %2529 = vmatpush1.msra.mxu0 0.0
      %2530 = vmatprep.subr.mxu0 0.0
      %2531 = vmatpush1.msra.mxu0 0.0
      %2532 = vmatprep.subr.mxu0 0.0
      %2533 = vmatpush1.msra.mxu0 0.0
      %2534 = vmatprep.subr.mxu0 0.0
      %2535 = vmatpush1.msra.mxu0 0.0
      %2536 = vmatprep.mubr.f32.mxu0 0.0
      %2537 = vmatmul.mubr.f32.gmra.mrb[0].mxu0 %v2377
      %v2538 = vpop.f32.mrb[0].mxu0
      %v2539 = vadd.f32 %v2218, %v2538
      %v2540 = vpop.f32.mrb[0].mxu0
      %2541 = vmatprep.mubr.f32.mxu0 0.0
      %2542 = vmatmul.mubr.f32.gmra.mrb[0].mxu0 %v2380
      %v2543 = vpop.f32.mrb[0].mxu0
      %v2544 = vadd.f32 %v2223, %v2543
      %v2545 = vpop.f32.mrb[0].mxu0
      %2546 = vmatprep.mubr.f32.mxu0 0.0
      %2547 = vmatmul.mubr.f32.gmra.mrb[0].mxu0 %v2383
      %v2548 = vpop.f32.mrb[0].mxu0
      %v2549 = vadd.f32 %v2228, %v2548
      %v2550 = vpop.f32.mrb[0].mxu0
      %2551 = vmatprep.mubr.f32.mxu0 0.0
      %2552 = vmatmul.mubr.f32.gmra.mrb[0].mxu0 %v2386
      %v2553 = vpop.f32.mrb[0].mxu0
      %v2554 = vadd.f32 %v2233, %v2553
      %v2555 = vpop.f32.mrb[0].mxu0
      %2556 = vmatprep.mubr.f32.mxu0 0.0
      %2557 = vmatmul.mubr.f32.gmra.mrb[0].mxu0 %v2389
      %v2558 = vpop.f32.mrb[0].mxu0
      %v2559 = vadd.f32 %v2238, %v2558
      %v2560 = vpop.f32.mrb[0].mxu0
      %2561 = vmatprep.mubr.f32.mxu0 0.0
      %2562 = vmatmul.mubr.f32.gmra.mrb[0].mxu0 %v2392
      %v2563 = vpop.f32.mrb[0].mxu0
      %v2564 = vadd.f32 %v2243, %v2563
      %v2565 = vpop.f32.mrb[0].mxu0
      %2566 = vmatprep.mubr.f32.mxu0 0.0
      %2567 = vmatmul.mubr.f32.gmra.mrb[0].mxu0 %v2395
      %v2568 = vpop.f32.mrb[0].mxu0
      %v2569 = vadd.f32 %v2248, %v2568
      %v2570 = vpop.f32.mrb[0].mxu0
      %2571 = vmatprep.mubr.f32.mxu0 0.0
      %2572 = vmatmul.mubr.f32.gmra.mrb[0].mxu0 %v2398
      %v2573 = vpop.f32.mrb[0].mxu0
      %v2574 = vadd.f32 %v2253, %v2573
      %v2575 = vpop.f32.mrb[0].mxu0
      %2576 = vmatprep.mubr.f32.mxu0 0.0
      %2577 = vmatmul.mubr.f32.gmra.mrb[0].mxu0 %v2401
      %v2578 = vpop.f32.mrb[0].mxu0
      %v2579 = vadd.f32 %v2258, %v2578
      %v2580 = vpop.f32.mrb[0].mxu0
      %2581 = vmatprep.mubr.f32.mxu0 0.0
      %2582 = vmatmul.mubr.f32.gmra.mrb[0].mxu0 %v2404
      %v2583 = vpop.f32.mrb[0].mxu0
      %v2584 = vadd.f32 %v2263, %v2583
      %v2585 = vpop.f32.mrb[0].mxu0
      %2586 = vmatprep.mubr.f32.mxu0 0.0
      %2587 = vmatmul.mubr.f32.gmra.mrb[0].mxu0 %v2407
      %v2588 = vpop.f32.mrb[0].mxu0
      %v2589 = vadd.f32 %v2268, %v2588
      %v2590 = vpop.f32.mrb[0].mxu0
      %2591 = vmatprep.mubr.f32.mxu0 0.0
      %2592 = vmatmul.mubr.f32.gmra.mrb[0].mxu0 %v2410
      %v2593 = vpop.f32.mrb[0].mxu0
      %v2594 = vadd.f32 %v2273, %v2593
      %v2595 = vpop.f32.mrb[0].mxu0
      %2596 = vmatprep.mubr.f32.mxu0 0.0
      %2597 = vmatmul.mubr.f32.gmra.mrb[0].mxu0 %v2413
      %v2598 = vpop.f32.mrb[0].mxu0
      %v2599 = vadd.f32 %v2278, %v2598
      %v2600 = vpop.f32.mrb[0].mxu0
      %2601 = vmatprep.mubr.f32.mxu0 0.0
      %2602 = vmatmul.mubr.f32.gmra.mrb[0].mxu0 %v2416
      %v2603 = vpop.f32.mrb[0].mxu0
      %v2604 = vadd.f32 %v2283, %v2603
      %v2605 = vpop.f32.mrb[0].mxu0
      %2606 = vmatprep.mubr.f32.mxu0 0.0
      %2607 = vmatmul.mubr.f32.gmra.mrb[0].mxu0 %v2419
      %v2608 = vpop.f32.mrb[0].mxu0
      %v2609 = vadd.f32 %v2288, %v2608
      %v2610 = vpop.f32.mrb[0].mxu0
      %2611 = vmatprep.mubr.f32.mxu0 0.0
      %2612 = vmatmul.mubr.f32.gmra.mrb[0].mxu0 %v2422
      %v2613 = vpop.f32.mrb[0].mxu0
      %v2614 = vadd.f32 %v2293, %v2613
      %v2615 = vpop.f32.mrb[0].mxu0
      %2616 = vmatprep.mubr.f32.mxu0 0.0
      %2617 = vmatmul.mubr.f32.gmra.mrb[0].mxu0 %v2425
      %v2618 = vpop.f32.mrb[0].mxu0
      %v2619 = vadd.f32 %v2298, %v2618
      %v2620 = vpop.f32.mrb[0].mxu0
      %2621 = vmatprep.mubr.f32.mxu0 0.0
      %2622 = vmatmul.mubr.f32.gmra.mrb[0].mxu0 %v2428
      %v2623 = vpop.f32.mrb[0].mxu0
      %v2624 = vadd.f32 %v2303, %v2623
      %v2625 = vpop.f32.mrb[0].mxu0
      %2626 = vmatprep.mubr.f32.mxu0 0.0
      %2627 = vmatmul.mubr.f32.gmra.mrb[0].mxu0 %v2431
      %v2628 = vpop.f32.mrb[0].mxu0
      %v2629 = vadd.f32 %v2308, %v2628
      %v2630 = vpop.f32.mrb[0].mxu0
      %2631 = vmatprep.mubr.f32.mxu0 0.0
      %2632 = vmatmul.mubr.f32.gmra.mrb[0].mxu0 %v2434
      %v2633 = vpop.f32.mrb[0].mxu0
      %v2634 = vadd.f32 %v2313, %v2633
      %v2635 = vpop.f32.mrb[0].mxu0
      %2636 = vmatprep.mubr.f32.mxu0 0.0
      %2637 = vmatmul.mubr.f32.gmra.mrb[0].mxu0 %v2437
      %v2638 = vpop.f32.mrb[0].mxu0
      %v2639 = vadd.f32 %v2318, %v2638
      %v2640 = vpop.f32.mrb[0].mxu0
      %2641 = vmatprep.mubr.f32.mxu0 0.0
      %2642 = vmatmul.mubr.f32.gmra.mrb[0].mxu0 %v2440
      %v2643 = vpop.f32.mrb[0].mxu0
      %v2644 = vadd.f32 %v2323, %v2643
      %v2645 = vpop.f32.mrb[0].mxu0
      %2646 = vmatprep.mubr.f32.mxu0 0.0
      %2647 = vmatmul.mubr.f32.gmra.mrb[0].mxu0 %v2443
      %v2648 = vpop.f32.mrb[0].mxu0
      %v2649 = vadd.f32 %v2328, %v2648
      %v2650 = vpop.f32.mrb[0].mxu0
      %2651 = vmatprep.mubr.f32.mxu0 0.0
      %2652 = vmatmul.mubr.f32.gmra.mrb[0].mxu0 %v2446
      %v2653 = vpop.f32.mrb[0].mxu0
      %v2654 = vadd.f32 %v2333, %v2653
      %v2655 = vpop.f32.mrb[0].mxu0
      %2656 = vmatprep.mubr.f32.mxu0 0.0
      %2657 = vmatmul.mubr.f32.gmra.mrb[0].mxu0 %v2449
      %v2658 = vpop.f32.mrb[0].mxu0
      %v2659 = vadd.f32 %v2338, %v2658
      %v2660 = vpop.f32.mrb[0].mxu0
      %2661 = vmatprep.mubr.f32.mxu0 0.0
      %2662 = vmatmul.mubr.f32.gmra.mrb[0].mxu0 %v2452
      %v2663 = vpop.f32.mrb[0].mxu0
      %v2664 = vadd.f32 %v2343, %v2663
      %v2665 = vpop.f32.mrb[0].mxu0
      %2666 = vmatprep.mubr.f32.mxu0 0.0
      %2667 = vmatmul.mubr.f32.gmra.mrb[0].mxu0 %v2455
      %v2668 = vpop.f32.mrb[0].mxu0
      %v2669 = vadd.f32 %v2348, %v2668
      %v2670 = vpop.f32.mrb[0].mxu0
      %2671 = vmatprep.mubr.f32.mxu0 0.0
      %2672 = vmatmul.mubr.f32.gmra.mrb[0].mxu0 %v2458
      %v2673 = vpop.f32.mrb[0].mxu0
      %v2674 = vadd.f32 %v2353, %v2673
      %v2675 = vpop.f32.mrb[0].mxu0
      %2676 = vmatprep.mubr.f32.mxu0 0.0
      %2677 = vmatmul.mubr.f32.gmra.mrb[0].mxu0 %v2461
      %v2678 = vpop.f32.mrb[0].mxu0
      %v2679 = vadd.f32 %v2358, %v2678
      %v2680 = vpop.f32.mrb[0].mxu0
      %2681 = vmatprep.mubr.f32.mxu0 0.0
      %2682 = vmatmul.mubr.f32.gmra.mrb[0].mxu0 %v2464
      %v2683 = vpop.f32.mrb[0].mxu0
      %v2684 = vadd.f32 %v2363, %v2683
      %v2685 = vpop.f32.mrb[0].mxu0
      %2686 = vmatprep.mubr.f32.mxu0 0.0
      %2687 = vmatmul.mubr.f32.gmra.mrb[0].mxu0 %v2467
      %v2688 = vpop.f32.mrb[0].mxu0
      %v2689 = vadd.f32 %v2368, %v2688
      %v2690 = vpop.f32.mrb[0].mxu0
      %2691 = vmatprep.mubr.f32.mxu0 0.0
      %2692 = vmatmul.mubr.f32.gmra.mrb[0].mxu0 %v2470
      %v2693 = vpop.f32.mrb[0].mxu0
      %v2694 = vadd.f32 %v2373, %v2693
      %v2695 = vpop.f32.mrb[0].mxu0
      %2696 = vdwg.mxu0
      %v2697 = vld [vmem:[%s6] sm:$0xff]
      %v2699 = vsel %vm667, %v1189, 0
      %v2702 = vsel %vm667, %v1190, 0
      %v2705 = vsel %vm667, %v1191, 0
      %v2708 = vsel %vm667, %v1192, 0
      %v2711 = vsel %vm667, %v1193, 0
      %v2714 = vsel %vm667, %v1194, 0
      %v2717 = vsel %vm667, %v1195, 0
      %v2720 = vsel %vm667, %v1196, 0
      %v2723 = vsel %vm667, %v1197, 0
      %v2726 = vsel %vm667, %v1198, 0
      %v2729 = vsel %vm667, %v1199, 0
      %v2732 = vsel %vm667, %v1200, 0
      %v2735 = vsel %vm667, %v1201, 0
      %v2738 = vsel %vm667, %v1202, 0
      %v2741 = vsel %vm667, %v1203, 0
      %v2744 = vsel %vm667, %v1204, 0
      %v2747 = vsel %vm667, %v1205, 0
      %v2750 = vsel %vm667, %v1206, 0
      %v2753 = vsel %vm667, %v1207, 0
      %v2756 = vsel %vm667, %v1208, 0
      %v2759 = vsel %vm667, %v1209, 0
      %v2762 = vsel %vm667, %v1210, 0
      %v2765 = vsel %vm667, %v1211, 0
      %v2768 = vsel %vm667, %v1212, 0
      %v2771 = vsel %vm667, %v1213, 0
      %v2774 = vsel %vm667, %v1214, 0
      %v2777 = vsel %vm667, %v1215, 0
      %v2780 = vsel %vm667, %v1216, 0
      %v2783 = vsel %vm667, %v1217, 0
      %v2786 = vsel %vm667, %v1218, 0
      %v2789 = vsel %vm667, %v1219, 0
      %v2792 = vsel %vm667, %v1220, 0
      %2794 = vmatprep.subr.mxu0 0.0
      %2795 = vmatpush1.msra.mxu0 %v2697
      %2796 = vmatprep.subr.mxu0 0.0
      %2797 = vmatpush1.msra.mxu0 0.0
      %2798 = vmatprep.subr.mxu0 0.0
      %2799 = vmatpush1.msra.mxu0 0.0
      %2800 = vmatprep.subr.mxu0 0.0
      %2801 = vmatpush1.msra.mxu0 0.0
      %2802 = vmatprep.subr.mxu0 0.0
      %2803 = vmatpush1.msra.mxu0 0.0
      %2804 = vmatprep.subr.mxu0 0.0
      %2805 = vmatpush1.msra.mxu0 0.0
      %2806 = vmatprep.subr.mxu0 0.0
      %2807 = vmatpush1.msra.mxu0 0.0
      %2808 = vmatprep.subr.mxu0 0.0
      %2809 = vmatpush1.msra.mxu0 0.0
      %2810 = vmatprep.subr.mxu0 0.0
      %2811 = vmatpush1.msra.mxu0 0.0
      %2812 = vmatprep.subr.mxu0 0.0
      %2813 = vmatpush1.msra.mxu0 0.0
      %2814 = vmatprep.subr.mxu0 0.0
      %2815 = vmatpush1.msra.mxu0 0.0
      %2816 = vmatprep.subr.mxu0 0.0
      %2817 = vmatpush1.msra.mxu0 0.0
      %2818 = vmatprep.subr.mxu0 0.0
      %2819 = vmatpush1.msra.mxu0 0.0
      %2820 = vmatprep.subr.mxu0 0.0
      %2821 = vmatpush1.msra.mxu0 0.0
      %2822 = vmatprep.subr.mxu0 0.0
      %2823 = vmatpush1.msra.mxu0 0.0
      %2824 = vmatprep.subr.mxu0 0.0
      %2825 = vmatpush1.msra.mxu0 0.0
      %2826 = vmatprep.subr.mxu0 0.0
      %2827 = vmatpush1.msra.mxu0 0.0
      %2828 = vmatprep.subr.mxu0 0.0
      %2829 = vmatpush1.msra.mxu0 0.0
      %2830 = vmatprep.subr.mxu0 0.0
      %2831 = vmatpush1.msra.mxu0 0.0
      %2832 = vmatprep.subr.mxu0 0.0
      %2833 = vmatpush1.msra.mxu0 0.0
      %2834 = vmatprep.subr.mxu0 0.0
      %2835 = vmatpush1.msra.mxu0 0.0
      %2836 = vmatprep.subr.mxu0 0.0
      %2837 = vmatpush1.msra.mxu0 0.0
      %2838 = vmatprep.subr.mxu0 0.0
      %2839 = vmatpush1.msra.mxu0 0.0
      %2840 = vmatprep.subr.mxu0 0.0
      %2841 = vmatpush1.msra.mxu0 0.0
      %2842 = vmatprep.subr.mxu0 0.0
      %2843 = vmatpush1.msra.mxu0 0.0
      %2844 = vmatprep.subr.mxu0 0.0
      %2845 = vmatpush1.msra.mxu0 0.0
      %2846 = vmatprep.subr.mxu0 0.0
      %2847 = vmatpush1.msra.mxu0 0.0
      %2848 = vmatprep.subr.mxu0 0.0
      %2849 = vmatpush1.msra.mxu0 0.0
      %2850 = vmatprep.subr.mxu0 0.0
      %2851 = vmatpush1.msra.mxu0 0.0
      %2852 = vmatprep.subr.mxu0 0.0
      %2853 = vmatpush1.msra.mxu0 0.0
      %2854 = vmatprep.subr.mxu0 0.0
      %2855 = vmatpush1.msra.mxu0 0.0
      %2856 = vmatprep.subr.mxu0 0.0
      %2857 = vmatpush1.msra.mxu0 0.0
      %2858 = vmatprep.mubr.f32.mxu0 0.0
      %2859 = vmatmul.mubr.f32.gmra.mrb[0].mxu0 %v2699
      %v2860 = vpop.f32.mrb[0].mxu0
      %v2861 = vadd.f32 0.0, %v2860
      %v2862 = vpop.f32.mrb[0].mxu0
      %2863 = vmatprep.mubr.f32.mxu0 0.0
      %2864 = vmatmul.mubr.f32.gmra.mrb[0].mxu0 %v2702
      %v2865 = vpop.f32.mrb[0].mxu0
      %v2866 = vadd.f32 0.0, %v2865
      %v2867 = vpop.f32.mrb[0].mxu0
      %2868 = vmatprep.mubr.f32.mxu0 0.0
      %2869 = vmatmul.mubr.f32.gmra.mrb[0].mxu0 %v2705
      %v2870 = vpop.f32.mrb[0].mxu0
      %v2871 = vadd.f32 0.0, %v2870
      %v2872 = vpop.f32.mrb[0].mxu0
      %2873 = vmatprep.mubr.f32.mxu0 0.0
      %2874 = vmatmul.mubr.f32.gmra.mrb[0].mxu0 %v2708
      %v2875 = vpop.f32.mrb[0].mxu0
      %v2876 = vadd.f32 0.0, %v2875
      %v2877 = vpop.f32.mrb[0].mxu0
      %2878 = vmatprep.mubr.f32.mxu0 0.0
      %2879 = vmatmul.mubr.f32.gmra.mrb[0].mxu0 %v2711
      %v2880 = vpop.f32.mrb[0].mxu0
      %v2881 = vadd.f32 0.0, %v2880
      %v2882 = vpop.f32.mrb[0].mxu0
      %2883 = vmatprep.mubr.f32.mxu0 0.0
      %2884 = vmatmul.mubr.f32.gmra.mrb[0].mxu0 %v2714
      %v2885 = vpop.f32.mrb[0].mxu0
      %v2886 = vadd.f32 0.0, %v2885
      %v2887 = vpop.f32.mrb[0].mxu0
      %2888 = vmatprep.mubr.f32.mxu0 0.0
      %2889 = vmatmul.mubr.f32.gmra.mrb[0].mxu0 %v2717
      %v2890 = vpop.f32.mrb[0].mxu0
      %v2891 = vadd.f32 0.0, %v2890
      %v2892 = vpop.f32.mrb[0].mxu0
      %2893 = vmatprep.mubr.f32.mxu0 0.0
      %2894 = vmatmul.mubr.f32.gmra.mrb[0].mxu0 %v2720
      %v2895 = vpop.f32.mrb[0].mxu0
      %v2896 = vadd.f32 0.0, %v2895
      %v2897 = vpop.f32.mrb[0].mxu0
      %2898 = vmatprep.mubr.f32.mxu0 0.0
      %2899 = vmatmul.mubr.f32.gmra.mrb[0].mxu0 %v2723
      %v2900 = vpop.f32.mrb[0].mxu0
      %v2901 = vadd.f32 0.0, %v2900
      %v2902 = vpop.f32.mrb[0].mxu0
      %2903 = vmatprep.mubr.f32.mxu0 0.0
      %2904 = vmatmul.mubr.f32.gmra.mrb[0].mxu0 %v2726
      %v2905 = vpop.f32.mrb[0].mxu0
      %v2906 = vadd.f32 0.0, %v2905
      %v2907 = vpop.f32.mrb[0].mxu0
      %2908 = vmatprep.mubr.f32.mxu0 0.0
      %2909 = vmatmul.mubr.f32.gmra.mrb[0].mxu0 %v2729
      %v2910 = vpop.f32.mrb[0].mxu0
      %v2911 = vadd.f32 0.0, %v2910
      %v2912 = vpop.f32.mrb[0].mxu0
      %2913 = vmatprep.mubr.f32.mxu0 0.0
      %2914 = vmatmul.mubr.f32.gmra.mrb[0].mxu0 %v2732
      %v2915 = vpop.f32.mrb[0].mxu0
      %v2916 = vadd.f32 0.0, %v2915
      %v2917 = vpop.f32.mrb[0].mxu0
      %2918 = vmatprep.mubr.f32.mxu0 0.0
      %2919 = vmatmul.mubr.f32.gmra.mrb[0].mxu0 %v2735
      %v2920 = vpop.f32.mrb[0].mxu0
      %v2921 = vadd.f32 0.0, %v2920
      %v2922 = vpop.f32.mrb[0].mxu0
      %2923 = vmatprep.mubr.f32.mxu0 0.0
      %2924 = vmatmul.mubr.f32.gmra.mrb[0].mxu0 %v2738
      %v2925 = vpop.f32.mrb[0].mxu0
      %v2926 = vadd.f32 0.0, %v2925
      %v2927 = vpop.f32.mrb[0].mxu0
      %2928 = vmatprep.mubr.f32.mxu0 0.0
      %2929 = vmatmul.mubr.f32.gmra.mrb[0].mxu0 %v2741
      %v2930 = vpop.f32.mrb[0].mxu0
      %v2931 = vadd.f32 0.0, %v2930
      %v2932 = vpop.f32.mrb[0].mxu0
      %2933 = vmatprep.mubr.f32.mxu0 0.0
      %2934 = vmatmul.mubr.f32.gmra.mrb[0].mxu0 %v2744
      %v2935 = vpop.f32.mrb[0].mxu0
      %v2936 = vadd.f32 0.0, %v2935
      %v2937 = vpop.f32.mrb[0].mxu0
      %2938 = vmatprep.mubr.f32.mxu0 0.0
      %2939 = vmatmul.mubr.f32.gmra.mrb[0].mxu0 %v2747
      %v2940 = vpop.f32.mrb[0].mxu0
      %v2941 = vadd.f32 0.0, %v2940
      %v2942 = vpop.f32.mrb[0].mxu0
      %2943 = vmatprep.mubr.f32.mxu0 0.0
      %2944 = vmatmul.mubr.f32.gmra.mrb[0].mxu0 %v2750
      %v2945 = vpop.f32.mrb[0].mxu0
      %v2946 = vadd.f32 0.0, %v2945
      %v2947 = vpop.f32.mrb[0].mxu0
      %2948 = vmatprep.mubr.f32.mxu0 0.0
      %2949 = vmatmul.mubr.f32.gmra.mrb[0].mxu0 %v2753
      %v2950 = vpop.f32.mrb[0].mxu0
      %v2951 = vadd.f32 0.0, %v2950
      %v2952 = vpop.f32.mrb[0].mxu0
      %2953 = vmatprep.mubr.f32.mxu0 0.0
      %2954 = vmatmul.mubr.f32.gmra.mrb[0].mxu0 %v2756
      %v2955 = vpop.f32.mrb[0].mxu0
      %v2956 = vadd.f32 0.0, %v2955
      %v2957 = vpop.f32.mrb[0].mxu0
      %2958 = vmatprep.mubr.f32.mxu0 0.0
      %2959 = vmatmul.mubr.f32.gmra.mrb[0].mxu0 %v2759
      %v2960 = vpop.f32.mrb[0].mxu0
      %v2961 = vadd.f32 0.0, %v2960
      %v2962 = vpop.f32.mrb[0].mxu0
      %2963 = vmatprep.mubr.f32.mxu0 0.0
      %2964 = vmatmul.mubr.f32.gmra.mrb[0].mxu0 %v2762
      %v2965 = vpop.f32.mrb[0].mxu0
      %v2966 = vadd.f32 0.0, %v2965
      %v2967 = vpop.f32.mrb[0].mxu0
      %2968 = vmatprep.mubr.f32.mxu0 0.0
      %2969 = vmatmul.mubr.f32.gmra.mrb[0].mxu0 %v2765
      %v2970 = vpop.f32.mrb[0].mxu0
      %v2971 = vadd.f32 0.0, %v2970
      %v2972 = vpop.f32.mrb[0].mxu0
      %2973 = vmatprep.mubr.f32.mxu0 0.0
      %2974 = vmatmul.mubr.f32.gmra.mrb[0].mxu0 %v2768
      %v2975 = vpop.f32.mrb[0].mxu0
      %v2976 = vadd.f32 0.0, %v2975
      %v2977 = vpop.f32.mrb[0].mxu0
      %2978 = vmatprep.mubr.f32.mxu0 0.0
      %2979 = vmatmul.mubr.f32.gmra.mrb[0].mxu0 %v2771
      %v2980 = vpop.f32.mrb[0].mxu0
      %v2981 = vadd.f32 0.0, %v2980
      %v2982 = vpop.f32.mrb[0].mxu0
      %2983 = vmatprep.mubr.f32.mxu0 0.0
      %2984 = vmatmul.mubr.f32.gmra.mrb[0].mxu0 %v2774
      %v2985 = vpop.f32.mrb[0].mxu0
      %v2986 = vadd.f32 0.0, %v2985
      %v2987 = vpop.f32.mrb[0].mxu0
      %2988 = vmatprep.mubr.f32.mxu0 0.0
      %2989 = vmatmul.mubr.f32.gmra.mrb[0].mxu0 %v2777
      %v2990 = vpop.f32.mrb[0].mxu0
      %v2991 = vadd.f32 0.0, %v2990
      %v2992 = vpop.f32.mrb[0].mxu0
      %2993 = vmatprep.mubr.f32.mxu0 0.0
      %2994 = vmatmul.mubr.f32.gmra.mrb[0].mxu0 %v2780
      %v2995 = vpop.f32.mrb[0].mxu0
      %v2996 = vadd.f32 0.0, %v2995
      %v2997 = vpop.f32.mrb[0].mxu0
      %2998 = vmatprep.mubr.f32.mxu0 0.0
      %2999 = vmatmul.mubr.f32.gmra.mrb[0].mxu0 %v2783
      %v3000 = vpop.f32.mrb[0].mxu0
      %v3001 = vadd.f32 0.0, %v3000
      %v3002 = vpop.f32.mrb[0].mxu0
      %3003 = vmatprep.mubr.f32.mxu0 0.0
      %3004 = vmatmul.mubr.f32.gmra.mrb[0].mxu0 %v2786
      %v3005 = vpop.f32.mrb[0].mxu0
      %v3006 = vadd.f32 0.0, %v3005
      %v3007 = vpop.f32.mrb[0].mxu0
      %3008 = vmatprep.mubr.f32.mxu0 0.0
      %3009 = vmatmul.mubr.f32.gmra.mrb[0].mxu0 %v2789
      %v3010 = vpop.f32.mrb[0].mxu0
      %v3011 = vadd.f32 0.0, %v3010
      %v3012 = vpop.f32.mrb[0].mxu0
      %3013 = vmatprep.mubr.f32.mxu0 0.0
      %3014 = vmatmul.mubr.f32.gmra.mrb[0].mxu0 %v2792
      %v3015 = vpop.f32.mrb[0].mxu0
      %v3016 = vadd.f32 0.0, %v3015
      %v3017 = vpop.f32.mrb[0].mxu0
      %3018 = vdwg.mxu0
      %v3019 = vadd.f32 %v2539, %v2861
      %v3020 = vadd.f32 %v2544, %v2866
      %v3021 = vadd.f32 %v2549, %v2871
      %v3022 = vadd.f32 %v2554, %v2876
      %v3023 = vadd.f32 %v2559, %v2881
      %v3024 = vadd.f32 %v2564, %v2886
      %v3025 = vadd.f32 %v2569, %v2891
      %v3026 = vadd.f32 %v2574, %v2896
      %v3027 = vadd.f32 %v2579, %v2901
      %v3028 = vadd.f32 %v2584, %v2906
      %v3029 = vadd.f32 %v2589, %v2911
      %v3030 = vadd.f32 %v2594, %v2916
      %v3031 = vadd.f32 %v2599, %v2921
      %v3032 = vadd.f32 %v2604, %v2926
      %v3033 = vadd.f32 %v2609, %v2931
      %v3034 = vadd.f32 %v2614, %v2936
      %v3035 = vadd.f32 %v2619, %v2941
      %v3036 = vadd.f32 %v2624, %v2946
      %v3037 = vadd.f32 %v2629, %v2951
      %v3038 = vadd.f32 %v2634, %v2956
      %v3039 = vadd.f32 %v2639, %v2961
      %v3040 = vadd.f32 %v2644, %v2966
      %v3041 = vadd.f32 %v2649, %v2971
      %v3042 = vadd.f32 %v2654, %v2976
      %v3043 = vadd.f32 %v2659, %v2981
      %v3044 = vadd.f32 %v2664, %v2986
      %v3045 = vadd.f32 %v2669, %v2991
      %v3046 = vadd.f32 %v2674, %v2996
      %v3047 = vadd.f32 %v2679, %v3001
      %v3048 = vadd.f32 %v2684, %v3006
      %v3049 = vadd.f32 %v2689, %v3011
      %v3050 = vadd.f32 %v2694, %v3016
      %v3051 = vld [vmem:[%s7] sm:$0x1]
      %v3053 = vlaneseq
      %v3054 = vshrl.u32 %v3053, 7
      %v3055 = vsub.s32 0, %v3054
      %v3056 = vrot.slane %v3051, %v3055
      %v3058 = vadd.f32 %v3019, %v3056
      %v3059 = vadd.f32 %v3020, %v3056
      %v3060 = vadd.f32 %v3021, %v3056
      %v3061 = vadd.f32 %v3022, %v3056
      %v3062 = vadd.f32 %v3023, %v3056
      %v3063 = vadd.f32 %v3024, %v3056
      %v3064 = vadd.f32 %v3025, %v3056
      %v3065 = vadd.f32 %v3026, %v3056
      %v3066 = vadd.f32 %v3027, %v3056
      %v3067 = vadd.f32 %v3028, %v3056
      %v3068 = vadd.f32 %v3029, %v3056
      %v3069 = vadd.f32 %v3030, %v3056
      %v3070 = vadd.f32 %v3031, %v3056
      %v3071 = vadd.f32 %v3032, %v3056
      %v3072 = vadd.f32 %v3033, %v3056
      %v3073 = vadd.f32 %v3034, %v3056
      %v3074 = vadd.f32 %v3035, %v3056
      %v3075 = vadd.f32 %v3036, %v3056
      %v3076 = vadd.f32 %v3037, %v3056
      %v3077 = vadd.f32 %v3038, %v3056
      %v3078 = vadd.f32 %v3039, %v3056
      %v3079 = vadd.f32 %v3040, %v3056
      %v3080 = vadd.f32 %v3041, %v3056
      %v3081 = vadd.f32 %v3042, %v3056
      %v3082 = vadd.f32 %v3043, %v3056
      %v3083 = vadd.f32 %v3044, %v3056
      %v3084 = vadd.f32 %v3045, %v3056
      %v3085 = vadd.f32 %v3046, %v3056
      %v3086 = vadd.f32 %v3047, %v3056
      %v3087 = vadd.f32 %v3048, %v3056
      %v3088 = vadd.f32 %v3049, %v3056
      %v3089 = vadd.f32 %v3050, %v3056
      %v3090 = vmul.f32 %v3058, %v3058
      %v3091 = vmul.f32 %v3059, %v3059
      %v3092 = vmul.f32 %v3060, %v3060
      %v3093 = vmul.f32 %v3061, %v3061
      %v3094 = vmul.f32 %v3062, %v3062
      %v3095 = vmul.f32 %v3063, %v3063
      %v3096 = vmul.f32 %v3064, %v3064
      %v3097 = vmul.f32 %v3065, %v3065
      %v3098 = vmul.f32 %v3066, %v3066
      %v3099 = vmul.f32 %v3067, %v3067
      %v3100 = vmul.f32 %v3068, %v3068
      %v3101 = vmul.f32 %v3069, %v3069
      %v3102 = vmul.f32 %v3070, %v3070
      %v3103 = vmul.f32 %v3071, %v3071
      %v3104 = vmul.f32 %v3072, %v3072
      %v3105 = vmul.f32 %v3073, %v3073
      %v3106 = vmul.f32 %v3074, %v3074
      %v3107 = vmul.f32 %v3075, %v3075
      %v3108 = vmul.f32 %v3076, %v3076
      %v3109 = vmul.f32 %v3077, %v3077
      %v3110 = vmul.f32 %v3078, %v3078
      %v3111 = vmul.f32 %v3079, %v3079
      %v3112 = vmul.f32 %v3080, %v3080
      %v3113 = vmul.f32 %v3081, %v3081
      %v3114 = vmul.f32 %v3082, %v3082
      %v3115 = vmul.f32 %v3083, %v3083
      %v3116 = vmul.f32 %v3084, %v3084
      %v3117 = vmul.f32 %v3085, %v3085
      %v3118 = vmul.f32 %v3086, %v3086
      %v3119 = vmul.f32 %v3087, %v3087
      %v3120 = vmul.f32 %v3088, %v3088
      %v3121 = vmul.f32 %v3089, %v3089
      %v3122 = vld [vmem:[%s8] sm:$0xff]
      %v3123 = vld [vmem:[%s8 + $0x8] sm:$0xff]
      %v3124 = vld [vmem:[%s8 + $0x10] sm:$0xff]
      %v3125 = vld [vmem:[%s8 + $0x18] sm:$0xff]
      %v3126 = vld [vmem:[%s8 + $0x20] sm:$0xff]
      %v3127 = vld [vmem:[%s8 + $0x28] sm:$0xff]
      %v3128 = vld [vmem:[%s8 + $0x30] sm:$0xff]
      %v3129 = vld [vmem:[%s8 + $0x38] sm:$0xff]
      %v3130 = vld [vmem:[%s8 + $0x40] sm:$0xff]
      %v3131 = vld [vmem:[%s8 + $0x48] sm:$0xff]
      %v3132 = vld [vmem:[%s8 + $0x50] sm:$0xff]
      %v3133 = vld [vmem:[%s8 + $0x58] sm:$0xff]
      %v3134 = vld [vmem:[%s8 + $0x60] sm:$0xff]
      %v3135 = vld [vmem:[%s8 + $0x68] sm:$0xff]
      %v3136 = vld [vmem:[%s8 + $0x70] sm:$0xff]
      %v3137 = vld [vmem:[%s8 + $0x78] sm:$0xff]
      %3138 = vmatprep.subr.mxu0 0.0
      %3139 = vmatpush1.msra.mxu0 %v3122
      %3140 = vmatprep.subr.mxu0 0.0
      %3141 = vmatpush1.msra.mxu0 %v3123
      %3142 = vmatprep.subr.mxu0 0.0
      %3143 = vmatpush1.msra.mxu0 %v3124
      %3144 = vmatprep.subr.mxu0 0.0
      %3145 = vmatpush1.msra.mxu0 %v3125
      %3146 = vmatprep.subr.mxu0 0.0
      %3147 = vmatpush1.msra.mxu0 %v3126
      %3148 = vmatprep.subr.mxu0 0.0
      %3149 = vmatpush1.msra.mxu0 %v3127
      %3150 = vmatprep.subr.mxu0 0.0
      %3151 = vmatpush1.msra.mxu0 %v3128
      %3152 = vmatprep.subr.mxu0 0.0
      %3153 = vmatpush1.msra.mxu0 %v3129
      %3154 = vmatprep.subr.mxu0 0.0
      %3155 = vmatpush1.msra.mxu0 %v3130
      %3156 = vmatprep.subr.mxu0 0.0
      %3157 = vmatpush1.msra.mxu0 %v3131
      %3158 = vmatprep.subr.mxu0 0.0
      %3159 = vmatpush1.msra.mxu0 %v3132
      %3160 = vmatprep.subr.mxu0 0.0
      %3161 = vmatpush1.msra.mxu0 %v3133
      %3162 = vmatprep.subr.mxu0 0.0
      %3163 = vmatpush1.msra.mxu0 %v3134
      %3164 = vmatprep.subr.mxu0 0.0
      %3165 = vmatpush1.msra.mxu0 %v3135
      %3166 = vmatprep.subr.mxu0 0.0
      %3167 = vmatpush1.msra.mxu0 %v3136
      %3168 = vmatprep.subr.mxu0 0.0
      %3169 = vmatpush1.msra.mxu0 %v3137
      %3170 = vmatprep.subr.mxu0 0.0
      %3171 = vmatpush1.msra.mxu0 0.0
      %3172 = vmatprep.subr.mxu0 0.0
      %3173 = vmatpush1.msra.mxu0 0.0
      %3174 = vmatprep.subr.mxu0 0.0
      %3175 = vmatpush1.msra.mxu0 0.0
      %3176 = vmatprep.subr.mxu0 0.0
      %3177 = vmatpush1.msra.mxu0 0.0
      %3178 = vmatprep.subr.mxu0 0.0
      %3179 = vmatpush1.msra.mxu0 0.0
      %3180 = vmatprep.subr.mxu0 0.0
      %3181 = vmatpush1.msra.mxu0 0.0
      %3182 = vmatprep.subr.mxu0 0.0
      %3183 = vmatpush1.msra.mxu0 0.0
      %3184 = vmatprep.subr.mxu0 0.0
      %3185 = vmatpush1.msra.mxu0 0.0
      %3186 = vmatprep.subr.mxu0 0.0
      %3187 = vmatpush1.msra.mxu0 0.0
      %3188 = vmatprep.subr.mxu0 0.0
      %3189 = vmatpush1.msra.mxu0 0.0
      %3190 = vmatprep.subr.mxu0 0.0
      %3191 = vmatpush1.msra.mxu0 0.0
      %3192 = vmatprep.subr.mxu0 0.0
      %3193 = vmatpush1.msra.mxu0 0.0
      %3194 = vmatprep.subr.mxu0 0.0
      %3195 = vmatpush1.msra.mxu0 0.0
      %3196 = vmatprep.subr.mxu0 0.0
      %3197 = vmatpush1.msra.mxu0 0.0
      %3198 = vmatprep.subr.mxu0 0.0
      %3199 = vmatpush1.msra.mxu0 0.0
      %3200 = vmatprep.subr.mxu0 0.0
      %3201 = vmatpush1.msra.mxu0 0.0
      %3202 = vmatprep.mubr.f32.mxu0 0.0
      %3203 = vmatmul.mubr.f32.gmra.mrb[0].mxu0 %v3090
      %v3204 = vpop.f32.mrb[0].mxu0
      %v3205 = vadd.f32 0.0, %v3204
      %v3206 = vpop.f32.mrb[0].mxu0
      %3207 = vmatprep.mubr.f32.mxu0 0.0
      %3208 = vmatmul.mubr.f32.gmra.mrb[0].mxu0 %v3091
      %v3209 = vpop.f32.mrb[0].mxu0
      %v3210 = vadd.f32 0.0, %v3209
      %v3211 = vpop.f32.mrb[0].mxu0
      %3212 = vmatprep.mubr.f32.mxu0 0.0
      %3213 = vmatmul.mubr.f32.gmra.mrb[0].mxu0 %v3092
      %v3214 = vpop.f32.mrb[0].mxu0
      %v3215 = vadd.f32 0.0, %v3214
      %v3216 = vpop.f32.mrb[0].mxu0
      %3217 = vmatprep.mubr.f32.mxu0 0.0
      %3218 = vmatmul.mubr.f32.gmra.mrb[0].mxu0 %v3093
      %v3219 = vpop.f32.mrb[0].mxu0
      %v3220 = vadd.f32 0.0, %v3219
      %v3221 = vpop.f32.mrb[0].mxu0
      %3222 = vmatprep.mubr.f32.mxu0 0.0
      %3223 = vmatmul.mubr.f32.gmra.mrb[0].mxu0 %v3094
      %v3224 = vpop.f32.mrb[0].mxu0
      %v3225 = vadd.f32 0.0, %v3224
      %v3226 = vpop.f32.mrb[0].mxu0
      %3227 = vmatprep.mubr.f32.mxu0 0.0
      %3228 = vmatmul.mubr.f32.gmra.mrb[0].mxu0 %v3095
      %v3229 = vpop.f32.mrb[0].mxu0
      %v3230 = vadd.f32 0.0, %v3229
      %v3231 = vpop.f32.mrb[0].mxu0
      %3232 = vmatprep.mubr.f32.mxu0 0.0
      %3233 = vmatmul.mubr.f32.gmra.mrb[0].mxu0 %v3096
      %v3234 = vpop.f32.mrb[0].mxu0
      %v3235 = vadd.f32 0.0, %v3234
      %v3236 = vpop.f32.mrb[0].mxu0
      %3237 = vmatprep.mubr.f32.mxu0 0.0
      %3238 = vmatmul.mubr.f32.gmra.mrb[0].mxu0 %v3097
      %v3239 = vpop.f32.mrb[0].mxu0
      %v3240 = vadd.f32 0.0, %v3239
      %v3241 = vpop.f32.mrb[0].mxu0
      %3242 = vmatprep.mubr.f32.mxu0 0.0
      %3243 = vmatmul.mubr.f32.gmra.mrb[0].mxu0 %v3098
      %v3244 = vpop.f32.mrb[0].mxu0
      %v3245 = vadd.f32 0.0, %v3244
      %v3246 = vpop.f32.mrb[0].mxu0
      %3247 = vmatprep.mubr.f32.mxu0 0.0
      %3248 = vmatmul.mubr.f32.gmra.mrb[0].mxu0 %v3099
      %v3249 = vpop.f32.mrb[0].mxu0
      %v3250 = vadd.f32 0.0, %v3249
      %v3251 = vpop.f32.mrb[0].mxu0
      %3252 = vmatprep.mubr.f32.mxu0 0.0
      %3253 = vmatmul.mubr.f32.gmra.mrb[0].mxu0 %v3100
      %v3254 = vpop.f32.mrb[0].mxu0
      %v3255 = vadd.f32 0.0, %v3254
      %v3256 = vpop.f32.mrb[0].mxu0
      %3257 = vmatprep.mubr.f32.mxu0 0.0
      %3258 = vmatmul.mubr.f32.gmra.mrb[0].mxu0 %v3101
      %v3259 = vpop.f32.mrb[0].mxu0
      %v3260 = vadd.f32 0.0, %v3259
      %v3261 = vpop.f32.mrb[0].mxu0
      %3262 = vmatprep.mubr.f32.mxu0 0.0
      %3263 = vmatmul.mubr.f32.gmra.mrb[0].mxu0 %v3102
      %v3264 = vpop.f32.mrb[0].mxu0
      %v3265 = vadd.f32 0.0, %v3264
      %v3266 = vpop.f32.mrb[0].mxu0
      %3267 = vmatprep.mubr.f32.mxu0 0.0
      %3268 = vmatmul.mubr.f32.gmra.mrb[0].mxu0 %v3103
      %v3269 = vpop.f32.mrb[0].mxu0
      %v3270 = vadd.f32 0.0, %v3269
      %v3271 = vpop.f32.mrb[0].mxu0
      %3272 = vmatprep.mubr.f32.mxu0 0.0
      %3273 = vmatmul.mubr.f32.gmra.mrb[0].mxu0 %v3104
      %v3274 = vpop.f32.mrb[0].mxu0
      %v3275 = vadd.f32 0.0, %v3274
      %v3276 = vpop.f32.mrb[0].mxu0
      %3277 = vmatprep.mubr.f32.mxu0 0.0
      %3278 = vmatmul.mubr.f32.gmra.mrb[0].mxu0 %v3105
      %v3279 = vpop.f32.mrb[0].mxu0
      %v3280 = vadd.f32 0.0, %v3279
      %v3281 = vpop.f32.mrb[0].mxu0
      %3282 = vmatprep.mubr.f32.mxu0 0.0
      %3283 = vmatmul.mubr.f32.gmra.mrb[0].mxu0 %v3106
      %v3284 = vpop.f32.mrb[0].mxu0
      %v3285 = vadd.f32 0.0, %v3284
      %v3286 = vpop.f32.mrb[0].mxu0
      %3287 = vmatprep.mubr.f32.mxu0 0.0
      %3288 = vmatmul.mubr.f32.gmra.mrb[0].mxu0 %v3107
      %v3289 = vpop.f32.mrb[0].mxu0
      %v3290 = vadd.f32 0.0, %v3289
      %v3291 = vpop.f32.mrb[0].mxu0
      %3292 = vmatprep.mubr.f32.mxu0 0.0
      %3293 = vmatmul.mubr.f32.gmra.mrb[0].mxu0 %v3108
      %v3294 = vpop.f32.mrb[0].mxu0
      %v3295 = vadd.f32 0.0, %v3294
      %v3296 = vpop.f32.mrb[0].mxu0
      %3297 = vmatprep.mubr.f32.mxu0 0.0
      %3298 = vmatmul.mubr.f32.gmra.mrb[0].mxu0 %v3109
      %v3299 = vpop.f32.mrb[0].mxu0
      %v3300 = vadd.f32 0.0, %v3299
      %v3301 = vpop.f32.mrb[0].mxu0
      %3302 = vmatprep.mubr.f32.mxu0 0.0
      %3303 = vmatmul.mubr.f32.gmra.mrb[0].mxu0 %v3110
      %v3304 = vpop.f32.mrb[0].mxu0
      %v3305 = vadd.f32 0.0, %v3304
      %v3306 = vpop.f32.mrb[0].mxu0
      %3307 = vmatprep.mubr.f32.mxu0 0.0
      %3308 = vmatmul.mubr.f32.gmra.mrb[0].mxu0 %v3111
      %v3309 = vpop.f32.mrb[0].mxu0
      %v3310 = vadd.f32 0.0, %v3309
      %v3311 = vpop.f32.mrb[0].mxu0
      %3312 = vmatprep.mubr.f32.mxu0 0.0
      %3313 = vmatmul.mubr.f32.gmra.mrb[0].mxu0 %v3112
      %v3314 = vpop.f32.mrb[0].mxu0
      %v3315 = vadd.f32 0.0, %v3314
      %v3316 = vpop.f32.mrb[0].mxu0
      %3317 = vmatprep.mubr.f32.mxu0 0.0
      %3318 = vmatmul.mubr.f32.gmra.mrb[0].mxu0 %v3113
      %v3319 = vpop.f32.mrb[0].mxu0
      %v3320 = vadd.f32 0.0, %v3319
      %v3321 = vpop.f32.mrb[0].mxu0
      %3322 = vmatprep.mubr.f32.mxu0 0.0
      %3323 = vmatmul.mubr.f32.gmra.mrb[0].mxu0 %v3114
      %v3324 = vpop.f32.mrb[0].mxu0
      %v3325 = vadd.f32 0.0, %v3324
      %v3326 = vpop.f32.mrb[0].mxu0
      %3327 = vmatprep.mubr.f32.mxu0 0.0
      %3328 = vmatmul.mubr.f32.gmra.mrb[0].mxu0 %v3115
      %v3329 = vpop.f32.mrb[0].mxu0
      %v3330 = vadd.f32 0.0, %v3329
      %v3331 = vpop.f32.mrb[0].mxu0
      %3332 = vmatprep.mubr.f32.mxu0 0.0
      %3333 = vmatmul.mubr.f32.gmra.mrb[0].mxu0 %v3116
      %v3334 = vpop.f32.mrb[0].mxu0
      %v3335 = vadd.f32 0.0, %v3334
      %v3336 = vpop.f32.mrb[0].mxu0
      %3337 = vmatprep.mubr.f32.mxu0 0.0
      %3338 = vmatmul.mubr.f32.gmra.mrb[0].mxu0 %v3117
      %v3339 = vpop.f32.mrb[0].mxu0
      %v3340 = vadd.f32 0.0, %v3339
      %v3341 = vpop.f32.mrb[0].mxu0
      %3342 = vmatprep.mubr.f32.mxu0 0.0
      %3343 = vmatmul.mubr.f32.gmra.mrb[0].mxu0 %v3118
      %v3344 = vpop.f32.mrb[0].mxu0
      %v3345 = vadd.f32 0.0, %v3344
      %v3346 = vpop.f32.mrb[0].mxu0
      %3347 = vmatprep.mubr.f32.mxu0 0.0
      %3348 = vmatmul.mubr.f32.gmra.mrb[0].mxu0 %v3119
      %v3349 = vpop.f32.mrb[0].mxu0
      %v3350 = vadd.f32 0.0, %v3349
      %v3351 = vpop.f32.mrb[0].mxu0
      %3352 = vmatprep.mubr.f32.mxu0 0.0
      %3353 = vmatmul.mubr.f32.gmra.mrb[0].mxu0 %v3120
      %v3354 = vpop.f32.mrb[0].mxu0
      %v3355 = vadd.f32 0.0, %v3354
      %v3356 = vpop.f32.mrb[0].mxu0
      %3357 = vmatprep.mubr.f32.mxu0 0.0
      %3358 = vmatmul.mubr.f32.gmra.mrb[0].mxu0 %v3121
      %v3359 = vpop.f32.mrb[0].mxu0
      %v3360 = vadd.f32 0.0, %v3359
      %v3361 = vpop.f32.mrb[0].mxu0
      %3362 = vdwg.mxu0
      %v3363 = vmax.f32 %v3205, 1e-24
      %v3364 = vmax.f32 %v3210, 1e-24
      %v3365 = vmax.f32 %v3215, 1e-24
      %v3366 = vmax.f32 %v3220, 1e-24
      %v3367 = vmax.f32 %v3225, 1e-24
      %v3368 = vmax.f32 %v3230, 1e-24
      %v3369 = vmax.f32 %v3235, 1e-24
      %v3370 = vmax.f32 %v3240, 1e-24
      %v3371 = vmax.f32 %v3245, 1e-24
      %v3372 = vmax.f32 %v3250, 1e-24
      %v3373 = vmax.f32 %v3255, 1e-24
      %v3374 = vmax.f32 %v3260, 1e-24
      %v3375 = vmax.f32 %v3265, 1e-24
      %v3376 = vmax.f32 %v3270, 1e-24
      %v3377 = vmax.f32 %v3275, 1e-24
      %v3378 = vmax.f32 %v3280, 1e-24
      %v3379 = vmax.f32 %v3285, 1e-24
      %v3380 = vmax.f32 %v3290, 1e-24
      %v3381 = vmax.f32 %v3295, 1e-24
      %v3382 = vmax.f32 %v3300, 1e-24
      %v3383 = vmax.f32 %v3305, 1e-24
      %v3384 = vmax.f32 %v3310, 1e-24
      %v3385 = vmax.f32 %v3315, 1e-24
      %v3386 = vmax.f32 %v3320, 1e-24
      %v3387 = vmax.f32 %v3325, 1e-24
      %v3388 = vmax.f32 %v3330, 1e-24
      %v3389 = vmax.f32 %v3335, 1e-24
      %v3390 = vmax.f32 %v3340, 1e-24
      %v3391 = vmax.f32 %v3345, 1e-24
      %v3392 = vmax.f32 %v3350, 1e-24
      %v3393 = vmax.f32 %v3355, 1e-24
      %v3394 = vmax.f32 %v3360, 1e-24
      %v3395 = vrsqrt.pop %v3363
      %v3396 = vrsqrt.pop %v3364
      %v3397 = vrsqrt.pop %v3365
      %v3398 = vrsqrt.pop %v3366
      %v3399 = vrsqrt.pop %v3367
      %v3400 = vrsqrt.pop %v3368
      %v3401 = vrsqrt.pop %v3369
      %v3402 = vrsqrt.pop %v3370
      %v3403 = vrsqrt.pop %v3371
      %v3404 = vrsqrt.pop %v3372
      %v3405 = vrsqrt.pop %v3373
      %v3406 = vrsqrt.pop %v3374
      %v3407 = vrsqrt.pop %v3375
      %v3408 = vrsqrt.pop %v3376
      %v3409 = vrsqrt.pop %v3377
      %v3410 = vrsqrt.pop %v3378
      %v3411 = vrsqrt.pop %v3379
      %v3412 = vrsqrt.pop %v3380
      %v3413 = vrsqrt.pop %v3381
      %v3414 = vrsqrt.pop %v3382
      %v3415 = vrsqrt.pop %v3383
      %v3416 = vrsqrt.pop %v3384
      %v3417 = vrsqrt.pop %v3385
      %v3418 = vrsqrt.pop %v3386
      %v3419 = vrsqrt.pop %v3387
      %v3420 = vrsqrt.pop %v3388
      %v3421 = vrsqrt.pop %v3389
      %v3422 = vrsqrt.pop %v3390
      %v3423 = vrsqrt.pop %v3391
      %v3424 = vrsqrt.pop %v3392
      %v3425 = vrsqrt.pop %v3393
      %v3426 = vrsqrt.pop %v3394
      %v3427 = vmul.f32 %v3058, %v3395
      %v3428 = vmul.f32 %v3059, %v3396
      %v3429 = vmul.f32 %v3060, %v3397
      %v3430 = vmul.f32 %v3061, %v3398
      %v3431 = vmul.f32 %v3062, %v3399
      %v3432 = vmul.f32 %v3063, %v3400
      %v3433 = vmul.f32 %v3064, %v3401
      %v3434 = vmul.f32 %v3065, %v3402
      %v3435 = vmul.f32 %v3066, %v3403
      %v3436 = vmul.f32 %v3067, %v3404
      %v3437 = vmul.f32 %v3068, %v3405
      %v3438 = vmul.f32 %v3069, %v3406
      %v3439 = vmul.f32 %v3070, %v3407
      %v3440 = vmul.f32 %v3071, %v3408
      %v3441 = vmul.f32 %v3072, %v3409
      %v3442 = vmul.f32 %v3073, %v3410
      %v3443 = vmul.f32 %v3074, %v3411
      %v3444 = vmul.f32 %v3075, %v3412
      %v3445 = vmul.f32 %v3076, %v3413
      %v3446 = vmul.f32 %v3077, %v3414
      %v3447 = vmul.f32 %v3078, %v3415
      %v3448 = vmul.f32 %v3079, %v3416
      %v3449 = vmul.f32 %v3080, %v3417
      %v3450 = vmul.f32 %v3081, %v3418
      %v3451 = vmul.f32 %v3082, %v3419
      %v3452 = vmul.f32 %v3083, %v3420
      %v3453 = vmul.f32 %v3084, %v3421
      %v3454 = vmul.f32 %v3085, %v3422
      %v3455 = vmul.f32 %v3086, %v3423
      %v3456 = vmul.f32 %v3087, %v3424
      %v3457 = vmul.f32 %v3088, %v3425
      %v3458 = vmul.f32 %v3089, %v3426
      %v3459 = vtanh.pop %v3427
      %v3460 = vtanh.pop %v3428
      %v3461 = vtanh.pop %v3429
      %v3462 = vtanh.pop %v3430
      %v3463 = vtanh.pop %v3431
      %v3464 = vtanh.pop %v3432
      %v3465 = vtanh.pop %v3433
      %v3466 = vtanh.pop %v3434
      %v3467 = vtanh.pop %v3435
      %v3468 = vtanh.pop %v3436
      %v3469 = vtanh.pop %v3437
      %v3470 = vtanh.pop %v3438
      %v3471 = vtanh.pop %v3439
      %v3472 = vtanh.pop %v3440
      %v3473 = vtanh.pop %v3441
      %v3474 = vtanh.pop %v3442
      %v3475 = vtanh.pop %v3443
      %v3476 = vtanh.pop %v3444
      %v3477 = vtanh.pop %v3445
      %v3478 = vtanh.pop %v3446
      %v3479 = vtanh.pop %v3447
      %v3480 = vtanh.pop %v3448
      %v3481 = vtanh.pop %v3449
      %v3482 = vtanh.pop %v3450
      %v3483 = vtanh.pop %v3451
      %v3484 = vtanh.pop %v3452
      %v3485 = vtanh.pop %v3453
      %v3486 = vtanh.pop %v3454
      %v3487 = vtanh.pop %v3455
      %v3488 = vtanh.pop %v3456
      %v3489 = vtanh.pop %v3457
      %v3490 = vtanh.pop %v3458
      %v3491 = vpack.c.bf16 %v3460, %v3459
      %v3492 = vpack.c.bf16 %v3462, %v3461
      %v3493 = vpack.c.bf16 %v3464, %v3463
      %v3494 = vpack.c.bf16 %v3466, %v3465
      %v3495 = vpack.c.bf16 %v3468, %v3467
      %v3496 = vpack.c.bf16 %v3470, %v3469
      %v3497 = vpack.c.bf16 %v3472, %v3471
      %v3498 = vpack.c.bf16 %v3474, %v3473
      %v3499 = vpack.c.bf16 %v3476, %v3475
      %v3500 = vpack.c.bf16 %v3478, %v3477
      %v3501 = vpack.c.bf16 %v3480, %v3479
      %v3502 = vpack.c.bf16 %v3482, %v3481
      %v3503 = vpack.c.bf16 %v3484, %v3483
      %v3504 = vpack.c.bf16 %v3486, %v3485
      %v3505 = vpack.c.bf16 %v3488, %v3487
      %v3506 = vpack.c.bf16 %v3490, %v3489
      %v3523 = vunpack.c.l.b16 %v3491
      %v3524 = vunpack.c.h.b16 %v3491
      %v3525 = vunpack.c.l.b16 %v3492
      %v3526 = vunpack.c.h.b16 %v3492
      %v3527 = vunpack.c.l.b16 %v3493
      %v3528 = vunpack.c.h.b16 %v3493
      %v3529 = vunpack.c.l.b16 %v3494
      %v3530 = vunpack.c.h.b16 %v3494
      %v3531 = vunpack.c.l.b16 %v3495
      %v3532 = vunpack.c.h.b16 %v3495
      %v3533 = vunpack.c.l.b16 %v3496
      %v3534 = vunpack.c.h.b16 %v3496
      %v3535 = vunpack.c.l.b16 %v3497
      %v3536 = vunpack.c.h.b16 %v3497
      %v3537 = vunpack.c.l.b16 %v3498
      %v3538 = vunpack.c.h.b16 %v3498
      %v3539 = vunpack.c.l.b16 %v3499
      %v3540 = vunpack.c.h.b16 %v3499
      %v3541 = vunpack.c.l.b16 %v3500
      %v3542 = vunpack.c.h.b16 %v3500
      %v3543 = vunpack.c.l.b16 %v3501
      %v3544 = vunpack.c.h.b16 %v3501
      %v3545 = vunpack.c.l.b16 %v3502
      %v3546 = vunpack.c.h.b16 %v3502
      %v3547 = vunpack.c.l.b16 %v3503
      %v3548 = vunpack.c.h.b16 %v3503
      %v3549 = vunpack.c.l.b16 %v3504
      %v3550 = vunpack.c.h.b16 %v3504
      %v3551 = vunpack.c.l.b16 %v3505
      %v3552 = vunpack.c.h.b16 %v3505
      %v3553 = vunpack.c.l.b16 %v3506
      %v3554 = vunpack.c.h.b16 %v3506
      %v3555 = vpack.c.b16 %v3523, %v3523
      %v3556 = vpack.c.b16 %v3524, %v3524
      %v3557 = vpack.c.b16 %v3525, %v3525
      %v3558 = vpack.c.b16 %v3526, %v3526
      %v3559 = vpack.c.b16 %v3527, %v3527
      %v3560 = vpack.c.b16 %v3528, %v3528
      %v3561 = vpack.c.b16 %v3529, %v3529
      %v3562 = vpack.c.b16 %v3530, %v3530
      %v3563 = vpack.c.b16 %v3531, %v3531
      %v3564 = vpack.c.b16 %v3532, %v3532
      %v3565 = vpack.c.b16 %v3533, %v3533
      %v3566 = vpack.c.b16 %v3534, %v3534
      %v3567 = vpack.c.b16 %v3535, %v3535
      %v3568 = vpack.c.b16 %v3536, %v3536
      %v3569 = vpack.c.b16 %v3537, %v3537
      %v3570 = vpack.c.b16 %v3538, %v3538
      %v3571 = vpack.c.b16 %v3539, %v3539
      %v3572 = vpack.c.b16 %v3540, %v3540
      %v3573 = vpack.c.b16 %v3541, %v3541
      %v3574 = vpack.c.b16 %v3542, %v3542
      %v3575 = vpack.c.b16 %v3543, %v3543
      %v3576 = vpack.c.b16 %v3544, %v3544
      %v3577 = vpack.c.b16 %v3545, %v3545
      %v3578 = vpack.c.b16 %v3546, %v3546
      %v3579 = vpack.c.b16 %v3547, %v3547
      %v3580 = vpack.c.b16 %v3548, %v3548
      %v3581 = vpack.c.b16 %v3549, %v3549
      %v3582 = vpack.c.b16 %v3550, %v3550
      %v3583 = vpack.c.b16 %v3551, %v3551
      %v3584 = vpack.c.b16 %v3552, %v3552
      %v3585 = vpack.c.b16 %v3553, %v3553
      %v3586 = vpack.c.b16 %v3554, %v3554
      %3619 = vst [vmem:[#allocation7] sm:$0xf] %v3555
      %3620 = vst [vmem:[#allocation7 + $0x4] sm:$0xf] %v3556
      %3621 = vst [vmem:[#allocation7 + $0x8] sm:$0xf] %v3557
      %3622 = vst [vmem:[#allocation7 + $0xc] sm:$0xf] %v3558
      %3623 = vst [vmem:[#allocation7 + $0x10] sm:$0xf] %v3559
      %3624 = vst [vmem:[#allocation7 + $0x14] sm:$0xf] %v3560
      %3625 = vst [vmem:[#allocation7 + $0x18] sm:$0xf] %v3561
      %3626 = vst [vmem:[#allocation7 + $0x1c] sm:$0xf] %v3562
      %3627 = vst [vmem:[#allocation7 + $0x20] sm:$0xf] %v3563
      %3628 = vst [vmem:[#allocation7 + $0x24] sm:$0xf] %v3564
      %3629 = vst [vmem:[#allocation7 + $0x28] sm:$0xf] %v3565
      %3630 = vst [vmem:[#allocation7 + $0x2c] sm:$0xf] %v3566
      %3631 = vst [vmem:[#allocation7 + $0x30] sm:$0xf] %v3567
      %3632 = vst [vmem:[#allocation7 + $0x34] sm:$0xf] %v3568
      %3633 = vst [vmem:[#allocation7 + $0x38] sm:$0xf] %v3569
      %3634 = vst [vmem:[#allocation7 + $0x3c] sm:$0xf] %v3570
      %3635 = vst [vmem:[#allocation7 + $0x40] sm:$0xf] %v3571
      %3636 = vst [vmem:[#allocation7 + $0x44] sm:$0xf] %v3572
      %3637 = vst [vmem:[#allocation7 + $0x48] sm:$0xf] %v3573
      %3638 = vst [vmem:[#allocation7 + $0x4c] sm:$0xf] %v3574
      %3639 = vst [vmem:[#allocation7 + $0x50] sm:$0xf] %v3575
      %3640 = vst [vmem:[#allocation7 + $0x54] sm:$0xf] %v3576
      %3641 = vst [vmem:[#allocation7 + $0x58] sm:$0xf] %v3577
      %3642 = vst [vmem:[#allocation7 + $0x5c] sm:$0xf] %v3578
      %3643 = vst [vmem:[#allocation7 + $0x60] sm:$0xf] %v3579
      %3644 = vst [vmem:[#allocation7 + $0x64] sm:$0xf] %v3580
      %3645 = vst [vmem:[#allocation7 + $0x68] sm:$0xf] %v3581
      %3646 = vst [vmem:[#allocation7 + $0x6c] sm:$0xf] %v3582
      %3647 = vst [vmem:[#allocation7 + $0x70] sm:$0xf] %v3583
      %3648 = vst [vmem:[#allocation7 + $0x74] sm:$0xf] %v3584
      %3649 = vst [vmem:[#allocation7 + $0x78] sm:$0xf] %v3585
      %3650 = vst [vmem:[#allocation7 + $0x7c] sm:$0xf] %v3586
    $region49: #{tpu_custom_call.1} parent=1 // pred_fallthru
      _
    // Predicated region
    $region50: #{tpu_custom_call.1} parent=1 // pred_check
      _
    $region51: #{tpu_custom_call.1} parent=1 // pred_check_branch
      %3652 = sbr.rel (0) target = $region53
    $region52: #{tpu_custom_call.1} parent=1 // pred_region
      %s3654 = ssub.s32 2048, 2048
      %3655 = vsyncadd [#allocation6], %s3654
      %s3656 = sshll.u32 [#allocation7], 4
      %s3657 = int_to_ptr.vmem [resolvable:$true] %s3656
      %3662 = dma.vmem_to_hbm [thread:$0]  %s3657, 2048, %s9, [#allocation6], 64, 64, 4
    $region53: #{tpu_custom_call.1} parent=1 // pred_fallthru
      _
    // Predicated region
    $region54: #{tpu_custom_call.1} parent=1 // pred_check
      _
    $region55: #{tpu_custom_call.1} parent=1 // pred_check_branch
      %3664 = sbr.rel (0) target = $region57
    $region56: #{tpu_custom_call.1} parent=1 // pred_region
      %3665 = dma.done [#allocation6], 2048
    $region57: #{tpu_custom_call.1} parent=1 // pred_fallthru
      _
    %3666 = vsyncpa [#allocation5], 1
    %3667 = vsyncpa [#allocation6], 1

</llo_original>
